<compile_context>
chip_gen: v6e
topology: v6e:2x2x1
jax: 0.10.0
libtpu: 0.0.40
codegen_flags: <defaults>
</compile_context>

<pallas_src>
import numpy as np
import jax
import jax.numpy as jnp
from jax import lax
from jax.experimental import pallas as pl
from jax.experimental.pallas import tpu as pltpu

LN_EPS = 1e-5       # PyTorch nn.LayerNorm default eps
PCONV_EPS = 1e-8    # PartialConv2d eps

_N_BLOCK_ARGS = 8   # params per block passed to the fused kernel


# ----------------------- in-kernel helpers (traced) ------------------------

def _layer_norm_scaled(x, g, b):
    # LayerNorm over the full (C, S) sample; affine is in (C, H, W) flatten
    # order and already has the 1x1 partial-conv mask*ratio folded in.
    n = float(x.shape[0] * x.shape[1])
    mu = jnp.sum(jnp.sum(x, axis=1, keepdims=True), axis=0, keepdims=True) / n
    xc = x - mu
    var = jnp.sum(jnp.sum(xc * xc, axis=1, keepdims=True),
                  axis=0, keepdims=True) / n
    return xc * lax.rsqrt(var + LN_EPS) * g + b


def _mix_channels(w, x, acc=None):
    # w: (Cin, Cout, 1) or (Cin, Cout, S); x: (Cin, S) -> (Cout, S).
    # Rank-1 / per-pixel VPU fused multiply-adds; the MXU is deliberately NOT
    # used for this degenerate 4..8-wide channel contraction.  `acc` seeds the
    # accumulator (used to fuse the residual add).
    cin = x.shape[0]
    y = acc
    for ci in range(cin):
        t = w[ci] * x[ci:ci + 1, :]
        y = t if y is None else y + t
    return y


def _fused_tokenizer_kernel(*refs):
    x_ref = refs[0]
    out_ref = refs[-1]
    prm = refs[1:-1]
    n_blocks = len(prm) // _N_BLOCK_ARGS

    x = x_ref[0]                                       # (C0, S0), lane-dense
    for blk in range(n_blocks):
        (g1, b1, g2, b2, w1c, w2c, wselm, gr) = \
            prm[blk * _N_BLOCK_ARGS:(blk + 1) * _N_BLOCK_ARGS]
        inp = x
        h = _layer_norm_scaled(x, g1[...], b1[...])    # ln1 (mask*ratio folded)
        h = _mix_channels(w1c[...], h)                 # pconv1 (1x1)
        h = _layer_norm_scaled(h, g2[...], b2[...])    # ln2 (mask*ratio folded)
        h = _mix_channels(w2c[...], h, acc=inp)        # pconv2 (1x1) + residual
        y = _mix_channels(wselm[...], h)               # parity-selected 2x2 taps
        x = jnp.dot(y, gr[...],                        # pool + pconv3 ratio (MXU)
                    preferred_element_type=jnp.float32)
    out_ref[0] = x


# --------------------------- host-side precompute ---------------------------

def _pool_matrix(H, W):
    # G[s, t] = 1 iff input pixel s=(h,w) lands in output window t=(oh,ow) of
    # the 2x2 / stride-2 / pad-1 conv (each input pixel lands in exactly one).
    Ho, Wo = H // 2 + 1, W // 2 + 1
    G = np.zeros((H * W, Ho * Wo), np.float32)
    for h in range(H):
        oh = (h + 1) // 2
        for w in range(W):
            ow = (w + 1) // 2
            G[h * W + w, oh * Wo + ow] = 1.0
    return jnp.asarray(G)


def _parity_weight_map(w3, H, W):
    # w3: (kh, kw, Cin, Cout).  Input row h (col w) always hits tap kh = 1-h%2
    # (kw = 1-w%2) of the window it belongs to, so the effective per-pixel
    # channel-mixing weight is a pure function of pixel parity.
    kh = 1 - (jnp.arange(H, dtype=jnp.int32) % 2)
    kw = 1 - (jnp.arange(W, dtype=jnp.int32) % 2)
    wsel = w3[kh][:, kw]                               # (H, W, Cin, Cout)
    cin, cout = w3.shape[2], w3.shape[3]
    return jnp.transpose(wsel, (2, 3, 0, 1)).reshape(cin, cout, H * W)


# ------------------------------- JAX wrapper --------------------------------

def restrictive_cnn_tokenizer(x_nchw, params, ad_flags, mask=None):
    """x_nchw: (B, C, H, W) -> (tokens (B, Hf*Wf, Cf), mask_tokens (1, Hf*Wf, 1))."""
    x = x_nchw.astype(jnp.float32)
    B, C, H, W = x.shape
    xf = x.reshape(B, C, H * W)                        # NCHW flatten: spatial -> lanes
    if mask is None:
        mrow = jnp.ones((1, H * W), jnp.float32)
    else:
        mrow = jnp.reshape(mask, (1, H * W)).astype(jnp.float32)

    def full_spec(a):
        nd = a.ndim
        return pl.BlockSpec(a.shape, lambda b, _nd=nd: (0,) * _nd)

    inputs = [xf]
    in_specs = [pl.BlockSpec((1, C, H * W), lambda b: (b, 0, 0))]

    Hb, Wb = H, W
    for p, ad in zip(params, ad_flags):
        # Batch-independent partial-conv mask bookkeeping, precomputed once.
        # 1x1 pconvs (winsize=1): output = (input * mask * ratio1) @ W, with the
        # per-pixel mask*ratio1 folded exactly into the preceding LN affine.
        ratio1 = jnp.clip(mrow, 0.0, 1.0) / (mrow + PCONV_EPS)
        mr1 = mrow * ratio1                                      # (1, S)
        g1 = p["ln1_g"] * mr1
        b1 = p["ln1_b"] * mr1
        g2 = p["ln2_g"] * mr1
        b2 = p["ln2_b"] * mr1
        # 2x2 pconv: mask folded into the parity weight map, ratio folded into
        # the 0/1 pooling matrix.
        G = _pool_matrix(Hb, Wb)
        upd = jnp.dot(mrow, G)                                   # ones-kernel 2x2 mask conv
        ratio3 = (4.0 / (upd + PCONV_EPS)) * jnp.clip(upd, 0.0, 1.0)
        gr = G * ratio3
        wselm = _parity_weight_map(p["w3"], Hb, Wb) * mrow
        w1c = jnp.transpose(p["w1"], (1, 0))[:, :, None]         # (Cin, Cout, 1)
        w2c = jnp.transpose(p["w2"], (1, 0))[:, :, None]
        blk_inputs = [g1, b1, g2, b2, w1c, w2c, wselm, gr]
        inputs.extend(blk_inputs)
        in_specs.extend(full_spec(a) for a in blk_inputs)
        mrow = (upd / 4.0) if ad else jnp.clip(upd, 0.0, 1.0)
        Hb, Wb = Hb // 2 + 1, Wb // 2 + 1

    cf = params[-1]["w3"].shape[-1]
    sf = Hb * Wb
    out = pl.pallas_call(
        _fused_tokenizer_kernel,
        out_shape=jax.ShapeDtypeStruct((B, cf, sf), jnp.float32),
        grid=(B,),
        in_specs=in_specs,
        out_specs=pl.BlockSpec((1, cf, sf), lambda b: (b, 0, 0)),
        compiler_params=pltpu.CompilerParams(dimension_semantics=("parallel",)),
    )(*inputs)

    tokens = jnp.transpose(out, (0, 2, 1))             # 'b c (h w)' -> 'b (h w) c'
    mask_tokens = mrow.reshape(1, sf, 1)
    return tokens, mask_tokens


# ------------------------------- parameters ---------------------------------

def init_block_params(key, cin, cout, shape):
    H, W = shape
    k1, k2, k3 = jax.random.split(key, 3)
    return {
        # LayerNorm affine, stored in PyTorch (C, H, W) flatten order as (C, H*W)
        "ln1_g": jnp.ones((cin, H * W), jnp.float32),
        "ln1_b": jnp.zeros((cin, H * W), jnp.float32),
        "ln2_g": jnp.ones((cin, H * W), jnp.float32),
        "ln2_b": jnp.zeros((cin, H * W), jnp.float32),
        # 1x1 conv weights, (Cout, Cin)  (== PyTorch Conv2d weight[:, :, 0, 0])
        "w1": jax.random.normal(k1, (cin, cin), jnp.float32) / np.sqrt(float(cin)),
        "w2": jax.random.normal(k2, (cin, cin), jnp.float32) / np.sqrt(float(cin)),
        # 2x2 conv weight, (kh, kw, Cin, Cout)
        "w3": jax.random.normal(k3, (2, 2, cin, cout), jnp.float32) / np.sqrt(4.0 * cin),
    }


def init_cnn_params(key, cin, cout, chid, image_shape, attention_decrease):
    tmp_hidden = (cin + chid) // 2
    shapes = [tuple(image_shape)]
    for _ in range(3):
        shapes.append(tuple(d // 2 + 1 for d in shapes[-1]))
    chans = [(cin, tmp_hidden), (tmp_hidden, chid), (chid, chid), (chid, cout)]
    ad_flags = [True, True, True, attention_decrease]
    keys = jax.random.split(key, 4)
    blocks = [init_block_params(keys[i], chans[i][0], chans[i][1], shapes[i])
              for i in range(4)]
    return blocks, ad_flags


if __name__ == "__main__":
    key = jax.random.PRNGKey(0)
    kx, kp = jax.random.split(key)

    in_channels, out_channels, hidden_channels = 4, 8, 8
    image_shape = (16, 16)

    x = jax.random.normal(kx, (2, in_channels, *image_shape), jnp.float32)
    params, ad_flags = init_cnn_params(kp, in_channels, out_channels,
                                       hidden_channels, image_shape,
                                       attention_decrease=True)

    fwd = jax.jit(lambda xx, pp: restrictive_cnn_tokenizer(xx, pp, ad_flags))
    tokens, mask_tokens = fwd(x, params)
    jax.block_until_ready((tokens, mask_tokens))

    # final spatial: 16 -> 9 -> 5 -> 3 -> 2  =>  4 tokens
    assert tokens.shape == (2, 4, out_channels), tokens.shape
    assert mask_tokens.shape == (1, 4, 1), mask_tokens.shape
    print("KERNEL_OK")
</pallas_src>

<mosaic_0001>
module attributes {stable_mosaic.version = 11 : i64} {
  func.func @_fused_tokenizer_kernel(%arg0: i32, %arg1: memref<1x4x256xf32, #tpu.memory_space<vmem>>, %arg2: memref<4x256xf32, #tpu.memory_space<vmem>>, %arg3: memref<4x256xf32, #tpu.memory_space<vmem>>, %arg4: memref<4x256xf32, #tpu.memory_space<vmem>>, %arg5: memref<4x256xf32, #tpu.memory_space<vmem>>, %arg6: memref<4x4x1xf32, #tpu.memory_space<vmem>>, %arg7: memref<4x4x1xf32, #tpu.memory_space<vmem>>, %arg8: memref<4x6x256xf32, #tpu.memory_space<vmem>>, %arg9: memref<256x81xf32, #tpu.memory_space<vmem>>, %arg10: memref<6x81xf32, #tpu.memory_space<vmem>>, %arg11: memref<6x81xf32, #tpu.memory_space<vmem>>, %arg12: memref<6x81xf32, #tpu.memory_space<vmem>>, %arg13: memref<6x81xf32, #tpu.memory_space<vmem>>, %arg14: memref<6x6x1xf32, #tpu.memory_space<vmem>>, %arg15: memref<6x6x1xf32, #tpu.memory_space<vmem>>, %arg16: memref<6x8x81xf32, #tpu.memory_space<vmem>>, %arg17: memref<81x25xf32, #tpu.memory_space<vmem>>, %arg18: memref<8x25xf32, #tpu.memory_space<vmem>>, %arg19: memref<8x25xf32, #tpu.memory_space<vmem>>, %arg20: memref<8x25xf32, #tpu.memory_space<vmem>>, %arg21: memref<8x25xf32, #tpu.memory_space<vmem>>, %arg22: memref<8x8x1xf32, #tpu.memory_space<vmem>>, %arg23: memref<8x8x1xf32, #tpu.memory_space<vmem>>, %arg24: memref<8x8x25xf32, #tpu.memory_space<vmem>>, %arg25: memref<25x9xf32, #tpu.memory_space<vmem>>, %arg26: memref<8x9xf32, #tpu.memory_space<vmem>>, %arg27: memref<8x9xf32, #tpu.memory_space<vmem>>, %arg28: memref<8x9xf32, #tpu.memory_space<vmem>>, %arg29: memref<8x9xf32, #tpu.memory_space<vmem>>, %arg30: memref<8x8x1xf32, #tpu.memory_space<vmem>>, %arg31: memref<8x8x1xf32, #tpu.memory_space<vmem>>, %arg32: memref<8x8x9xf32, #tpu.memory_space<vmem>>, %arg33: memref<9x4xf32, #tpu.memory_space<vmem>>, %arg34: memref<1x8x4xf32, #tpu.memory_space<vmem>>) attributes {dimension_semantics = [#tpu.dimension_semantics<parallel>], iteration_bounds = array<i64: 2>, scalar_prefetch = 0 : i64, scratch_operands = 0 : i64, tpu.core_type = #tpu.core_type<tc>, window_params = [{transform_indices = @transform_0, window_bounds = array<i64: 1, 4, 256>}, {pipeline_mode = #tpu.pipeline_mode<synchronous>, transform_indices = @transform_1, window_bounds = array<i64: 4, 256>}, {pipeline_mode = #tpu.pipeline_mode<synchronous>, transform_indices = @transform_2, window_bounds = array<i64: 4, 256>}, {pipeline_mode = #tpu.pipeline_mode<synchronous>, transform_indices = @transform_3, window_bounds = array<i64: 4, 256>}, {pipeline_mode = #tpu.pipeline_mode<synchronous>, transform_indices = @transform_4, window_bounds = array<i64: 4, 256>}, {pipeline_mode = #tpu.pipeline_mode<synchronous>, transform_indices = @transform_5, window_bounds = array<i64: 4, 4, 1>}, {pipeline_mode = #tpu.pipeline_mode<synchronous>, transform_indices = @transform_6, window_bounds = array<i64: 4, 4, 1>}, {pipeline_mode = #tpu.pipeline_mode<synchronous>, transform_indices = @transform_7, window_bounds = array<i64: 4, 6, 256>}, {pipeline_mode = #tpu.pipeline_mode<synchronous>, transform_indices = @transform_8, window_bounds = array<i64: 256, 81>}, {pipeline_mode = #tpu.pipeline_mode<synchronous>, transform_indices = @transform_9, window_bounds = array<i64: 6, 81>}, {pipeline_mode = #tpu.pipeline_mode<synchronous>, transform_indices = @transform_10, window_bounds = array<i64: 6, 81>}, {pipeline_mode = #tpu.pipeline_mode<synchronous>, transform_indices = @transform_11, window_bounds = array<i64: 6, 81>}, {pipeline_mode = #tpu.pipeline_mode<synchronous>, transform_indices = @transform_12, window_bounds = array<i64: 6, 81>}, {pipeline_mode = #tpu.pipeline_mode<synchronous>, transform_indices = @transform_13, window_bounds = array<i64: 6, 6, 1>}, {pipeline_mode = #tpu.pipeline_mode<synchronous>, transform_indices = @transform_14, window_bounds = array<i64: 6, 6, 1>}, {pipeline_mode = #tpu.pipeline_mode<synchronous>, transform_indices = @transform_15, window_bounds = array<i64: 6, 8, 81>}, {pipeline_mode = #tpu.pipeline_mode<synchronous>, transform_indices = @transform_16, window_bounds = array<i64: 81, 25>}, {pipeline_mode = #tpu.pipeline_mode<synchronous>, transform_indices = @transform_17, window_bounds = array<i64: 8, 25>}, {pipeline_mode = #tpu.pipeline_mode<synchronous>, transform_indices = @transform_18, window_bounds = array<i64: 8, 25>}, {pipeline_mode = #tpu.pipeline_mode<synchronous>, transform_indices = @transform_19, window_bounds = array<i64: 8, 25>}, {pipeline_mode = #tpu.pipeline_mode<synchronous>, transform_indices = @transform_20, window_bounds = array<i64: 8, 25>}, {pipeline_mode = #tpu.pipeline_mode<synchronous>, transform_indices = @transform_21, window_bounds = array<i64: 8, 8, 1>}, {pipeline_mode = #tpu.pipeline_mode<synchronous>, transform_indices = @transform_22, window_bounds = array<i64: 8, 8, 1>}, {pipeline_mode = #tpu.pipeline_mode<synchronous>, transform_indices = @transform_23, window_bounds = array<i64: 8, 8, 25>}, {pipeline_mode = #tpu.pipeline_mode<synchronous>, transform_indices = @transform_24, window_bounds = array<i64: 25, 9>}, {pipeline_mode = #tpu.pipeline_mode<synchronous>, transform_indices = @transform_25, window_bounds = array<i64: 8, 9>}, {pipeline_mode = #tpu.pipeline_mode<synchronous>, transform_indices = @transform_26, window_bounds = array<i64: 8, 9>}, {pipeline_mode = #tpu.pipeline_mode<synchronous>, transform_indices = @transform_27, window_bounds = array<i64: 8, 9>}, {pipeline_mode = #tpu.pipeline_mode<synchronous>, transform_indices = @transform_28, window_bounds = array<i64: 8, 9>}, {pipeline_mode = #tpu.pipeline_mode<synchronous>, transform_indices = @transform_29, window_bounds = array<i64: 8, 8, 1>}, {pipeline_mode = #tpu.pipeline_mode<synchronous>, transform_indices = @transform_30, window_bounds = array<i64: 8, 8, 1>}, {pipeline_mode = #tpu.pipeline_mode<synchronous>, transform_indices = @transform_31, window_bounds = array<i64: 8, 8, 9>}, {pipeline_mode = #tpu.pipeline_mode<synchronous>, transform_indices = @transform_32, window_bounds = array<i64: 9, 4>}, {transform_indices = @transform_33, window_bounds = array<i64: 1, 8, 4>}]} {
    %c0 = arith.constant 0 : index
    %c0_0 = arith.constant 0 : index
    %c0_1 = arith.constant 0 : index
    %0 = vector.load %arg1[%c0, %c0_0, %c0_1] : memref<1x4x256xf32, #tpu.memory_space<vmem>>, vector<1x4x256xf32>
    %1 = vector.shape_cast %0 : vector<1x4x256xf32> to vector<4x256xf32>
    %c0_2 = arith.constant 0 : index
    %c0_3 = arith.constant 0 : index
    %2 = vector.load %arg2[%c0_2, %c0_3] : memref<4x256xf32, #tpu.memory_space<vmem>>, vector<4x256xf32>
    %c0_4 = arith.constant 0 : index
    %c0_5 = arith.constant 0 : index
    %3 = vector.load %arg3[%c0_4, %c0_5] : memref<4x256xf32, #tpu.memory_space<vmem>>, vector<4x256xf32>
    %cst = arith.constant dense<0.000000e+00> : vector<4xf32>
    %4 = vector.multi_reduction <add>, %1, %cst [1] : vector<4x256xf32> to vector<4xf32>
    %5 = vector.shape_cast %4 : vector<4xf32> to vector<4x1xf32>
    %cst_6 = arith.constant dense<0.000000e+00> : vector<1xf32>
    %6 = vector.multi_reduction <add>, %5, %cst_6 [0] : vector<4x1xf32> to vector<1xf32>
    %7 = vector.shape_cast %6 : vector<1xf32> to vector<1x1xf32>
    %cst_7 = arith.constant 1.024000e+03 : f32
    %8 = vector.broadcast %cst_7 : f32 to vector<1x1xf32>
    %9 = arith.divf %7, %8 : vector<1x1xf32>
    %10 = vector.broadcast %9 : vector<1x1xf32> to vector<4x256xf32>
    %11 = arith.subf %1, %10 : vector<4x256xf32>
    %12 = arith.mulf %11, %11 : vector<4x256xf32>
    %cst_8 = arith.constant dense<0.000000e+00> : vector<4xf32>
    %13 = vector.multi_reduction <add>, %12, %cst_8 [1] : vector<4x256xf32> to vector<4xf32>
    %14 = vector.shape_cast %13 : vector<4xf32> to vector<4x1xf32>
    %cst_9 = arith.constant dense<0.000000e+00> : vector<1xf32>
    %15 = vector.multi_reduction <add>, %14, %cst_9 [0] : vector<4x1xf32> to vector<1xf32>
    %16 = vector.shape_cast %15 : vector<1xf32> to vector<1x1xf32>
    %cst_10 = arith.constant 1.024000e+03 : f32
    %17 = vector.broadcast %cst_10 : f32 to vector<1x1xf32>
    %18 = arith.divf %16, %17 : vector<1x1xf32>
    %cst_11 = arith.constant 9.99999974E-6 : f32
    %19 = vector.broadcast %cst_11 : f32 to vector<1x1xf32>
    %20 = arith.addf %18, %19 : vector<1x1xf32>
    %21 = math.rsqrt %20 : vector<1x1xf32>
    %22 = vector.broadcast %21 : vector<1x1xf32> to vector<4x256xf32>
    %23 = arith.mulf %11, %22 : vector<4x256xf32>
    %24 = arith.mulf %23, %2 : vector<4x256xf32>
    %25 = arith.addf %24, %3 : vector<4x256xf32>
    %c0_12 = arith.constant 0 : index
    %c0_13 = arith.constant 0 : index
    %c0_14 = arith.constant 0 : index
    %26 = vector.load %arg6[%c0_12, %c0_13, %c0_14] : memref<4x4x1xf32, #tpu.memory_space<vmem>>, vector<4x4x1xf32>
    %27 = vector.extract_strided_slice %26 {offsets = [0, 0, 0], sizes = [1, 4, 1], strides = [1, 1, 1]} : vector<4x4x1xf32> to vector<1x4x1xf32>
    %28 = vector.shape_cast %27 : vector<1x4x1xf32> to vector<4x1xf32>
    %29 = vector.extract_strided_slice %25 {offsets = [0, 0], sizes = [1, 256], strides = [1, 1]} : vector<4x256xf32> to vector<1x256xf32>
    %30 = vector.broadcast %28 : vector<4x1xf32> to vector<4x256xf32>
    %31 = vector.broadcast %29 : vector<1x256xf32> to vector<4x256xf32>
    %32 = arith.mulf %30, %31 : vector<4x256xf32>
    %33 = vector.extract_strided_slice %26 {offsets = [1, 0, 0], sizes = [1, 4, 1], strides = [1, 1, 1]} : vector<4x4x1xf32> to vector<1x4x1xf32>
    %34 = vector.shape_cast %33 : vector<1x4x1xf32> to vector<4x1xf32>
    %35 = vector.extract_strided_slice %25 {offsets = [1, 0], sizes = [1, 256], strides = [1, 1]} : vector<4x256xf32> to vector<1x256xf32>
    %36 = vector.broadcast %34 : vector<4x1xf32> to vector<4x256xf32>
    %37 = vector.broadcast %35 : vector<1x256xf32> to vector<4x256xf32>
    %38 = arith.mulf %36, %37 : vector<4x256xf32>
    %39 = arith.addf %32, %38 : vector<4x256xf32>
    %40 = vector.extract_strided_slice %26 {offsets = [2, 0, 0], sizes = [1, 4, 1], strides = [1, 1, 1]} : vector<4x4x1xf32> to vector<1x4x1xf32>
    %41 = vector.shape_cast %40 : vector<1x4x1xf32> to vector<4x1xf32>
    %42 = vector.extract_strided_slice %25 {offsets = [2, 0], sizes = [1, 256], strides = [1, 1]} : vector<4x256xf32> to vector<1x256xf32>
    %43 = vector.broadcast %41 : vector<4x1xf32> to vector<4x256xf32>
    %44 = vector.broadcast %42 : vector<1x256xf32> to vector<4x256xf32>
    %45 = arith.mulf %43, %44 : vector<4x256xf32>
    %46 = arith.addf %39, %45 : vector<4x256xf32>
    %47 = vector.extract_strided_slice %26 {offsets = [3, 0, 0], sizes = [1, 4, 1], strides = [1, 1, 1]} : vector<4x4x1xf32> to vector<1x4x1xf32>
    %48 = vector.shape_cast %47 : vector<1x4x1xf32> to vector<4x1xf32>
    %49 = vector.extract_strided_slice %25 {offsets = [3, 0], sizes = [1, 256], strides = [1, 1]} : vector<4x256xf32> to vector<1x256xf32>
    %50 = vector.broadcast %48 : vector<4x1xf32> to vector<4x256xf32>
    %51 = vector.broadcast %49 : vector<1x256xf32> to vector<4x256xf32>
    %52 = arith.mulf %50, %51 : vector<4x256xf32>
    %53 = arith.addf %46, %52 : vector<4x256xf32>
    %c0_15 = arith.constant 0 : index
    %c0_16 = arith.constant 0 : index
    %54 = vector.load %arg4[%c0_15, %c0_16] : memref<4x256xf32, #tpu.memory_space<vmem>>, vector<4x256xf32>
    %c0_17 = arith.constant 0 : index
    %c0_18 = arith.constant 0 : index
    %55 = vector.load %arg5[%c0_17, %c0_18] : memref<4x256xf32, #tpu.memory_space<vmem>>, vector<4x256xf32>
    %cst_19 = arith.constant dense<0.000000e+00> : vector<4xf32>
    %56 = vector.multi_reduction <add>, %53, %cst_19 [1] : vector<4x256xf32> to vector<4xf32>
    %57 = vector.shape_cast %56 : vector<4xf32> to vector<4x1xf32>
    %cst_20 = arith.constant dense<0.000000e+00> : vector<1xf32>
    %58 = vector.multi_reduction <add>, %57, %cst_20 [0] : vector<4x1xf32> to vector<1xf32>
    %59 = vector.shape_cast %58 : vector<1xf32> to vector<1x1xf32>
    %cst_21 = arith.constant 1.024000e+03 : f32
    %60 = vector.broadcast %cst_21 : f32 to vector<1x1xf32>
    %61 = arith.divf %59, %60 : vector<1x1xf32>
    %62 = vector.broadcast %61 : vector<1x1xf32> to vector<4x256xf32>
    %63 = arith.subf %53, %62 : vector<4x256xf32>
    %64 = arith.mulf %63, %63 : vector<4x256xf32>
    %cst_22 = arith.constant dense<0.000000e+00> : vector<4xf32>
    %65 = vector.multi_reduction <add>, %64, %cst_22 [1] : vector<4x256xf32> to vector<4xf32>
    %66 = vector.shape_cast %65 : vector<4xf32> to vector<4x1xf32>
    %cst_23 = arith.constant dense<0.000000e+00> : vector<1xf32>
    %67 = vector.multi_reduction <add>, %66, %cst_23 [0] : vector<4x1xf32> to vector<1xf32>
    %68 = vector.shape_cast %67 : vector<1xf32> to vector<1x1xf32>
    %cst_24 = arith.constant 1.024000e+03 : f32
    %69 = vector.broadcast %cst_24 : f32 to vector<1x1xf32>
    %70 = arith.divf %68, %69 : vector<1x1xf32>
    %cst_25 = arith.constant 9.99999974E-6 : f32
    %71 = vector.broadcast %cst_25 : f32 to vector<1x1xf32>
    %72 = arith.addf %70, %71 : vector<1x1xf32>
    %73 = math.rsqrt %72 : vector<1x1xf32>
    %74 = vector.broadcast %73 : vector<1x1xf32> to vector<4x256xf32>
    %75 = arith.mulf %63, %74 : vector<4x256xf32>
    %76 = arith.mulf %75, %54 : vector<4x256xf32>
    %77 = arith.addf %76, %55 : vector<4x256xf32>
    %c0_26 = arith.constant 0 : index
    %c0_27 = arith.constant 0 : index
    %c0_28 = arith.constant 0 : index
    %78 = vector.load %arg7[%c0_26, %c0_27, %c0_28] : memref<4x4x1xf32, #tpu.memory_space<vmem>>, vector<4x4x1xf32>
    %79 = vector.extract_strided_slice %78 {offsets = [0, 0, 0], sizes = [1, 4, 1], strides = [1, 1, 1]} : vector<4x4x1xf32> to vector<1x4x1xf32>
    %80 = vector.shape_cast %79 : vector<1x4x1xf32> to vector<4x1xf32>
    %81 = vector.extract_strided_slice %77 {offsets = [0, 0], sizes = [1, 256], strides = [1, 1]} : vector<4x256xf32> to vector<1x256xf32>
    %82 = vector.broadcast %80 : vector<4x1xf32> to vector<4x256xf32>
    %83 = vector.broadcast %81 : vector<1x256xf32> to vector<4x256xf32>
    %84 = arith.mulf %82, %83 : vector<4x256xf32>
    %85 = arith.addf %1, %84 : vector<4x256xf32>
    %86 = vector.extract_strided_slice %78 {offsets = [1, 0, 0], sizes = [1, 4, 1], strides = [1, 1, 1]} : vector<4x4x1xf32> to vector<1x4x1xf32>
    %87 = vector.shape_cast %86 : vector<1x4x1xf32> to vector<4x1xf32>
    %88 = vector.extract_strided_slice %77 {offsets = [1, 0], sizes = [1, 256], strides = [1, 1]} : vector<4x256xf32> to vector<1x256xf32>
    %89 = vector.broadcast %87 : vector<4x1xf32> to vector<4x256xf32>
    %90 = vector.broadcast %88 : vector<1x256xf32> to vector<4x256xf32>
    %91 = arith.mulf %89, %90 : vector<4x256xf32>
    %92 = arith.addf %85, %91 : vector<4x256xf32>
    %93 = vector.extract_strided_slice %78 {offsets = [2, 0, 0], sizes = [1, 4, 1], strides = [1, 1, 1]} : vector<4x4x1xf32> to vector<1x4x1xf32>
    %94 = vector.shape_cast %93 : vector<1x4x1xf32> to vector<4x1xf32>
    %95 = vector.extract_strided_slice %77 {offsets = [2, 0], sizes = [1, 256], strides = [1, 1]} : vector<4x256xf32> to vector<1x256xf32>
    %96 = vector.broadcast %94 : vector<4x1xf32> to vector<4x256xf32>
    %97 = vector.broadcast %95 : vector<1x256xf32> to vector<4x256xf32>
    %98 = arith.mulf %96, %97 : vector<4x256xf32>
    %99 = arith.addf %92, %98 : vector<4x256xf32>
    %100 = vector.extract_strided_slice %78 {offsets = [3, 0, 0], sizes = [1, 4, 1], strides = [1, 1, 1]} : vector<4x4x1xf32> to vector<1x4x1xf32>
    %101 = vector.shape_cast %100 : vector<1x4x1xf32> to vector<4x1xf32>
    %102 = vector.extract_strided_slice %77 {offsets = [3, 0], sizes = [1, 256], strides = [1, 1]} : vector<4x256xf32> to vector<1x256xf32>
    %103 = vector.broadcast %101 : vector<4x1xf32> to vector<4x256xf32>
    %104 = vector.broadcast %102 : vector<1x256xf32> to vector<4x256xf32>
    %105 = arith.mulf %103, %104 : vector<4x256xf32>
    %106 = arith.addf %99, %105 : vector<4x256xf32>
    %c0_29 = arith.constant 0 : index
    %c0_30 = arith.constant 0 : index
    %c0_31 = arith.constant 0 : index
    %107 = vector.load %arg8[%c0_29, %c0_30, %c0_31] : memref<4x6x256xf32, #tpu.memory_space<vmem>>, vector<4x6x256xf32>
    %108 = vector.extract_strided_slice %107 {offsets = [0, 0, 0], sizes = [1, 6, 256], strides = [1, 1, 1]} : vector<4x6x256xf32> to vector<1x6x256xf32>
    %109 = vector.shape_cast %108 : vector<1x6x256xf32> to vector<6x256xf32>
    %110 = vector.extract_strided_slice %106 {offsets = [0, 0], sizes = [1, 256], strides = [1, 1]} : vector<4x256xf32> to vector<1x256xf32>
    %111 = vector.broadcast %110 : vector<1x256xf32> to vector<6x256xf32>
    %112 = arith.mulf %109, %111 : vector<6x256xf32>
    %113 = vector.extract_strided_slice %107 {offsets = [1, 0, 0], sizes = [1, 6, 256], strides = [1, 1, 1]} : vector<4x6x256xf32> to vector<1x6x256xf32>
    %114 = vector.shape_cast %113 : vector<1x6x256xf32> to vector<6x256xf32>
    %115 = vector.extract_strided_slice %106 {offsets = [1, 0], sizes = [1, 256], strides = [1, 1]} : vector<4x256xf32> to vector<1x256xf32>
    %116 = vector.broadcast %115 : vector<1x256xf32> to vector<6x256xf32>
    %117 = arith.mulf %114, %116 : vector<6x256xf32>
    %118 = arith.addf %112, %117 : vector<6x256xf32>
    %119 = vector.extract_strided_slice %107 {offsets = [2, 0, 0], sizes = [1, 6, 256], strides = [1, 1, 1]} : vector<4x6x256xf32> to vector<1x6x256xf32>
    %120 = vector.shape_cast %119 : vector<1x6x256xf32> to vector<6x256xf32>
    %121 = vector.extract_strided_slice %106 {offsets = [2, 0], sizes = [1, 256], strides = [1, 1]} : vector<4x256xf32> to vector<1x256xf32>
    %122 = vector.broadcast %121 : vector<1x256xf32> to vector<6x256xf32>
    %123 = arith.mulf %120, %122 : vector<6x256xf32>
    %124 = arith.addf %118, %123 : vector<6x256xf32>
    %125 = vector.extract_strided_slice %107 {offsets = [3, 0, 0], sizes = [1, 6, 256], strides = [1, 1, 1]} : vector<4x6x256xf32> to vector<1x6x256xf32>
    %126 = vector.shape_cast %125 : vector<1x6x256xf32> to vector<6x256xf32>
    %127 = vector.extract_strided_slice %106 {offsets = [3, 0], sizes = [1, 256], strides = [1, 1]} : vector<4x256xf32> to vector<1x256xf32>
    %128 = vector.broadcast %127 : vector<1x256xf32> to vector<6x256xf32>
    %129 = arith.mulf %126, %128 : vector<6x256xf32>
    %130 = arith.addf %124, %129 : vector<6x256xf32>
    %c0_32 = arith.constant 0 : index
    %c0_33 = arith.constant 0 : index
    %131 = vector.load %arg9[%c0_32, %c0_33] : memref<256x81xf32, #tpu.memory_space<vmem>>, vector<256x81xf32>
    %cst_34 = arith.constant dense<0.000000e+00> : vector<6x81xf32>
    %132 = tpu.matmul %130, %131, %cst_34 {dimension_numbers = #tpu.dot_dimension_numbers<[1], [0], [0], [1], [0, 0, 1, 1], [], []>} : vector<6x256xf32>, vector<256x81xf32>, vector<6x81xf32> -> vector<6x81xf32>
    %c0_35 = arith.constant 0 : index
    %c0_36 = arith.constant 0 : index
    %133 = vector.load %arg10[%c0_35, %c0_36] : memref<6x81xf32, #tpu.memory_space<vmem>>, vector<6x81xf32>
    %c0_37 = arith.constant 0 : index
    %c0_38 = arith.constant 0 : index
    %134 = vector.load %arg11[%c0_37, %c0_38] : memref<6x81xf32, #tpu.memory_space<vmem>>, vector<6x81xf32>
    %cst_39 = arith.constant dense<0.000000e+00> : vector<6xf32>
    %135 = vector.multi_reduction <add>, %132, %cst_39 [1] : vector<6x81xf32> to vector<6xf32>
    %136 = vector.shape_cast %135 : vector<6xf32> to vector<6x1xf32>
    %cst_40 = arith.constant dense<0.000000e+00> : vector<1xf32>
    %137 = vector.multi_reduction <add>, %136, %cst_40 [0] : vector<6x1xf32> to vector<1xf32>
    %138 = vector.shape_cast %137 : vector<1xf32> to vector<1x1xf32>
    %cst_41 = arith.constant 4.860000e+02 : f32
    %139 = vector.broadcast %cst_41 : f32 to vector<1x1xf32>
    %140 = arith.divf %138, %139 : vector<1x1xf32>
    %141 = vector.broadcast %140 : vector<1x1xf32> to vector<6x81xf32>
    %142 = arith.subf %132, %141 : vector<6x81xf32>
    %143 = arith.mulf %142, %142 : vector<6x81xf32>
    %cst_42 = arith.constant dense<0.000000e+00> : vector<6xf32>
    %144 = vector.multi_reduction <add>, %143, %cst_42 [1] : vector<6x81xf32> to vector<6xf32>
    %145 = vector.shape_cast %144 : vector<6xf32> to vector<6x1xf32>
    %cst_43 = arith.constant dense<0.000000e+00> : vector<1xf32>
    %146 = vector.multi_reduction <add>, %145, %cst_43 [0] : vector<6x1xf32> to vector<1xf32>
    %147 = vector.shape_cast %146 : vector<1xf32> to vector<1x1xf32>
    %cst_44 = arith.constant 4.860000e+02 : f32
    %148 = vector.broadcast %cst_44 : f32 to vector<1x1xf32>
    %149 = arith.divf %147, %148 : vector<1x1xf32>
    %cst_45 = arith.constant 9.99999974E-6 : f32
    %150 = vector.broadcast %cst_45 : f32 to vector<1x1xf32>
    %151 = arith.addf %149, %150 : vector<1x1xf32>
    %152 = math.rsqrt %151 : vector<1x1xf32>
    %153 = vector.broadcast %152 : vector<1x1xf32> to vector<6x81xf32>
    %154 = arith.mulf %142, %153 : vector<6x81xf32>
    %155 = arith.mulf %154, %133 : vector<6x81xf32>
    %156 = arith.addf %155, %134 : vector<6x81xf32>
    %c0_46 = arith.constant 0 : index
    %c0_47 = arith.constant 0 : index
    %c0_48 = arith.constant 0 : index
    %157 = vector.load %arg14[%c0_46, %c0_47, %c0_48] : memref<6x6x1xf32, #tpu.memory_space<vmem>>, vector<6x6x1xf32>
    %158 = vector.extract_strided_slice %157 {offsets = [0, 0, 0], sizes = [1, 6, 1], strides = [1, 1, 1]} : vector<6x6x1xf32> to vector<1x6x1xf32>
    %159 = vector.shape_cast %158 : vector<1x6x1xf32> to vector<6x1xf32>
    %160 = vector.extract_strided_slice %156 {offsets = [0, 0], sizes = [1, 81], strides = [1, 1]} : vector<6x81xf32> to vector<1x81xf32>
    %161 = vector.broadcast %159 : vector<6x1xf32> to vector<6x81xf32>
    %162 = vector.broadcast %160 : vector<1x81xf32> to vector<6x81xf32>
    %163 = arith.mulf %161, %162 : vector<6x81xf32>
    %164 = vector.extract_strided_slice %157 {offsets = [1, 0, 0], sizes = [1, 6, 1], strides = [1, 1, 1]} : vector<6x6x1xf32> to vector<1x6x1xf32>
    %165 = vector.shape_cast %164 : vector<1x6x1xf32> to vector<6x1xf32>
    %166 = vector.extract_strided_slice %156 {offsets = [1, 0], sizes = [1, 81], strides = [1, 1]} : vector<6x81xf32> to vector<1x81xf32>
    %167 = vector.broadcast %165 : vector<6x1xf32> to vector<6x81xf32>
    %168 = vector.broadcast %166 : vector<1x81xf32> to vector<6x81xf32>
    %169 = arith.mulf %167, %168 : vector<6x81xf32>
    %170 = arith.addf %163, %169 : vector<6x81xf32>
    %171 = vector.extract_strided_slice %157 {offsets = [2, 0, 0], sizes = [1, 6, 1], strides = [1, 1, 1]} : vector<6x6x1xf32> to vector<1x6x1xf32>
    %172 = vector.shape_cast %171 : vector<1x6x1xf32> to vector<6x1xf32>
    %173 = vector.extract_strided_slice %156 {offsets = [2, 0], sizes = [1, 81], strides = [1, 1]} : vector<6x81xf32> to vector<1x81xf32>
    %174 = vector.broadcast %172 : vector<6x1xf32> to vector<6x81xf32>
    %175 = vector.broadcast %173 : vector<1x81xf32> to vector<6x81xf32>
    %176 = arith.mulf %174, %175 : vector<6x81xf32>
    %177 = arith.addf %170, %176 : vector<6x81xf32>
    %178 = vector.extract_strided_slice %157 {offsets = [3, 0, 0], sizes = [1, 6, 1], strides = [1, 1, 1]} : vector<6x6x1xf32> to vector<1x6x1xf32>
    %179 = vector.shape_cast %178 : vector<1x6x1xf32> to vector<6x1xf32>
    %180 = vector.extract_strided_slice %156 {offsets = [3, 0], sizes = [1, 81], strides = [1, 1]} : vector<6x81xf32> to vector<1x81xf32>
    %181 = vector.broadcast %179 : vector<6x1xf32> to vector<6x81xf32>
    %182 = vector.broadcast %180 : vector<1x81xf32> to vector<6x81xf32>
    %183 = arith.mulf %181, %182 : vector<6x81xf32>
    %184 = arith.addf %177, %183 : vector<6x81xf32>
    %185 = vector.extract_strided_slice %157 {offsets = [4, 0, 0], sizes = [1, 6, 1], strides = [1, 1, 1]} : vector<6x6x1xf32> to vector<1x6x1xf32>
    %186 = vector.shape_cast %185 : vector<1x6x1xf32> to vector<6x1xf32>
    %187 = vector.extract_strided_slice %156 {offsets = [4, 0], sizes = [1, 81], strides = [1, 1]} : vector<6x81xf32> to vector<1x81xf32>
    %188 = vector.broadcast %186 : vector<6x1xf32> to vector<6x81xf32>
    %189 = vector.broadcast %187 : vector<1x81xf32> to vector<6x81xf32>
    %190 = arith.mulf %188, %189 : vector<6x81xf32>
    %191 = arith.addf %184, %190 : vector<6x81xf32>
    %192 = vector.extract_strided_slice %157 {offsets = [5, 0, 0], sizes = [1, 6, 1], strides = [1, 1, 1]} : vector<6x6x1xf32> to vector<1x6x1xf32>
    %193 = vector.shape_cast %192 : vector<1x6x1xf32> to vector<6x1xf32>
    %194 = vector.extract_strided_slice %156 {offsets = [5, 0], sizes = [1, 81], strides = [1, 1]} : vector<6x81xf32> to vector<1x81xf32>
    %195 = vector.broadcast %193 : vector<6x1xf32> to vector<6x81xf32>
    %196 = vector.broadcast %194 : vector<1x81xf32> to vector<6x81xf32>
    %197 = arith.mulf %195, %196 : vector<6x81xf32>
    %198 = arith.addf %191, %197 : vector<6x81xf32>
    %c0_49 = arith.constant 0 : index
    %c0_50 = arith.constant 0 : index
    %199 = vector.load %arg12[%c0_49, %c0_50] : memref<6x81xf32, #tpu.memory_space<vmem>>, vector<6x81xf32>
    %c0_51 = arith.constant 0 : index
    %c0_52 = arith.constant 0 : index
    %200 = vector.load %arg13[%c0_51, %c0_52] : memref<6x81xf32, #tpu.memory_space<vmem>>, vector<6x81xf32>
    %cst_53 = arith.constant dense<0.000000e+00> : vector<6xf32>
    %201 = vector.multi_reduction <add>, %198, %cst_53 [1] : vector<6x81xf32> to vector<6xf32>
    %202 = vector.shape_cast %201 : vector<6xf32> to vector<6x1xf32>
    %cst_54 = arith.constant dense<0.000000e+00> : vector<1xf32>
    %203 = vector.multi_reduction <add>, %202, %cst_54 [0] : vector<6x1xf32> to vector<1xf32>
    %204 = vector.shape_cast %203 : vector<1xf32> to vector<1x1xf32>
    %cst_55 = arith.constant 4.860000e+02 : f32
    %205 = vector.broadcast %cst_55 : f32 to vector<1x1xf32>
    %206 = arith.divf %204, %205 : vector<1x1xf32>
    %207 = vector.broadcast %206 : vector<1x1xf32> to vector<6x81xf32>
    %208 = arith.subf %198, %207 : vector<6x81xf32>
    %209 = arith.mulf %208, %208 : vector<6x81xf32>
    %cst_56 = arith.constant dense<0.000000e+00> : vector<6xf32>
    %210 = vector.multi_reduction <add>, %209, %cst_56 [1] : vector<6x81xf32> to vector<6xf32>
    %211 = vector.shape_cast %210 : vector<6xf32> to vector<6x1xf32>
    %cst_57 = arith.constant dense<0.000000e+00> : vector<1xf32>
    %212 = vector.multi_reduction <add>, %211, %cst_57 [0] : vector<6x1xf32> to vector<1xf32>
    %213 = vector.shape_cast %212 : vector<1xf32> to vector<1x1xf32>
    %cst_58 = arith.constant 4.860000e+02 : f32
    %214 = vector.broadcast %cst_58 : f32 to vector<1x1xf32>
    %215 = arith.divf %213, %214 : vector<1x1xf32>
    %cst_59 = arith.constant 9.99999974E-6 : f32
    %216 = vector.broadcast %cst_59 : f32 to vector<1x1xf32>
    %217 = arith.addf %215, %216 : vector<1x1xf32>
    %218 = math.rsqrt %217 : vector<1x1xf32>
    %219 = vector.broadcast %218 : vector<1x1xf32> to vector<6x81xf32>
    %220 = arith.mulf %208, %219 : vector<6x81xf32>
    %221 = arith.mulf %220, %199 : vector<6x81xf32>
    %222 = arith.addf %221, %200 : vector<6x81xf32>
    %c0_60 = arith.constant 0 : index
    %c0_61 = arith.constant 0 : index
    %c0_62 = arith.constant 0 : index
    %223 = vector.load %arg15[%c0_60, %c0_61, %c0_62] : memref<6x6x1xf32, #tpu.memory_space<vmem>>, vector<6x6x1xf32>
    %224 = vector.extract_strided_slice %223 {offsets = [0, 0, 0], sizes = [1, 6, 1], strides = [1, 1, 1]} : vector<6x6x1xf32> to vector<1x6x1xf32>
    %225 = vector.shape_cast %224 : vector<1x6x1xf32> to vector<6x1xf32>
    %226 = vector.extract_strided_slice %222 {offsets = [0, 0], sizes = [1, 81], strides = [1, 1]} : vector<6x81xf32> to vector<1x81xf32>
    %227 = vector.broadcast %225 : vector<6x1xf32> to vector<6x81xf32>
    %228 = vector.broadcast %226 : vector<1x81xf32> to vector<6x81xf32>
    %229 = arith.mulf %227, %228 : vector<6x81xf32>
    %230 = arith.addf %132, %229 : vector<6x81xf32>
    %231 = vector.extract_strided_slice %223 {offsets = [1, 0, 0], sizes = [1, 6, 1], strides = [1, 1, 1]} : vector<6x6x1xf32> to vector<1x6x1xf32>
    %232 = vector.shape_cast %231 : vector<1x6x1xf32> to vector<6x1xf32>
    %233 = vector.extract_strided_slice %222 {offsets = [1, 0], sizes = [1, 81], strides = [1, 1]} : vector<6x81xf32> to vector<1x81xf32>
    %234 = vector.broadcast %232 : vector<6x1xf32> to vector<6x81xf32>
    %235 = vector.broadcast %233 : vector<1x81xf32> to vector<6x81xf32>
    %236 = arith.mulf %234, %235 : vector<6x81xf32>
    %237 = arith.addf %230, %236 : vector<6x81xf32>
    %238 = vector.extract_strided_slice %223 {offsets = [2, 0, 0], sizes = [1, 6, 1], strides = [1, 1, 1]} : vector<6x6x1xf32> to vector<1x6x1xf32>
    %239 = vector.shape_cast %238 : vector<1x6x1xf32> to vector<6x1xf32>
    %240 = vector.extract_strided_slice %222 {offsets = [2, 0], sizes = [1, 81], strides = [1, 1]} : vector<6x81xf32> to vector<1x81xf32>
    %241 = vector.broadcast %239 : vector<6x1xf32> to vector<6x81xf32>
    %242 = vector.broadcast %240 : vector<1x81xf32> to vector<6x81xf32>
    %243 = arith.mulf %241, %242 : vector<6x81xf32>
    %244 = arith.addf %237, %243 : vector<6x81xf32>
    %245 = vector.extract_strided_slice %223 {offsets = [3, 0, 0], sizes = [1, 6, 1], strides = [1, 1, 1]} : vector<6x6x1xf32> to vector<1x6x1xf32>
    %246 = vector.shape_cast %245 : vector<1x6x1xf32> to vector<6x1xf32>
    %247 = vector.extract_strided_slice %222 {offsets = [3, 0], sizes = [1, 81], strides = [1, 1]} : vector<6x81xf32> to vector<1x81xf32>
    %248 = vector.broadcast %246 : vector<6x1xf32> to vector<6x81xf32>
    %249 = vector.broadcast %247 : vector<1x81xf32> to vector<6x81xf32>
    %250 = arith.mulf %248, %249 : vector<6x81xf32>
    %251 = arith.addf %244, %250 : vector<6x81xf32>
    %252 = vector.extract_strided_slice %223 {offsets = [4, 0, 0], sizes = [1, 6, 1], strides = [1, 1, 1]} : vector<6x6x1xf32> to vector<1x6x1xf32>
    %253 = vector.shape_cast %252 : vector<1x6x1xf32> to vector<6x1xf32>
    %254 = vector.extract_strided_slice %222 {offsets = [4, 0], sizes = [1, 81], strides = [1, 1]} : vector<6x81xf32> to vector<1x81xf32>
    %255 = vector.broadcast %253 : vector<6x1xf32> to vector<6x81xf32>
    %256 = vector.broadcast %254 : vector<1x81xf32> to vector<6x81xf32>
    %257 = arith.mulf %255, %256 : vector<6x81xf32>
    %258 = arith.addf %251, %257 : vector<6x81xf32>
    %259 = vector.extract_strided_slice %223 {offsets = [5, 0, 0], sizes = [1, 6, 1], strides = [1, 1, 1]} : vector<6x6x1xf32> to vector<1x6x1xf32>
    %260 = vector.shape_cast %259 : vector<1x6x1xf32> to vector<6x1xf32>
    %261 = vector.extract_strided_slice %222 {offsets = [5, 0], sizes = [1, 81], strides = [1, 1]} : vector<6x81xf32> to vector<1x81xf32>
    %262 = vector.broadcast %260 : vector<6x1xf32> to vector<6x81xf32>
    %263 = vector.broadcast %261 : vector<1x81xf32> to vector<6x81xf32>
    %264 = arith.mulf %262, %263 : vector<6x81xf32>
    %265 = arith.addf %258, %264 : vector<6x81xf32>
    %c0_63 = arith.constant 0 : index
    %c0_64 = arith.constant 0 : index
    %c0_65 = arith.constant 0 : index
    %266 = vector.load %arg16[%c0_63, %c0_64, %c0_65] : memref<6x8x81xf32, #tpu.memory_space<vmem>>, vector<6x8x81xf32>
    %267 = vector.extract_strided_slice %266 {offsets = [0, 0, 0], sizes = [1, 8, 81], strides = [1, 1, 1]} : vector<6x8x81xf32> to vector<1x8x81xf32>
    %268 = vector.shape_cast %267 : vector<1x8x81xf32> to vector<8x81xf32>
    %269 = vector.extract_strided_slice %265 {offsets = [0, 0], sizes = [1, 81], strides = [1, 1]} : vector<6x81xf32> to vector<1x81xf32>
    %270 = vector.broadcast %269 : vector<1x81xf32> to vector<8x81xf32>
    %271 = arith.mulf %268, %270 : vector<8x81xf32>
    %272 = vector.extract_strided_slice %266 {offsets = [1, 0, 0], sizes = [1, 8, 81], strides = [1, 1, 1]} : vector<6x8x81xf32> to vector<1x8x81xf32>
    %273 = vector.shape_cast %272 : vector<1x8x81xf32> to vector<8x81xf32>
    %274 = vector.extract_strided_slice %265 {offsets = [1, 0], sizes = [1, 81], strides = [1, 1]} : vector<6x81xf32> to vector<1x81xf32>
    %275 = vector.broadcast %274 : vector<1x81xf32> to vector<8x81xf32>
    %276 = arith.mulf %273, %275 : vector<8x81xf32>
    %277 = arith.addf %271, %276 : vector<8x81xf32>
    %278 = vector.extract_strided_slice %266 {offsets = [2, 0, 0], sizes = [1, 8, 81], strides = [1, 1, 1]} : vector<6x8x81xf32> to vector<1x8x81xf32>
    %279 = vector.shape_cast %278 : vector<1x8x81xf32> to vector<8x81xf32>
    %280 = vector.extract_strided_slice %265 {offsets = [2, 0], sizes = [1, 81], strides = [1, 1]} : vector<6x81xf32> to vector<1x81xf32>
    %281 = vector.broadcast %280 : vector<1x81xf32> to vector<8x81xf32>
    %282 = arith.mulf %279, %281 : vector<8x81xf32>
    %283 = arith.addf %277, %282 : vector<8x81xf32>
    %284 = vector.extract_strided_slice %266 {offsets = [3, 0, 0], sizes = [1, 8, 81], strides = [1, 1, 1]} : vector<6x8x81xf32> to vector<1x8x81xf32>
    %285 = vector.shape_cast %284 : vector<1x8x81xf32> to vector<8x81xf32>
    %286 = vector.extract_strided_slice %265 {offsets = [3, 0], sizes = [1, 81], strides = [1, 1]} : vector<6x81xf32> to vector<1x81xf32>
    %287 = vector.broadcast %286 : vector<1x81xf32> to vector<8x81xf32>
    %288 = arith.mulf %285, %287 : vector<8x81xf32>
    %289 = arith.addf %283, %288 : vector<8x81xf32>
    %290 = vector.extract_strided_slice %266 {offsets = [4, 0, 0], sizes = [1, 8, 81], strides = [1, 1, 1]} : vector<6x8x81xf32> to vector<1x8x81xf32>
    %291 = vector.shape_cast %290 : vector<1x8x81xf32> to vector<8x81xf32>
    %292 = vector.extract_strided_slice %265 {offsets = [4, 0], sizes = [1, 81], strides = [1, 1]} : vector<6x81xf32> to vector<1x81xf32>
    %293 = vector.broadcast %292 : vector<1x81xf32> to vector<8x81xf32>
    %294 = arith.mulf %291, %293 : vector<8x81xf32>
    %295 = arith.addf %289, %294 : vector<8x81xf32>
    %296 = vector.extract_strided_slice %266 {offsets = [5, 0, 0], sizes = [1, 8, 81], strides = [1, 1, 1]} : vector<6x8x81xf32> to vector<1x8x81xf32>
    %297 = vector.shape_cast %296 : vector<1x8x81xf32> to vector<8x81xf32>
    %298 = vector.extract_strided_slice %265 {offsets = [5, 0], sizes = [1, 81], strides = [1, 1]} : vector<6x81xf32> to vector<1x81xf32>
    %299 = vector.broadcast %298 : vector<1x81xf32> to vector<8x81xf32>
    %300 = arith.mulf %297, %299 : vector<8x81xf32>
    %301 = arith.addf %295, %300 : vector<8x81xf32>
    %c0_66 = arith.constant 0 : index
    %c0_67 = arith.constant 0 : index
    %302 = vector.load %arg17[%c0_66, %c0_67] : memref<81x25xf32, #tpu.memory_space<vmem>>, vector<81x25xf32>
    %cst_68 = arith.constant dense<0.000000e+00> : vector<8x25xf32>
    %303 = tpu.matmul %301, %302, %cst_68 {dimension_numbers = #tpu.dot_dimension_numbers<[1], [0], [0], [1], [0, 0, 1, 1], [], []>} : vector<8x81xf32>, vector<81x25xf32>, vector<8x25xf32> -> vector<8x25xf32>
    %c0_69 = arith.constant 0 : index
    %c0_70 = arith.constant 0 : index
    %304 = vector.load %arg18[%c0_69, %c0_70] : memref<8x25xf32, #tpu.memory_space<vmem>>, vector<8x25xf32>
    %c0_71 = arith.constant 0 : index
    %c0_72 = arith.constant 0 : index
    %305 = vector.load %arg19[%c0_71, %c0_72] : memref<8x25xf32, #tpu.memory_space<vmem>>, vector<8x25xf32>
    %cst_73 = arith.constant dense<0.000000e+00> : vector<8xf32>
    %306 = vector.multi_reduction <add>, %303, %cst_73 [1] : vector<8x25xf32> to vector<8xf32>
    %307 = vector.shape_cast %306 : vector<8xf32> to vector<8x1xf32>
    %cst_74 = arith.constant dense<0.000000e+00> : vector<1xf32>
    %308 = vector.multi_reduction <add>, %307, %cst_74 [0] : vector<8x1xf32> to vector<1xf32>
    %309 = vector.shape_cast %308 : vector<1xf32> to vector<1x1xf32>
    %cst_75 = arith.constant 2.000000e+02 : f32
    %310 = vector.broadcast %cst_75 : f32 to vector<1x1xf32>
    %311 = arith.divf %309, %310 : vector<1x1xf32>
    %312 = vector.broadcast %311 : vector<1x1xf32> to vector<8x25xf32>
    %313 = arith.subf %303, %312 : vector<8x25xf32>
    %314 = arith.mulf %313, %313 : vector<8x25xf32>
    %cst_76 = arith.constant dense<0.000000e+00> : vector<8xf32>
    %315 = vector.multi_reduction <add>, %314, %cst_76 [1] : vector<8x25xf32> to vector<8xf32>
    %316 = vector.shape_cast %315 : vector<8xf32> to vector<8x1xf32>
    %cst_77 = arith.constant dense<0.000000e+00> : vector<1xf32>
    %317 = vector.multi_reduction <add>, %316, %cst_77 [0] : vector<8x1xf32> to vector<1xf32>
    %318 = vector.shape_cast %317 : vector<1xf32> to vector<1x1xf32>
    %cst_78 = arith.constant 2.000000e+02 : f32
    %319 = vector.broadcast %cst_78 : f32 to vector<1x1xf32>
    %320 = arith.divf %318, %319 : vector<1x1xf32>
    %cst_79 = arith.constant 9.99999974E-6 : f32
    %321 = vector.broadcast %cst_79 : f32 to vector<1x1xf32>
    %322 = arith.addf %320, %321 : vector<1x1xf32>
    %323 = math.rsqrt %322 : vector<1x1xf32>
    %324 = vector.broadcast %323 : vector<1x1xf32> to vector<8x25xf32>
    %325 = arith.mulf %313, %324 : vector<8x25xf32>
    %326 = arith.mulf %325, %304 : vector<8x25xf32>
    %327 = arith.addf %326, %305 : vector<8x25xf32>
    %c0_80 = arith.constant 0 : index
    %c0_81 = arith.constant 0 : index
    %c0_82 = arith.constant 0 : index
    %328 = vector.load %arg22[%c0_80, %c0_81, %c0_82] : memref<8x8x1xf32, #tpu.memory_space<vmem>>, vector<8x8x1xf32>
    %329 = vector.extract_strided_slice %328 {offsets = [0, 0, 0], sizes = [1, 8, 1], strides = [1, 1, 1]} : vector<8x8x1xf32> to vector<1x8x1xf32>
    %330 = vector.shape_cast %329 : vector<1x8x1xf32> to vector<8x1xf32>
    %331 = vector.extract_strided_slice %327 {offsets = [0, 0], sizes = [1, 25], strides = [1, 1]} : vector<8x25xf32> to vector<1x25xf32>
    %332 = vector.broadcast %330 : vector<8x1xf32> to vector<8x25xf32>
    %333 = vector.broadcast %331 : vector<1x25xf32> to vector<8x25xf32>
    %334 = arith.mulf %332, %333 : vector<8x25xf32>
    %335 = vector.extract_strided_slice %328 {offsets = [1, 0, 0], sizes = [1, 8, 1], strides = [1, 1, 1]} : vector<8x8x1xf32> to vector<1x8x1xf32>
    %336 = vector.shape_cast %335 : vector<1x8x1xf32> to vector<8x1xf32>
    %337 = vector.extract_strided_slice %327 {offsets = [1, 0], sizes = [1, 25], strides = [1, 1]} : vector<8x25xf32> to vector<1x25xf32>
    %338 = vector.broadcast %336 : vector<8x1xf32> to vector<8x25xf32>
    %339 = vector.broadcast %337 : vector<1x25xf32> to vector<8x25xf32>
    %340 = arith.mulf %338, %339 : vector<8x25xf32>
    %341 = arith.addf %334, %340 : vector<8x25xf32>
    %342 = vector.extract_strided_slice %328 {offsets = [2, 0, 0], sizes = [1, 8, 1], strides = [1, 1, 1]} : vector<8x8x1xf32> to vector<1x8x1xf32>
    %343 = vector.shape_cast %342 : vector<1x8x1xf32> to vector<8x1xf32>
    %344 = vector.extract_strided_slice %327 {offsets = [2, 0], sizes = [1, 25], strides = [1, 1]} : vector<8x25xf32> to vector<1x25xf32>
    %345 = vector.broadcast %343 : vector<8x1xf32> to vector<8x25xf32>
    %346 = vector.broadcast %344 : vector<1x25xf32> to vector<8x25xf32>
    %347 = arith.mulf %345, %346 : vector<8x25xf32>
    %348 = arith.addf %341, %347 : vector<8x25xf32>
    %349 = vector.extract_strided_slice %328 {offsets = [3, 0, 0], sizes = [1, 8, 1], strides = [1, 1, 1]} : vector<8x8x1xf32> to vector<1x8x1xf32>
    %350 = vector.shape_cast %349 : vector<1x8x1xf32> to vector<8x1xf32>
    %351 = vector.extract_strided_slice %327 {offsets = [3, 0], sizes = [1, 25], strides = [1, 1]} : vector<8x25xf32> to vector<1x25xf32>
    %352 = vector.broadcast %350 : vector<8x1xf32> to vector<8x25xf32>
    %353 = vector.broadcast %351 : vector<1x25xf32> to vector<8x25xf32>
    %354 = arith.mulf %352, %353 : vector<8x25xf32>
    %355 = arith.addf %348, %354 : vector<8x25xf32>
    %356 = vector.extract_strided_slice %328 {offsets = [4, 0, 0], sizes = [1, 8, 1], strides = [1, 1, 1]} : vector<8x8x1xf32> to vector<1x8x1xf32>
    %357 = vector.shape_cast %356 : vector<1x8x1xf32> to vector<8x1xf32>
    %358 = vector.extract_strided_slice %327 {offsets = [4, 0], sizes = [1, 25], strides = [1, 1]} : vector<8x25xf32> to vector<1x25xf32>
    %359 = vector.broadcast %357 : vector<8x1xf32> to vector<8x25xf32>
    %360 = vector.broadcast %358 : vector<1x25xf32> to vector<8x25xf32>
    %361 = arith.mulf %359, %360 : vector<8x25xf32>
    %362 = arith.addf %355, %361 : vector<8x25xf32>
    %363 = vector.extract_strided_slice %328 {offsets = [5, 0, 0], sizes = [1, 8, 1], strides = [1, 1, 1]} : vector<8x8x1xf32> to vector<1x8x1xf32>
    %364 = vector.shape_cast %363 : vector<1x8x1xf32> to vector<8x1xf32>
    %365 = vector.extract_strided_slice %327 {offsets = [5, 0], sizes = [1, 25], strides = [1, 1]} : vector<8x25xf32> to vector<1x25xf32>
    %366 = vector.broadcast %364 : vector<8x1xf32> to vector<8x25xf32>
    %367 = vector.broadcast %365 : vector<1x25xf32> to vector<8x25xf32>
    %368 = arith.mulf %366, %367 : vector<8x25xf32>
    %369 = arith.addf %362, %368 : vector<8x25xf32>
    %370 = vector.extract_strided_slice %328 {offsets = [6, 0, 0], sizes = [1, 8, 1], strides = [1, 1, 1]} : vector<8x8x1xf32> to vector<1x8x1xf32>
    %371 = vector.shape_cast %370 : vector<1x8x1xf32> to vector<8x1xf32>
    %372 = vector.extract_strided_slice %327 {offsets = [6, 0], sizes = [1, 25], strides = [1, 1]} : vector<8x25xf32> to vector<1x25xf32>
    %373 = vector.broadcast %371 : vector<8x1xf32> to vector<8x25xf32>
    %374 = vector.broadcast %372 : vector<1x25xf32> to vector<8x25xf32>
    %375 = arith.mulf %373, %374 : vector<8x25xf32>
    %376 = arith.addf %369, %375 : vector<8x25xf32>
    %377 = vector.extract_strided_slice %328 {offsets = [7, 0, 0], sizes = [1, 8, 1], strides = [1, 1, 1]} : vector<8x8x1xf32> to vector<1x8x1xf32>
    %378 = vector.shape_cast %377 : vector<1x8x1xf32> to vector<8x1xf32>
    %379 = vector.extract_strided_slice %327 {offsets = [7, 0], sizes = [1, 25], strides = [1, 1]} : vector<8x25xf32> to vector<1x25xf32>
    %380 = vector.broadcast %378 : vector<8x1xf32> to vector<8x25xf32>
    %381 = vector.broadcast %379 : vector<1x25xf32> to vector<8x25xf32>
    %382 = arith.mulf %380, %381 : vector<8x25xf32>
    %383 = arith.addf %376, %382 : vector<8x25xf32>
    %c0_83 = arith.constant 0 : index
    %c0_84 = arith.constant 0 : index
    %384 = vector.load %arg20[%c0_83, %c0_84] : memref<8x25xf32, #tpu.memory_space<vmem>>, vector<8x25xf32>
    %c0_85 = arith.constant 0 : index
    %c0_86 = arith.constant 0 : index
    %385 = vector.load %arg21[%c0_85, %c0_86] : memref<8x25xf32, #tpu.memory_space<vmem>>, vector<8x25xf32>
    %cst_87 = arith.constant dense<0.000000e+00> : vector<8xf32>
    %386 = vector.multi_reduction <add>, %383, %cst_87 [1] : vector<8x25xf32> to vector<8xf32>
    %387 = vector.shape_cast %386 : vector<8xf32> to vector<8x1xf32>
    %cst_88 = arith.constant dense<0.000000e+00> : vector<1xf32>
    %388 = vector.multi_reduction <add>, %387, %cst_88 [0] : vector<8x1xf32> to vector<1xf32>
    %389 = vector.shape_cast %388 : vector<1xf32> to vector<1x1xf32>
    %cst_89 = arith.constant 2.000000e+02 : f32
    %390 = vector.broadcast %cst_89 : f32 to vector<1x1xf32>
    %391 = arith.divf %389, %390 : vector<1x1xf32>
    %392 = vector.broadcast %391 : vector<1x1xf32> to vector<8x25xf32>
    %393 = arith.subf %383, %392 : vector<8x25xf32>
    %394 = arith.mulf %393, %393 : vector<8x25xf32>
    %cst_90 = arith.constant dense<0.000000e+00> : vector<8xf32>
    %395 = vector.multi_reduction <add>, %394, %cst_90 [1] : vector<8x25xf32> to vector<8xf32>
    %396 = vector.shape_cast %395 : vector<8xf32> to vector<8x1xf32>
    %cst_91 = arith.constant dense<0.000000e+00> : vector<1xf32>
    %397 = vector.multi_reduction <add>, %396, %cst_91 [0] : vector<8x1xf32> to vector<1xf32>
    %398 = vector.shape_cast %397 : vector<1xf32> to vector<1x1xf32>
    %cst_92 = arith.constant 2.000000e+02 : f32
    %399 = vector.broadcast %cst_92 : f32 to vector<1x1xf32>
    %400 = arith.divf %398, %399 : vector<1x1xf32>
    %cst_93 = arith.constant 9.99999974E-6 : f32
    %401 = vector.broadcast %cst_93 : f32 to vector<1x1xf32>
    %402 = arith.addf %400, %401 : vector<1x1xf32>
    %403 = math.rsqrt %402 : vector<1x1xf32>
    %404 = vector.broadcast %403 : vector<1x1xf32> to vector<8x25xf32>
    %405 = arith.mulf %393, %404 : vector<8x25xf32>
    %406 = arith.mulf %405, %384 : vector<8x25xf32>
    %407 = arith.addf %406, %385 : vector<8x25xf32>
    %c0_94 = arith.constant 0 : index
    %c0_95 = arith.constant 0 : index
    %c0_96 = arith.constant 0 : index
    %408 = vector.load %arg23[%c0_94, %c0_95, %c0_96] : memref<8x8x1xf32, #tpu.memory_space<vmem>>, vector<8x8x1xf32>
    %409 = vector.extract_strided_slice %408 {offsets = [0, 0, 0], sizes = [1, 8, 1], strides = [1, 1, 1]} : vector<8x8x1xf32> to vector<1x8x1xf32>
    %410 = vector.shape_cast %409 : vector<1x8x1xf32> to vector<8x1xf32>
    %411 = vector.extract_strided_slice %407 {offsets = [0, 0], sizes = [1, 25], strides = [1, 1]} : vector<8x25xf32> to vector<1x25xf32>
    %412 = vector.broadcast %410 : vector<8x1xf32> to vector<8x25xf32>
    %413 = vector.broadcast %411 : vector<1x25xf32> to vector<8x25xf32>
    %414 = arith.mulf %412, %413 : vector<8x25xf32>
    %415 = arith.addf %303, %414 : vector<8x25xf32>
    %416 = vector.extract_strided_slice %408 {offsets = [1, 0, 0], sizes = [1, 8, 1], strides = [1, 1, 1]} : vector<8x8x1xf32> to vector<1x8x1xf32>
    %417 = vector.shape_cast %416 : vector<1x8x1xf32> to vector<8x1xf32>
    %418 = vector.extract_strided_slice %407 {offsets = [1, 0], sizes = [1, 25], strides = [1, 1]} : vector<8x25xf32> to vector<1x25xf32>
    %419 = vector.broadcast %417 : vector<8x1xf32> to vector<8x25xf32>
    %420 = vector.broadcast %418 : vector<1x25xf32> to vector<8x25xf32>
    %421 = arith.mulf %419, %420 : vector<8x25xf32>
    %422 = arith.addf %415, %421 : vector<8x25xf32>
    %423 = vector.extract_strided_slice %408 {offsets = [2, 0, 0], sizes = [1, 8, 1], strides = [1, 1, 1]} : vector<8x8x1xf32> to vector<1x8x1xf32>
    %424 = vector.shape_cast %423 : vector<1x8x1xf32> to vector<8x1xf32>
    %425 = vector.extract_strided_slice %407 {offsets = [2, 0], sizes = [1, 25], strides = [1, 1]} : vector<8x25xf32> to vector<1x25xf32>
    %426 = vector.broadcast %424 : vector<8x1xf32> to vector<8x25xf32>
    %427 = vector.broadcast %425 : vector<1x25xf32> to vector<8x25xf32>
    %428 = arith.mulf %426, %427 : vector<8x25xf32>
    %429 = arith.addf %422, %428 : vector<8x25xf32>
    %430 = vector.extract_strided_slice %408 {offsets = [3, 0, 0], sizes = [1, 8, 1], strides = [1, 1, 1]} : vector<8x8x1xf32> to vector<1x8x1xf32>
    %431 = vector.shape_cast %430 : vector<1x8x1xf32> to vector<8x1xf32>
    %432 = vector.extract_strided_slice %407 {offsets = [3, 0], sizes = [1, 25], strides = [1, 1]} : vector<8x25xf32> to vector<1x25xf32>
    %433 = vector.broadcast %431 : vector<8x1xf32> to vector<8x25xf32>
    %434 = vector.broadcast %432 : vector<1x25xf32> to vector<8x25xf32>
    %435 = arith.mulf %433, %434 : vector<8x25xf32>
    %436 = arith.addf %429, %435 : vector<8x25xf32>
    %437 = vector.extract_strided_slice %408 {offsets = [4, 0, 0], sizes = [1, 8, 1], strides = [1, 1, 1]} : vector<8x8x1xf32> to vector<1x8x1xf32>
    %438 = vector.shape_cast %437 : vector<1x8x1xf32> to vector<8x1xf32>
    %439 = vector.extract_strided_slice %407 {offsets = [4, 0], sizes = [1, 25], strides = [1, 1]} : vector<8x25xf32> to vector<1x25xf32>
    %440 = vector.broadcast %438 : vector<8x1xf32> to vector<8x25xf32>
    %441 = vector.broadcast %439 : vector<1x25xf32> to vector<8x25xf32>
    %442 = arith.mulf %440, %441 : vector<8x25xf32>
    %443 = arith.addf %436, %442 : vector<8x25xf32>
    %444 = vector.extract_strided_slice %408 {offsets = [5, 0, 0], sizes = [1, 8, 1], strides = [1, 1, 1]} : vector<8x8x1xf32> to vector<1x8x1xf32>
    %445 = vector.shape_cast %444 : vector<1x8x1xf32> to vector<8x1xf32>
    %446 = vector.extract_strided_slice %407 {offsets = [5, 0], sizes = [1, 25], strides = [1, 1]} : vector<8x25xf32> to vector<1x25xf32>
    %447 = vector.broadcast %445 : vector<8x1xf32> to vector<8x25xf32>
    %448 = vector.broadcast %446 : vector<1x25xf32> to vector<8x25xf32>
    %449 = arith.mulf %447, %448 : vector<8x25xf32>
    %450 = arith.addf %443, %449 : vector<8x25xf32>
    %451 = vector.extract_strided_slice %408 {offsets = [6, 0, 0], sizes = [1, 8, 1], strides = [1, 1, 1]} : vector<8x8x1xf32> to vector<1x8x1xf32>
    %452 = vector.shape_cast %451 : vector<1x8x1xf32> to vector<8x1xf32>
    %453 = vector.extract_strided_slice %407 {offsets = [6, 0], sizes = [1, 25], strides = [1, 1]} : vector<8x25xf32> to vector<1x25xf32>
    %454 = vector.broadcast %452 : vector<8x1xf32> to vector<8x25xf32>
    %455 = vector.broadcast %453 : vector<1x25xf32> to vector<8x25xf32>
    %456 = arith.mulf %454, %455 : vector<8x25xf32>
    %457 = arith.addf %450, %456 : vector<8x25xf32>
    %458 = vector.extract_strided_slice %408 {offsets = [7, 0, 0], sizes = [1, 8, 1], strides = [1, 1, 1]} : vector<8x8x1xf32> to vector<1x8x1xf32>
    %459 = vector.shape_cast %458 : vector<1x8x1xf32> to vector<8x1xf32>
    %460 = vector.extract_strided_slice %407 {offsets = [7, 0], sizes = [1, 25], strides = [1, 1]} : vector<8x25xf32> to vector<1x25xf32>
    %461 = vector.broadcast %459 : vector<8x1xf32> to vector<8x25xf32>
    %462 = vector.broadcast %460 : vector<1x25xf32> to vector<8x25xf32>
    %463 = arith.mulf %461, %462 : vector<8x25xf32>
    %464 = arith.addf %457, %463 : vector<8x25xf32>
    %c0_97 = arith.constant 0 : index
    %c0_98 = arith.constant 0 : index
    %c0_99 = arith.constant 0 : index
    %465 = vector.load %arg24[%c0_97, %c0_98, %c0_99] : memref<8x8x25xf32, #tpu.memory_space<vmem>>, vector<8x8x25xf32>
    %466 = vector.extract_strided_slice %465 {offsets = [0, 0, 0], sizes = [1, 8, 25], strides = [1, 1, 1]} : vector<8x8x25xf32> to vector<1x8x25xf32>
    %467 = vector.shape_cast %466 : vector<1x8x25xf32> to vector<8x25xf32>
    %468 = vector.extract_strided_slice %464 {offsets = [0, 0], sizes = [1, 25], strides = [1, 1]} : vector<8x25xf32> to vector<1x25xf32>
    %469 = vector.broadcast %468 : vector<1x25xf32> to vector<8x25xf32>
    %470 = arith.mulf %467, %469 : vector<8x25xf32>
    %471 = vector.extract_strided_slice %465 {offsets = [1, 0, 0], sizes = [1, 8, 25], strides = [1, 1, 1]} : vector<8x8x25xf32> to vector<1x8x25xf32>
    %472 = vector.shape_cast %471 : vector<1x8x25xf32> to vector<8x25xf32>
    %473 = vector.extract_strided_slice %464 {offsets = [1, 0], sizes = [1, 25], strides = [1, 1]} : vector<8x25xf32> to vector<1x25xf32>
    %474 = vector.broadcast %473 : vector<1x25xf32> to vector<8x25xf32>
    %475 = arith.mulf %472, %474 : vector<8x25xf32>
    %476 = arith.addf %470, %475 : vector<8x25xf32>
    %477 = vector.extract_strided_slice %465 {offsets = [2, 0, 0], sizes = [1, 8, 25], strides = [1, 1, 1]} : vector<8x8x25xf32> to vector<1x8x25xf32>
    %478 = vector.shape_cast %477 : vector<1x8x25xf32> to vector<8x25xf32>
    %479 = vector.extract_strided_slice %464 {offsets = [2, 0], sizes = [1, 25], strides = [1, 1]} : vector<8x25xf32> to vector<1x25xf32>
    %480 = vector.broadcast %479 : vector<1x25xf32> to vector<8x25xf32>
    %481 = arith.mulf %478, %480 : vector<8x25xf32>
    %482 = arith.addf %476, %481 : vector<8x25xf32>
    %483 = vector.extract_strided_slice %465 {offsets = [3, 0, 0], sizes = [1, 8, 25], strides = [1, 1, 1]} : vector<8x8x25xf32> to vector<1x8x25xf32>
    %484 = vector.shape_cast %483 : vector<1x8x25xf32> to vector<8x25xf32>
    %485 = vector.extract_strided_slice %464 {offsets = [3, 0], sizes = [1, 25], strides = [1, 1]} : vector<8x25xf32> to vector<1x25xf32>
    %486 = vector.broadcast %485 : vector<1x25xf32> to vector<8x25xf32>
    %487 = arith.mulf %484, %486 : vector<8x25xf32>
    %488 = arith.addf %482, %487 : vector<8x25xf32>
    %489 = vector.extract_strided_slice %465 {offsets = [4, 0, 0], sizes = [1, 8, 25], strides = [1, 1, 1]} : vector<8x8x25xf32> to vector<1x8x25xf32>
    %490 = vector.shape_cast %489 : vector<1x8x25xf32> to vector<8x25xf32>
    %491 = vector.extract_strided_slice %464 {offsets = [4, 0], sizes = [1, 25], strides = [1, 1]} : vector<8x25xf32> to vector<1x25xf32>
    %492 = vector.broadcast %491 : vector<1x25xf32> to vector<8x25xf32>
    %493 = arith.mulf %490, %492 : vector<8x25xf32>
    %494 = arith.addf %488, %493 : vector<8x25xf32>
    %495 = vector.extract_strided_slice %465 {offsets = [5, 0, 0], sizes = [1, 8, 25], strides = [1, 1, 1]} : vector<8x8x25xf32> to vector<1x8x25xf32>
    %496 = vector.shape_cast %495 : vector<1x8x25xf32> to vector<8x25xf32>
    %497 = vector.extract_strided_slice %464 {offsets = [5, 0], sizes = [1, 25], strides = [1, 1]} : vector<8x25xf32> to vector<1x25xf32>
    %498 = vector.broadcast %497 : vector<1x25xf32> to vector<8x25xf32>
    %499 = arith.mulf %496, %498 : vector<8x25xf32>
    %500 = arith.addf %494, %499 : vector<8x25xf32>
    %501 = vector.extract_strided_slice %465 {offsets = [6, 0, 0], sizes = [1, 8, 25], strides = [1, 1, 1]} : vector<8x8x25xf32> to vector<1x8x25xf32>
    %502 = vector.shape_cast %501 : vector<1x8x25xf32> to vector<8x25xf32>
    %503 = vector.extract_strided_slice %464 {offsets = [6, 0], sizes = [1, 25], strides = [1, 1]} : vector<8x25xf32> to vector<1x25xf32>
    %504 = vector.broadcast %503 : vector<1x25xf32> to vector<8x25xf32>
    %505 = arith.mulf %502, %504 : vector<8x25xf32>
    %506 = arith.addf %500, %505 : vector<8x25xf32>
    %507 = vector.extract_strided_slice %465 {offsets = [7, 0, 0], sizes = [1, 8, 25], strides = [1, 1, 1]} : vector<8x8x25xf32> to vector<1x8x25xf32>
    %508 = vector.shape_cast %507 : vector<1x8x25xf32> to vector<8x25xf32>
    %509 = vector.extract_strided_slice %464 {offsets = [7, 0], sizes = [1, 25], strides = [1, 1]} : vector<8x25xf32> to vector<1x25xf32>
    %510 = vector.broadcast %509 : vector<1x25xf32> to vector<8x25xf32>
    %511 = arith.mulf %508, %510 : vector<8x25xf32>
    %512 = arith.addf %506, %511 : vector<8x25xf32>
    %c0_100 = arith.constant 0 : index
    %c0_101 = arith.constant 0 : index
    %513 = vector.load %arg25[%c0_100, %c0_101] : memref<25x9xf32, #tpu.memory_space<vmem>>, vector<25x9xf32>
    %cst_102 = arith.constant dense<0.000000e+00> : vector<8x9xf32>
    %514 = tpu.matmul %512, %513, %cst_102 {dimension_numbers = #tpu.dot_dimension_numbers<[1], [0], [0], [1], [0, 0, 1, 1], [], []>} : vector<8x25xf32>, vector<25x9xf32>, vector<8x9xf32> -> vector<8x9xf32>
    %c0_103 = arith.constant 0 : index
    %c0_104 = arith.constant 0 : index
    %515 = vector.load %arg26[%c0_103, %c0_104] : memref<8x9xf32, #tpu.memory_space<vmem>>, vector<8x9xf32>
    %c0_105 = arith.constant 0 : index
    %c0_106 = arith.constant 0 : index
    %516 = vector.load %arg27[%c0_105, %c0_106] : memref<8x9xf32, #tpu.memory_space<vmem>>, vector<8x9xf32>
    %cst_107 = arith.constant dense<0.000000e+00> : vector<8xf32>
    %517 = vector.multi_reduction <add>, %514, %cst_107 [1] : vector<8x9xf32> to vector<8xf32>
    %518 = vector.shape_cast %517 : vector<8xf32> to vector<8x1xf32>
    %cst_108 = arith.constant dense<0.000000e+00> : vector<1xf32>
    %519 = vector.multi_reduction <add>, %518, %cst_108 [0] : vector<8x1xf32> to vector<1xf32>
    %520 = vector.shape_cast %519 : vector<1xf32> to vector<1x1xf32>
    %cst_109 = arith.constant 7.200000e+01 : f32
    %521 = vector.broadcast %cst_109 : f32 to vector<1x1xf32>
    %522 = arith.divf %520, %521 : vector<1x1xf32>
    %523 = vector.broadcast %522 : vector<1x1xf32> to vector<8x9xf32>
    %524 = arith.subf %514, %523 : vector<8x9xf32>
    %525 = arith.mulf %524, %524 : vector<8x9xf32>
    %cst_110 = arith.constant dense<0.000000e+00> : vector<8xf32>
    %526 = vector.multi_reduction <add>, %525, %cst_110 [1] : vector<8x9xf32> to vector<8xf32>
    %527 = vector.shape_cast %526 : vector<8xf32> to vector<8x1xf32>
    %cst_111 = arith.constant dense<0.000000e+00> : vector<1xf32>
    %528 = vector.multi_reduction <add>, %527, %cst_111 [0] : vector<8x1xf32> to vector<1xf32>
    %529 = vector.shape_cast %528 : vector<1xf32> to vector<1x1xf32>
    %cst_112 = arith.constant 7.200000e+01 : f32
    %530 = vector.broadcast %cst_112 : f32 to vector<1x1xf32>
    %531 = arith.divf %529, %530 : vector<1x1xf32>
    %cst_113 = arith.constant 9.99999974E-6 : f32
    %532 = vector.broadcast %cst_113 : f32 to vector<1x1xf32>
    %533 = arith.addf %531, %532 : vector<1x1xf32>
    %534 = math.rsqrt %533 : vector<1x1xf32>
    %535 = vector.broadcast %534 : vector<1x1xf32> to vector<8x9xf32>
    %536 = arith.mulf %524, %535 : vector<8x9xf32>
    %537 = arith.mulf %536, %515 : vector<8x9xf32>
    %538 = arith.addf %537, %516 : vector<8x9xf32>
    %c0_114 = arith.constant 0 : index
    %c0_115 = arith.constant 0 : index
    %c0_116 = arith.constant 0 : index
    %539 = vector.load %arg30[%c0_114, %c0_115, %c0_116] : memref<8x8x1xf32, #tpu.memory_space<vmem>>, vector<8x8x1xf32>
    %540 = vector.extract_strided_slice %539 {offsets = [0, 0, 0], sizes = [1, 8, 1], strides = [1, 1, 1]} : vector<8x8x1xf32> to vector<1x8x1xf32>
    %541 = vector.shape_cast %540 : vector<1x8x1xf32> to vector<8x1xf32>
    %542 = vector.extract_strided_slice %538 {offsets = [0, 0], sizes = [1, 9], strides = [1, 1]} : vector<8x9xf32> to vector<1x9xf32>
    %543 = vector.broadcast %541 : vector<8x1xf32> to vector<8x9xf32>
    %544 = vector.broadcast %542 : vector<1x9xf32> to vector<8x9xf32>
    %545 = arith.mulf %543, %544 : vector<8x9xf32>
    %546 = vector.extract_strided_slice %539 {offsets = [1, 0, 0], sizes = [1, 8, 1], strides = [1, 1, 1]} : vector<8x8x1xf32> to vector<1x8x1xf32>
    %547 = vector.shape_cast %546 : vector<1x8x1xf32> to vector<8x1xf32>
    %548 = vector.extract_strided_slice %538 {offsets = [1, 0], sizes = [1, 9], strides = [1, 1]} : vector<8x9xf32> to vector<1x9xf32>
    %549 = vector.broadcast %547 : vector<8x1xf32> to vector<8x9xf32>
    %550 = vector.broadcast %548 : vector<1x9xf32> to vector<8x9xf32>
    %551 = arith.mulf %549, %550 : vector<8x9xf32>
    %552 = arith.addf %545, %551 : vector<8x9xf32>
    %553 = vector.extract_strided_slice %539 {offsets = [2, 0, 0], sizes = [1, 8, 1], strides = [1, 1, 1]} : vector<8x8x1xf32> to vector<1x8x1xf32>
    %554 = vector.shape_cast %553 : vector<1x8x1xf32> to vector<8x1xf32>
    %555 = vector.extract_strided_slice %538 {offsets = [2, 0], sizes = [1, 9], strides = [1, 1]} : vector<8x9xf32> to vector<1x9xf32>
    %556 = vector.broadcast %554 : vector<8x1xf32> to vector<8x9xf32>
    %557 = vector.broadcast %555 : vector<1x9xf32> to vector<8x9xf32>
    %558 = arith.mulf %556, %557 : vector<8x9xf32>
    %559 = arith.addf %552, %558 : vector<8x9xf32>
    %560 = vector.extract_strided_slice %539 {offsets = [3, 0, 0], sizes = [1, 8, 1], strides = [1, 1, 1]} : vector<8x8x1xf32> to vector<1x8x1xf32>
    %561 = vector.shape_cast %560 : vector<1x8x1xf32> to vector<8x1xf32>
    %562 = vector.extract_strided_slice %538 {offsets = [3, 0], sizes = [1, 9], strides = [1, 1]} : vector<8x9xf32> to vector<1x9xf32>
    %563 = vector.broadcast %561 : vector<8x1xf32> to vector<8x9xf32>
    %564 = vector.broadcast %562 : vector<1x9xf32> to vector<8x9xf32>
    %565 = arith.mulf %563, %564 : vector<8x9xf32>
    %566 = arith.addf %559, %565 : vector<8x9xf32>
    %567 = vector.extract_strided_slice %539 {offsets = [4, 0, 0], sizes = [1, 8, 1], strides = [1, 1, 1]} : vector<8x8x1xf32> to vector<1x8x1xf32>
    %568 = vector.shape_cast %567 : vector<1x8x1xf32> to vector<8x1xf32>
    %569 = vector.extract_strided_slice %538 {offsets = [4, 0], sizes = [1, 9], strides = [1, 1]} : vector<8x9xf32> to vector<1x9xf32>
    %570 = vector.broadcast %568 : vector<8x1xf32> to vector<8x9xf32>
    %571 = vector.broadcast %569 : vector<1x9xf32> to vector<8x9xf32>
    %572 = arith.mulf %570, %571 : vector<8x9xf32>
    %573 = arith.addf %566, %572 : vector<8x9xf32>
    %574 = vector.extract_strided_slice %539 {offsets = [5, 0, 0], sizes = [1, 8, 1], strides = [1, 1, 1]} : vector<8x8x1xf32> to vector<1x8x1xf32>
    %575 = vector.shape_cast %574 : vector<1x8x1xf32> to vector<8x1xf32>
    %576 = vector.extract_strided_slice %538 {offsets = [5, 0], sizes = [1, 9], strides = [1, 1]} : vector<8x9xf32> to vector<1x9xf32>
    %577 = vector.broadcast %575 : vector<8x1xf32> to vector<8x9xf32>
    %578 = vector.broadcast %576 : vector<1x9xf32> to vector<8x9xf32>
    %579 = arith.mulf %577, %578 : vector<8x9xf32>
    %580 = arith.addf %573, %579 : vector<8x9xf32>
    %581 = vector.extract_strided_slice %539 {offsets = [6, 0, 0], sizes = [1, 8, 1], strides = [1, 1, 1]} : vector<8x8x1xf32> to vector<1x8x1xf32>
    %582 = vector.shape_cast %581 : vector<1x8x1xf32> to vector<8x1xf32>
    %583 = vector.extract_strided_slice %538 {offsets = [6, 0], sizes = [1, 9], strides = [1, 1]} : vector<8x9xf32> to vector<1x9xf32>
    %584 = vector.broadcast %582 : vector<8x1xf32> to vector<8x9xf32>
    %585 = vector.broadcast %583 : vector<1x9xf32> to vector<8x9xf32>
    %586 = arith.mulf %584, %585 : vector<8x9xf32>
    %587 = arith.addf %580, %586 : vector<8x9xf32>
    %588 = vector.extract_strided_slice %539 {offsets = [7, 0, 0], sizes = [1, 8, 1], strides = [1, 1, 1]} : vector<8x8x1xf32> to vector<1x8x1xf32>
    %589 = vector.shape_cast %588 : vector<1x8x1xf32> to vector<8x1xf32>
    %590 = vector.extract_strided_slice %538 {offsets = [7, 0], sizes = [1, 9], strides = [1, 1]} : vector<8x9xf32> to vector<1x9xf32>
    %591 = vector.broadcast %589 : vector<8x1xf32> to vector<8x9xf32>
    %592 = vector.broadcast %590 : vector<1x9xf32> to vector<8x9xf32>
    %593 = arith.mulf %591, %592 : vector<8x9xf32>
    %594 = arith.addf %587, %593 : vector<8x9xf32>
    %c0_117 = arith.constant 0 : index
    %c0_118 = arith.constant 0 : index
    %595 = vector.load %arg28[%c0_117, %c0_118] : memref<8x9xf32, #tpu.memory_space<vmem>>, vector<8x9xf32>
    %c0_119 = arith.constant 0 : index
    %c0_120 = arith.constant 0 : index
    %596 = vector.load %arg29[%c0_119, %c0_120] : memref<8x9xf32, #tpu.memory_space<vmem>>, vector<8x9xf32>
    %cst_121 = arith.constant dense<0.000000e+00> : vector<8xf32>
    %597 = vector.multi_reduction <add>, %594, %cst_121 [1] : vector<8x9xf32> to vector<8xf32>
    %598 = vector.shape_cast %597 : vector<8xf32> to vector<8x1xf32>
    %cst_122 = arith.constant dense<0.000000e+00> : vector<1xf32>
    %599 = vector.multi_reduction <add>, %598, %cst_122 [0] : vector<8x1xf32> to vector<1xf32>
    %600 = vector.shape_cast %599 : vector<1xf32> to vector<1x1xf32>
    %cst_123 = arith.constant 7.200000e+01 : f32
    %601 = vector.broadcast %cst_123 : f32 to vector<1x1xf32>
    %602 = arith.divf %600, %601 : vector<1x1xf32>
    %603 = vector.broadcast %602 : vector<1x1xf32> to vector<8x9xf32>
    %604 = arith.subf %594, %603 : vector<8x9xf32>
    %605 = arith.mulf %604, %604 : vector<8x9xf32>
    %cst_124 = arith.constant dense<0.000000e+00> : vector<8xf32>
    %606 = vector.multi_reduction <add>, %605, %cst_124 [1] : vector<8x9xf32> to vector<8xf32>
    %607 = vector.shape_cast %606 : vector<8xf32> to vector<8x1xf32>
    %cst_125 = arith.constant dense<0.000000e+00> : vector<1xf32>
    %608 = vector.multi_reduction <add>, %607, %cst_125 [0] : vector<8x1xf32> to vector<1xf32>
    %609 = vector.shape_cast %608 : vector<1xf32> to vector<1x1xf32>
    %cst_126 = arith.constant 7.200000e+01 : f32
    %610 = vector.broadcast %cst_126 : f32 to vector<1x1xf32>
    %611 = arith.divf %609, %610 : vector<1x1xf32>
    %cst_127 = arith.constant 9.99999974E-6 : f32
    %612 = vector.broadcast %cst_127 : f32 to vector<1x1xf32>
    %613 = arith.addf %611, %612 : vector<1x1xf32>
    %614 = math.rsqrt %613 : vector<1x1xf32>
    %615 = vector.broadcast %614 : vector<1x1xf32> to vector<8x9xf32>
    %616 = arith.mulf %604, %615 : vector<8x9xf32>
    %617 = arith.mulf %616, %595 : vector<8x9xf32>
    %618 = arith.addf %617, %596 : vector<8x9xf32>
    %c0_128 = arith.constant 0 : index
    %c0_129 = arith.constant 0 : index
    %c0_130 = arith.constant 0 : index
    %619 = vector.load %arg31[%c0_128, %c0_129, %c0_130] : memref<8x8x1xf32, #tpu.memory_space<vmem>>, vector<8x8x1xf32>
    %620 = vector.extract_strided_slice %619 {offsets = [0, 0, 0], sizes = [1, 8, 1], strides = [1, 1, 1]} : vector<8x8x1xf32> to vector<1x8x1xf32>
    %621 = vector.shape_cast %620 : vector<1x8x1xf32> to vector<8x1xf32>
    %622 = vector.extract_strided_slice %618 {offsets = [0, 0], sizes = [1, 9], strides = [1, 1]} : vector<8x9xf32> to vector<1x9xf32>
    %623 = vector.broadcast %621 : vector<8x1xf32> to vector<8x9xf32>
    %624 = vector.broadcast %622 : vector<1x9xf32> to vector<8x9xf32>
    %625 = arith.mulf %623, %624 : vector<8x9xf32>
    %626 = arith.addf %514, %625 : vector<8x9xf32>
    %627 = vector.extract_strided_slice %619 {offsets = [1, 0, 0], sizes = [1, 8, 1], strides = [1, 1, 1]} : vector<8x8x1xf32> to vector<1x8x1xf32>
    %628 = vector.shape_cast %627 : vector<1x8x1xf32> to vector<8x1xf32>
    %629 = vector.extract_strided_slice %618 {offsets = [1, 0], sizes = [1, 9], strides = [1, 1]} : vector<8x9xf32> to vector<1x9xf32>
    %630 = vector.broadcast %628 : vector<8x1xf32> to vector<8x9xf32>
    %631 = vector.broadcast %629 : vector<1x9xf32> to vector<8x9xf32>
    %632 = arith.mulf %630, %631 : vector<8x9xf32>
    %633 = arith.addf %626, %632 : vector<8x9xf32>
    %634 = vector.extract_strided_slice %619 {offsets = [2, 0, 0], sizes = [1, 8, 1], strides = [1, 1, 1]} : vector<8x8x1xf32> to vector<1x8x1xf32>
    %635 = vector.shape_cast %634 : vector<1x8x1xf32> to vector<8x1xf32>
    %636 = vector.extract_strided_slice %618 {offsets = [2, 0], sizes = [1, 9], strides = [1, 1]} : vector<8x9xf32> to vector<1x9xf32>
    %637 = vector.broadcast %635 : vector<8x1xf32> to vector<8x9xf32>
    %638 = vector.broadcast %636 : vector<1x9xf32> to vector<8x9xf32>
    %639 = arith.mulf %637, %638 : vector<8x9xf32>
    %640 = arith.addf %633, %639 : vector<8x9xf32>
    %641 = vector.extract_strided_slice %619 {offsets = [3, 0, 0], sizes = [1, 8, 1], strides = [1, 1, 1]} : vector<8x8x1xf32> to vector<1x8x1xf32>
    %642 = vector.shape_cast %641 : vector<1x8x1xf32> to vector<8x1xf32>
    %643 = vector.extract_strided_slice %618 {offsets = [3, 0], sizes = [1, 9], strides = [1, 1]} : vector<8x9xf32> to vector<1x9xf32>
    %644 = vector.broadcast %642 : vector<8x1xf32> to vector<8x9xf32>
    %645 = vector.broadcast %643 : vector<1x9xf32> to vector<8x9xf32>
    %646 = arith.mulf %644, %645 : vector<8x9xf32>
    %647 = arith.addf %640, %646 : vector<8x9xf32>
    %648 = vector.extract_strided_slice %619 {offsets = [4, 0, 0], sizes = [1, 8, 1], strides = [1, 1, 1]} : vector<8x8x1xf32> to vector<1x8x1xf32>
    %649 = vector.shape_cast %648 : vector<1x8x1xf32> to vector<8x1xf32>
    %650 = vector.extract_strided_slice %618 {offsets = [4, 0], sizes = [1, 9], strides = [1, 1]} : vector<8x9xf32> to vector<1x9xf32>
    %651 = vector.broadcast %649 : vector<8x1xf32> to vector<8x9xf32>
    %652 = vector.broadcast %650 : vector<1x9xf32> to vector<8x9xf32>
    %653 = arith.mulf %651, %652 : vector<8x9xf32>
    %654 = arith.addf %647, %653 : vector<8x9xf32>
    %655 = vector.extract_strided_slice %619 {offsets = [5, 0, 0], sizes = [1, 8, 1], strides = [1, 1, 1]} : vector<8x8x1xf32> to vector<1x8x1xf32>
    %656 = vector.shape_cast %655 : vector<1x8x1xf32> to vector<8x1xf32>
    %657 = vector.extract_strided_slice %618 {offsets = [5, 0], sizes = [1, 9], strides = [1, 1]} : vector<8x9xf32> to vector<1x9xf32>
    %658 = vector.broadcast %656 : vector<8x1xf32> to vector<8x9xf32>
    %659 = vector.broadcast %657 : vector<1x9xf32> to vector<8x9xf32>
    %660 = arith.mulf %658, %659 : vector<8x9xf32>
    %661 = arith.addf %654, %660 : vector<8x9xf32>
    %662 = vector.extract_strided_slice %619 {offsets = [6, 0, 0], sizes = [1, 8, 1], strides = [1, 1, 1]} : vector<8x8x1xf32> to vector<1x8x1xf32>
    %663 = vector.shape_cast %662 : vector<1x8x1xf32> to vector<8x1xf32>
    %664 = vector.extract_strided_slice %618 {offsets = [6, 0], sizes = [1, 9], strides = [1, 1]} : vector<8x9xf32> to vector<1x9xf32>
    %665 = vector.broadcast %663 : vector<8x1xf32> to vector<8x9xf32>
    %666 = vector.broadcast %664 : vector<1x9xf32> to vector<8x9xf32>
    %667 = arith.mulf %665, %666 : vector<8x9xf32>
    %668 = arith.addf %661, %667 : vector<8x9xf32>
    %669 = vector.extract_strided_slice %619 {offsets = [7, 0, 0], sizes = [1, 8, 1], strides = [1, 1, 1]} : vector<8x8x1xf32> to vector<1x8x1xf32>
    %670 = vector.shape_cast %669 : vector<1x8x1xf32> to vector<8x1xf32>
    %671 = vector.extract_strided_slice %618 {offsets = [7, 0], sizes = [1, 9], strides = [1, 1]} : vector<8x9xf32> to vector<1x9xf32>
    %672 = vector.broadcast %670 : vector<8x1xf32> to vector<8x9xf32>
    %673 = vector.broadcast %671 : vector<1x9xf32> to vector<8x9xf32>
    %674 = arith.mulf %672, %673 : vector<8x9xf32>
    %675 = arith.addf %668, %674 : vector<8x9xf32>
    %c0_131 = arith.constant 0 : index
    %c0_132 = arith.constant 0 : index
    %c0_133 = arith.constant 0 : index
    %676 = vector.load %arg32[%c0_131, %c0_132, %c0_133] : memref<8x8x9xf32, #tpu.memory_space<vmem>>, vector<8x8x9xf32>
    %677 = vector.extract_strided_slice %676 {offsets = [0, 0, 0], sizes = [1, 8, 9], strides = [1, 1, 1]} : vector<8x8x9xf32> to vector<1x8x9xf32>
    %678 = vector.shape_cast %677 : vector<1x8x9xf32> to vector<8x9xf32>
    %679 = vector.extract_strided_slice %675 {offsets = [0, 0], sizes = [1, 9], strides = [1, 1]} : vector<8x9xf32> to vector<1x9xf32>
    %680 = vector.broadcast %679 : vector<1x9xf32> to vector<8x9xf32>
    %681 = arith.mulf %678, %680 : vector<8x9xf32>
    %682 = vector.extract_strided_slice %676 {offsets = [1, 0, 0], sizes = [1, 8, 9], strides = [1, 1, 1]} : vector<8x8x9xf32> to vector<1x8x9xf32>
    %683 = vector.shape_cast %682 : vector<1x8x9xf32> to vector<8x9xf32>
    %684 = vector.extract_strided_slice %675 {offsets = [1, 0], sizes = [1, 9], strides = [1, 1]} : vector<8x9xf32> to vector<1x9xf32>
    %685 = vector.broadcast %684 : vector<1x9xf32> to vector<8x9xf32>
    %686 = arith.mulf %683, %685 : vector<8x9xf32>
    %687 = arith.addf %681, %686 : vector<8x9xf32>
    %688 = vector.extract_strided_slice %676 {offsets = [2, 0, 0], sizes = [1, 8, 9], strides = [1, 1, 1]} : vector<8x8x9xf32> to vector<1x8x9xf32>
    %689 = vector.shape_cast %688 : vector<1x8x9xf32> to vector<8x9xf32>
    %690 = vector.extract_strided_slice %675 {offsets = [2, 0], sizes = [1, 9], strides = [1, 1]} : vector<8x9xf32> to vector<1x9xf32>
    %691 = vector.broadcast %690 : vector<1x9xf32> to vector<8x9xf32>
    %692 = arith.mulf %689, %691 : vector<8x9xf32>
    %693 = arith.addf %687, %692 : vector<8x9xf32>
    %694 = vector.extract_strided_slice %676 {offsets = [3, 0, 0], sizes = [1, 8, 9], strides = [1, 1, 1]} : vector<8x8x9xf32> to vector<1x8x9xf32>
    %695 = vector.shape_cast %694 : vector<1x8x9xf32> to vector<8x9xf32>
    %696 = vector.extract_strided_slice %675 {offsets = [3, 0], sizes = [1, 9], strides = [1, 1]} : vector<8x9xf32> to vector<1x9xf32>
    %697 = vector.broadcast %696 : vector<1x9xf32> to vector<8x9xf32>
    %698 = arith.mulf %695, %697 : vector<8x9xf32>
    %699 = arith.addf %693, %698 : vector<8x9xf32>
    %700 = vector.extract_strided_slice %676 {offsets = [4, 0, 0], sizes = [1, 8, 9], strides = [1, 1, 1]} : vector<8x8x9xf32> to vector<1x8x9xf32>
    %701 = vector.shape_cast %700 : vector<1x8x9xf32> to vector<8x9xf32>
    %702 = vector.extract_strided_slice %675 {offsets = [4, 0], sizes = [1, 9], strides = [1, 1]} : vector<8x9xf32> to vector<1x9xf32>
    %703 = vector.broadcast %702 : vector<1x9xf32> to vector<8x9xf32>
    %704 = arith.mulf %701, %703 : vector<8x9xf32>
    %705 = arith.addf %699, %704 : vector<8x9xf32>
    %706 = vector.extract_strided_slice %676 {offsets = [5, 0, 0], sizes = [1, 8, 9], strides = [1, 1, 1]} : vector<8x8x9xf32> to vector<1x8x9xf32>
    %707 = vector.shape_cast %706 : vector<1x8x9xf32> to vector<8x9xf32>
    %708 = vector.extract_strided_slice %675 {offsets = [5, 0], sizes = [1, 9], strides = [1, 1]} : vector<8x9xf32> to vector<1x9xf32>
    %709 = vector.broadcast %708 : vector<1x9xf32> to vector<8x9xf32>
    %710 = arith.mulf %707, %709 : vector<8x9xf32>
    %711 = arith.addf %705, %710 : vector<8x9xf32>
    %712 = vector.extract_strided_slice %676 {offsets = [6, 0, 0], sizes = [1, 8, 9], strides = [1, 1, 1]} : vector<8x8x9xf32> to vector<1x8x9xf32>
    %713 = vector.shape_cast %712 : vector<1x8x9xf32> to vector<8x9xf32>
    %714 = vector.extract_strided_slice %675 {offsets = [6, 0], sizes = [1, 9], strides = [1, 1]} : vector<8x9xf32> to vector<1x9xf32>
    %715 = vector.broadcast %714 : vector<1x9xf32> to vector<8x9xf32>
    %716 = arith.mulf %713, %715 : vector<8x9xf32>
    %717 = arith.addf %711, %716 : vector<8x9xf32>
    %718 = vector.extract_strided_slice %676 {offsets = [7, 0, 0], sizes = [1, 8, 9], strides = [1, 1, 1]} : vector<8x8x9xf32> to vector<1x8x9xf32>
    %719 = vector.shape_cast %718 : vector<1x8x9xf32> to vector<8x9xf32>
    %720 = vector.extract_strided_slice %675 {offsets = [7, 0], sizes = [1, 9], strides = [1, 1]} : vector<8x9xf32> to vector<1x9xf32>
    %721 = vector.broadcast %720 : vector<1x9xf32> to vector<8x9xf32>
    %722 = arith.mulf %719, %721 : vector<8x9xf32>
    %723 = arith.addf %717, %722 : vector<8x9xf32>
    %c0_134 = arith.constant 0 : index
    %c0_135 = arith.constant 0 : index
    %724 = vector.load %arg33[%c0_134, %c0_135] : memref<9x4xf32, #tpu.memory_space<vmem>>, vector<9x4xf32>
    %cst_136 = arith.constant dense<0.000000e+00> : vector<8x4xf32>
    %725 = tpu.matmul %723, %724, %cst_136 {dimension_numbers = #tpu.dot_dimension_numbers<[1], [0], [0], [1], [0, 0, 1, 1], [], []>} : vector<8x9xf32>, vector<9x4xf32>, vector<8x4xf32> -> vector<8x4xf32>
    %c0_137 = arith.constant 0 : index
    %c0_138 = arith.constant 0 : index
    %c0_139 = arith.constant 0 : index
    %726 = vector.load %arg34[%c0_137, %c0_138, %c0_139] : memref<1x8x4xf32, #tpu.memory_space<vmem>>, vector<1x8x4xf32>
    %727 = vector.shape_cast %726 : vector<1x8x4xf32> to vector<8x4xf32>
    %728 = vector.shape_cast %725 : vector<8x4xf32> to vector<1x8x4xf32>
    tpu.vector_store %arg34[%c0_137, %c0_138, %c0_139], %728 {strides = array<i32>} : memref<1x8x4xf32, #tpu.memory_space<vmem>>, vector<1x8x4xf32>,
    return
  }
  func.func @transform_0(%arg0: i32) -> (i32, i32, i32) {
    %c0_i32 = arith.constant 0 : i32
    %c0_i32_0 = arith.constant 0 : i32
    %c0_i32_1 = arith.constant 0 : i32
    return %arg0, %c0_i32, %c0_i32_0 : i32, i32, i32
  }
  func.func @transform_1(%arg0: i32) -> (i32, i32) {
    %c0_i32 = arith.constant 0 : i32
    %c0_i32_0 = arith.constant 0 : i32
    %c0_i32_1 = arith.constant 0 : i32
    return %c0_i32, %c0_i32_0 : i32, i32
  }
  func.func @transform_2(%arg0: i32) -> (i32, i32) {
    %c0_i32 = arith.constant 0 : i32
    %c0_i32_0 = arith.constant 0 : i32
    %c0_i32_1 = arith.constant 0 : i32
    return %c0_i32, %c0_i32_0 : i32, i32
  }
  func.func @transform_3(%arg0: i32) -> (i32, i32) {
    %c0_i32 = arith.constant 0 : i32
    %c0_i32_0 = arith.constant 0 : i32
    %c0_i32_1 = arith.constant 0 : i32
    return %c0_i32, %c0_i32_0 : i32, i32
  }
  func.func @transform_4(%arg0: i32) -> (i32, i32) {
    %c0_i32 = arith.constant 0 : i32
    %c0_i32_0 = arith.constant 0 : i32
    %c0_i32_1 = arith.constant 0 : i32
    return %c0_i32, %c0_i32_0 : i32, i32
  }
  func.func @transform_5(%arg0: i32) -> (i32, i32, i32) {
    %c0_i32 = arith.constant 0 : i32
    %c0_i32_0 = arith.constant 0 : i32
    %c0_i32_1 = arith.constant 0 : i32
    %c0_i32_2 = arith.constant 0 : i32
    return %c0_i32, %c0_i32_0, %c0_i32_1 : i32, i32, i32
  }
  func.func @transform_6(%arg0: i32) -> (i32, i32, i32) {
    %c0_i32 = arith.constant 0 : i32
    %c0_i32_0 = arith.constant 0 : i32
    %c0_i32_1 = arith.constant 0 : i32
    %c0_i32_2 = arith.constant 0 : i32
    return %c0_i32, %c0_i32_0, %c0_i32_1 : i32, i32, i32
  }
  func.func @transform_7(%arg0: i32) -> (i32, i32, i32) {
    %c0_i32 = arith.constant 0 : i32
    %c0_i32_0 = arith.constant 0 : i32
    %c0_i32_1 = arith.constant 0 : i32
    %c0_i32_2 = arith.constant 0 : i32
    return %c0_i32, %c0_i32_0, %c0_i32_1 : i32, i32, i32
  }
  func.func @transform_8(%arg0: i32) -> (i32, i32) {
    %c0_i32 = arith.constant 0 : i32
    %c0_i32_0 = arith.constant 0 : i32
    %c0_i32_1 = arith.constant 0 : i32
    return %c0_i32, %c0_i32_0 : i32, i32
  }
  func.func @transform_9(%arg0: i32) -> (i32, i32) {
    %c0_i32 = arith.constant 0 : i32
    %c0_i32_0 = arith.constant 0 : i32
    %c0_i32_1 = arith.constant 0 : i32
    return %c0_i32, %c0_i32_0 : i32, i32
  }
  func.func @transform_10(%arg0: i32) -> (i32, i32) {
    %c0_i32 = arith.constant 0 : i32
    %c0_i32_0 = arith.constant 0 : i32
    %c0_i32_1 = arith.constant 0 : i32
    return %c0_i32, %c0_i32_0 : i32, i32
  }
  func.func @transform_11(%arg0: i32) -> (i32, i32) {
    %c0_i32 = arith.constant 0 : i32
    %c0_i32_0 = arith.constant 0 : i32
    %c0_i32_1 = arith.constant 0 : i32
    return %c0_i32, %c0_i32_0 : i32, i32
  }
  func.func @transform_12(%arg0: i32) -> (i32, i32) {
    %c0_i32 = arith.constant 0 : i32
    %c0_i32_0 = arith.constant 0 : i32
    %c0_i32_1 = arith.constant 0 : i32
    return %c0_i32, %c0_i32_0 : i32, i32
  }
  func.func @transform_13(%arg0: i32) -> (i32, i32, i32) {
    %c0_i32 = arith.constant 0 : i32
    %c0_i32_0 = arith.constant 0 : i32
    %c0_i32_1 = arith.constant 0 : i32
    %c0_i32_2 = arith.constant 0 : i32
    return %c0_i32, %c0_i32_0, %c0_i32_1 : i32, i32, i32
  }
  func.func @transform_14(%arg0: i32) -> (i32, i32, i32) {
    %c0_i32 = arith.constant 0 : i32
    %c0_i32_0 = arith.constant 0 : i32
    %c0_i32_1 = arith.constant 0 : i32
    %c0_i32_2 = arith.constant 0 : i32
    return %c0_i32, %c0_i32_0, %c0_i32_1 : i32, i32, i32
  }
  func.func @transform_15(%arg0: i32) -> (i32, i32, i32) {
    %c0_i32 = arith.constant 0 : i32
    %c0_i32_0 = arith.constant 0 : i32
    %c0_i32_1 = arith.constant 0 : i32
    %c0_i32_2 = arith.constant 0 : i32
    return %c0_i32, %c0_i32_0, %c0_i32_1 : i32, i32, i32
  }
  func.func @transform_16(%arg0: i32) -> (i32, i32) {
    %c0_i32 = arith.constant 0 : i32
    %c0_i32_0 = arith.constant 0 : i32
    %c0_i32_1 = arith.constant 0 : i32
    return %c0_i32, %c0_i32_0 : i32, i32
  }
  func.func @transform_17(%arg0: i32) -> (i32, i32) {
    %c0_i32 = arith.constant 0 : i32
    %c0_i32_0 = arith.constant 0 : i32
    %c0_i32_1 = arith.constant 0 : i32
    return %c0_i32, %c0_i32_0 : i32, i32
  }
  func.func @transform_18(%arg0: i32) -> (i32, i32) {
    %c0_i32 = arith.constant 0 : i32
    %c0_i32_0 = arith.constant 0 : i32
    %c0_i32_1 = arith.constant 0 : i32
    return %c0_i32, %c0_i32_0 : i32, i32
  }
  func.func @transform_19(%arg0: i32) -> (i32, i32) {
    %c0_i32 = arith.constant 0 : i32
    %c0_i32_0 = arith.constant 0 : i32
    %c0_i32_1 = arith.constant 0 : i32
    return %c0_i32, %c0_i32_0 : i32, i32
  }
  func.func @transform_20(%arg0: i32) -> (i32, i32) {
    %c0_i32 = arith.constant 0 : i32
    %c0_i32_0 = arith.constant 0 : i32
    %c0_i32_1 = arith.constant 0 : i32
    return %c0_i32, %c0_i32_0 : i32, i32
  }
  func.func @transform_21(%arg0: i32) -> (i32, i32, i32) {
    %c0_i32 = arith.constant 0 : i32
    %c0_i32_0 = arith.constant 0 : i32
    %c0_i32_1 = arith.constant 0 : i32
    %c0_i32_2 = arith.constant 0 : i32
    return %c0_i32, %c0_i32_0, %c0_i32_1 : i32, i32, i32
  }
  func.func @transform_22(%arg0: i32) -> (i32, i32, i32) {
    %c0_i32 = arith.constant 0 : i32
    %c0_i32_0 = arith.constant 0 : i32
    %c0_i32_1 = arith.constant 0 : i32
    %c0_i32_2 = arith.constant 0 : i32
    return %c0_i32, %c0_i32_0, %c0_i32_1 : i32, i32, i32
  }
  func.func @transform_23(%arg0: i32) -> (i32, i32, i32) {
    %c0_i32 = arith.constant 0 : i32
    %c0_i32_0 = arith.constant 0 : i32
    %c0_i32_1 = arith.constant 0 : i32
    %c0_i32_2 = arith.constant 0 : i32
    return %c0_i32, %c0_i32_0, %c0_i32_1 : i32, i32, i32
  }
  func.func @transform_24(%arg0: i32) -> (i32, i32) {
    %c0_i32 = arith.constant 0 : i32
    %c0_i32_0 = arith.constant 0 : i32
    %c0_i32_1 = arith.constant 0 : i32
    return %c0_i32, %c0_i32_0 : i32, i32
  }
  func.func @transform_25(%arg0: i32) -> (i32, i32) {
    %c0_i32 = arith.constant 0 : i32
    %c0_i32_0 = arith.constant 0 : i32
    %c0_i32_1 = arith.constant 0 : i32
    return %c0_i32, %c0_i32_0 : i32, i32
  }
  func.func @transform_26(%arg0: i32) -> (i32, i32) {
    %c0_i32 = arith.constant 0 : i32
    %c0_i32_0 = arith.constant 0 : i32
    %c0_i32_1 = arith.constant 0 : i32
    return %c0_i32, %c0_i32_0 : i32, i32
  }
  func.func @transform_27(%arg0: i32) -> (i32, i32) {
    %c0_i32 = arith.constant 0 : i32
    %c0_i32_0 = arith.constant 0 : i32
    %c0_i32_1 = arith.constant 0 : i32
    return %c0_i32, %c0_i32_0 : i32, i32
  }
  func.func @transform_28(%arg0: i32) -> (i32, i32) {
    %c0_i32 = arith.constant 0 : i32
    %c0_i32_0 = arith.constant 0 : i32
    %c0_i32_1 = arith.constant 0 : i32
    return %c0_i32, %c0_i32_0 : i32, i32
  }
  func.func @transform_29(%arg0: i32) -> (i32, i32, i32) {
    %c0_i32 = arith.constant 0 : i32
    %c0_i32_0 = arith.constant 0 : i32
    %c0_i32_1 = arith.constant 0 : i32
    %c0_i32_2 = arith.constant 0 : i32
    return %c0_i32, %c0_i32_0, %c0_i32_1 : i32, i32, i32
  }
  func.func @transform_30(%arg0: i32) -> (i32, i32, i32) {
    %c0_i32 = arith.constant 0 : i32
    %c0_i32_0 = arith.constant 0 : i32
    %c0_i32_1 = arith.constant 0 : i32
    %c0_i32_2 = arith.constant 0 : i32
    return %c0_i32, %c0_i32_0, %c0_i32_1 : i32, i32, i32
  }
  func.func @transform_31(%arg0: i32) -> (i32, i32, i32) {
    %c0_i32 = arith.constant 0 : i32
    %c0_i32_0 = arith.constant 0 : i32
    %c0_i32_1 = arith.constant 0 : i32
    %c0_i32_2 = arith.constant 0 : i32
    return %c0_i32, %c0_i32_0, %c0_i32_1 : i32, i32, i32
  }
  func.func @transform_32(%arg0: i32) -> (i32, i32) {
    %c0_i32 = arith.constant 0 : i32
    %c0_i32_0 = arith.constant 0 : i32
    %c0_i32_1 = arith.constant 0 : i32
    return %c0_i32, %c0_i32_0 : i32, i32
  }
  func.func @transform_33(%arg0: i32) -> (i32, i32, i32) {
    %c0_i32 = arith.constant 0 : i32
    %c0_i32_0 = arith.constant 0 : i32
    %c0_i32_1 = arith.constant 0 : i32
    return %arg0, %c0_i32, %c0_i32_0 : i32, i32, i32
  }
}

</mosaic_0001>

<llo_original>
// kernel: _lambda_.1
$region0: #{_lambda_.1}
  #allocation0 [shape = 'u32[]', space=smem, size = 0x4, offset = 0x4, fixed_abs, tag = 'smem constant byte address 0x4 - core index']
  #allocation1 [shape = 'u32[144,128]{1,0:T(1,128)}', space=vmem, size = 0x12000, scoped, tag = 'internal scratch']
  %s0 = inlined_call_operand.smem [shape: u32[34], index: -1, kind: input, shape index: {}]
  %s1 = sld [smem:[%s0]]
  %s2 = scalar_lea.smem %s0, 1
  %s3 = sld [smem:[%s2]]
  %s4 = scalar_lea.smem %s0, 2
  %s5 = sld [smem:[%s4]]
  %s6 = scalar_lea.smem %s0, 3
  %s7 = sld [smem:[%s6]]
  %s8 = scalar_lea.smem %s0, 4
  %s9 = sld [smem:[%s8]]
  %s10 = scalar_lea.smem %s0, 5
  %s11 = sld [smem:[%s10]]
  %s12 = scalar_lea.smem %s0, 6
  %s13 = sld [smem:[%s12]]
  %s14 = scalar_lea.smem %s0, 7
  %s15 = sld [smem:[%s14]]
  %s16 = scalar_lea.smem %s0, 8
  %s17 = sld [smem:[%s16]]
  %s18 = scalar_lea.smem %s0, 9
  %s19 = sld [smem:[%s18]]
  %s20 = scalar_lea.smem %s0, 10
  %s21 = sld [smem:[%s20]]
  %s22 = scalar_lea.smem %s0, 11
  %s23 = sld [smem:[%s22]]
  %s24 = scalar_lea.smem %s0, 12
  %s25 = sld [smem:[%s24]]
  %s26 = scalar_lea.smem %s0, 13
  %s27 = sld [smem:[%s26]]
  %s28 = scalar_lea.smem %s0, 14
  %s29 = sld [smem:[%s28]]
  %s30 = scalar_lea.smem %s0, 15
  %s31 = sld [smem:[%s30]]
  %s32 = scalar_lea.smem %s0, 16
  %s33 = sld [smem:[%s32]]
  %s34 = scalar_lea.smem %s0, 17
  %s35 = sld [smem:[%s34]]
  %s36 = scalar_lea.smem %s0, 18
  %s37 = sld [smem:[%s36]]
  %s38 = scalar_lea.smem %s0, 19
  %s39 = sld [smem:[%s38]]
  %s40 = scalar_lea.smem %s0, 20
  %s41 = sld [smem:[%s40]]
  %s42 = scalar_lea.smem %s0, 21
  %s43 = sld [smem:[%s42]]
  %s44 = scalar_lea.smem %s0, 22
  %s45 = sld [smem:[%s44]]
  %s46 = scalar_lea.smem %s0, 23
  %s47 = sld [smem:[%s46]]
  %s48 = scalar_lea.smem %s0, 24
  %s49 = sld [smem:[%s48]]
  %s50 = scalar_lea.smem %s0, 25
  %s51 = sld [smem:[%s50]]
  %s52 = scalar_lea.smem %s0, 26
  %s53 = sld [smem:[%s52]]
  %s54 = scalar_lea.smem %s0, 27
  %s55 = sld [smem:[%s54]]
  %s56 = scalar_lea.smem %s0, 28
  %s57 = sld [smem:[%s56]]
  %s58 = scalar_lea.smem %s0, 29
  %s59 = sld [smem:[%s58]]
  %s60 = scalar_lea.smem %s0, 30
  %s61 = sld [smem:[%s60]]
  %s62 = scalar_lea.smem %s0, 31
  %s63 = sld [smem:[%s62]]
  %s64 = scalar_lea.smem %s0, 32
  %s65 = sld [smem:[%s64]]
  %s66 = scalar_lea.smem %s0, 33
  %s67 = sld [smem:[%s66]]
  %s68 = sld [smem:[#allocation0]]
  $region165: #{_lambda_.1} parent=0
    _
  %s70 = ssub.s32 1, %s68
  %s71 = scalar_select 0, %s70, %s68
  loop: start=0, step=1, limit=4
  $region2: #{_lambda_.1} parent=0 // loop_pre_header
    _
  $region3: #{_lambda_.1} parent=0 // loop_header
    %s73 = sphi 0, %s77
    %p74 = scmp.ge.s32.totalorder %s73, 4
    %s83 = sphi 0, %s85
    %s86 = sphi 0, %s83
    %s87 = sphi 0, %s86
    %s103 = sphi 0, %s87
    %s107 = sphi 0, %s107
    %s109 = sphi 0, %s107
    %s110 = sphi 0, %s109
    %s124 = sphi 0, %s110
    %s128 = sphi 0, %s128
    %s130 = sphi 0, %s128
    %s131 = sphi 0, %s130
    %s145 = sphi 0, %s131
    %s149 = sphi 0, %s149
    %s151 = sphi 0, %s149
    %s152 = sphi 0, %s151
    %s166 = sphi 0, %s152
    %s170 = sphi 0, %s170
    %s172 = sphi 0, %s170
    %s173 = sphi 0, %s172
    %s187 = sphi 0, %s173
    %s191 = sphi 0, %s191
    %s193 = sphi 0, %s191
    %s194 = sphi 0, %s193
    %s208 = sphi 0, %s194
    %s212 = sphi 0, %s212
    %s214 = sphi 0, %s212
    %s215 = sphi 0, %s214
    %s229 = sphi 0, %s215
    %s233 = sphi 0, %s233
    %s235 = sphi 0, %s233
    %s236 = sphi 0, %s235
    %s250 = sphi 0, %s236
    %s254 = sphi 0, %s254
    %s256 = sphi 0, %s254
    %s257 = sphi 0, %s256
    %s271 = sphi 0, %s257
    %s275 = sphi 0, %s275
    %s277 = sphi 0, %s275
    %s278 = sphi 0, %s277
    %s292 = sphi 0, %s278
    %s296 = sphi 0, %s296
    %s298 = sphi 0, %s296
    %s299 = sphi 0, %s298
    %s313 = sphi 0, %s299
    %s317 = sphi 0, %s317
    %s319 = sphi 0, %s317
    %s320 = sphi 0, %s319
    %s334 = sphi 0, %s320
    %s338 = sphi 0, %s338
    %s340 = sphi 0, %s338
    %s341 = sphi 0, %s340
    %s355 = sphi 0, %s341
    %s359 = sphi 0, %s359
    %s361 = sphi 0, %s359
    %s362 = sphi 0, %s361
    %s376 = sphi 0, %s362
    %s380 = sphi 0, %s380
    %s382 = sphi 0, %s380
    %s383 = sphi 0, %s382
    %s397 = sphi 0, %s383
    %s401 = sphi 0, %s401
    %s403 = sphi 0, %s401
    %s404 = sphi 0, %s403
    %s418 = sphi 0, %s404
    %s422 = sphi 0, %s422
    %s424 = sphi 0, %s422
    %s425 = sphi 0, %s424
    %s439 = sphi 0, %s425
    %s443 = sphi 0, %s443
    %s445 = sphi 0, %s443
    %s446 = sphi 0, %s445
    %s460 = sphi 0, %s446
    %s464 = sphi 0, %s464
    %s466 = sphi 0, %s464
    %s467 = sphi 0, %s466
    %s481 = sphi 0, %s467
    %s485 = sphi 0, %s485
    %s487 = sphi 0, %s485
    %s488 = sphi 0, %s487
    %s502 = sphi 0, %s488
    %s506 = sphi 0, %s506
    %s508 = sphi 0, %s506
    %s509 = sphi 0, %s508
    %s523 = sphi 0, %s509
    %s527 = sphi 0, %s527
    %s529 = sphi 0, %s527
    %s530 = sphi 0, %s529
    %s544 = sphi 0, %s530
    %s548 = sphi 0, %s548
    %s550 = sphi 0, %s548
    %s551 = sphi 0, %s550
    %s565 = sphi 0, %s551
    %s569 = sphi 0, %s569
    %s571 = sphi 0, %s569
    %s572 = sphi 0, %s571
    %s586 = sphi 0, %s572
    %s590 = sphi 0, %s590
    %s592 = sphi 0, %s590
    %s593 = sphi 0, %s592
    %s607 = sphi 0, %s593
    %s611 = sphi 0, %s611
    %s613 = sphi 0, %s611
    %s614 = sphi 0, %s613
    %s628 = sphi 0, %s614
    %s632 = sphi 0, %s632
    %s634 = sphi 0, %s632
    %s635 = sphi 0, %s634
    %s649 = sphi 0, %s635
    %s653 = sphi 0, %s653
    %s655 = sphi 0, %s653
    %s656 = sphi 0, %s655
    %s670 = sphi 0, %s656
    %s674 = sphi 0, %s674
    %s676 = sphi 0, %s674
    %s677 = sphi 0, %s676
    %s691 = sphi 0, %s677
    %s695 = sphi 0, %s695
    %s697 = sphi 0, %s695
    %s698 = sphi 0, %s697
    %s712 = sphi 0, %s698
    %s716 = sphi 0, %s716
    %s718 = sphi 0, %s716
    %s719 = sphi 0, %s718
    %s733 = sphi 0, %s719
    %s737 = sphi 0, %s737
    %s739 = sphi 0, %s737
    %s740 = sphi 0, %s739
    %s754 = sphi 0, %s740
    %s758 = sphi 0, %s758
    %s760 = sphi 0, %s758
    %s761 = sphi 0, %s760
    %s775 = sphi 0, %s761
    %s781 = sphi 0, %s783
    %s784 = sphi 0, %s781
    %s785 = sphi 0, %s784
    %s801 = sphi 0, %s785
  $region4: #{_lambda_.1} parent=0 // loop_header_branch
    %76 = sbr.rel (%p74) target = $region8
  $region5: #{_lambda_.1} parent=0 // loop_body
    %s78 = ssub.s32 %s73, 1
    %s79 = ssub.s32 %s73, 2
    %s80 = sadd.s32 %s73, 1
    %s81 = ssub.s32 %s73, %s80
    %p82 = scmp.eq.s32.totalorder %s81, 0
    %s84 = sadd.s32 %s83, 1
    %s85 = scalar_select %p82, %s83, %s84
    %p88 = pneg %p82
    %p89 = scmp.eq.s32.totalorder %s73, 1
    %p90 = por %p88, %p89
    %p91 = scmp.ne.s32.totalorder %s83, %s86
    %p92 = scmp.eq.s32.totalorder %s73, 0
    %p93 = por %p91, %p92
    %p94 = scmp.ne.s32.totalorder %s83, %s86
    %p95 = scmp.eq.s32.totalorder %s78, 1
    %p96 = por %p94, %p95
    %p97 = scmp.ne.s32.totalorder %s86, %s87
    %p98 = scmp.eq.s32.totalorder %s78, 0
    %p99 = por %p97, %p98
    %p100 = scmp.ne.s32.totalorder %s86, %s87
    %p101 = scmp.eq.s32.totalorder %s79, 1
    %p102 = por %p100, %p101
    %p104 = scmp.ne.s32.totalorder %s87, %s103
    %p105 = scmp.eq.s32.totalorder %s79, 0
    %p106 = por %p104, %p105
    %s108 = sadd.s32 %s107, 1
    %p111 = scmp.eq.s32.totalorder %s73, 1
    %p112 = scmp.ne.s32.totalorder %s107, %s109
    %p113 = scmp.eq.s32.totalorder %s73, 0
    %p114 = por %p112, %p113
    %p115 = scmp.ne.s32.totalorder %s107, %s109
    %p116 = scmp.eq.s32.totalorder %s78, 1
    %p117 = por %p115, %p116
    %p118 = scmp.ne.s32.totalorder %s109, %s110
    %p119 = scmp.eq.s32.totalorder %s78, 0
    %p120 = por %p118, %p119
    %p121 = scmp.ne.s32.totalorder %s109, %s110
    %p122 = scmp.eq.s32.totalorder %s79, 1
    %p123 = por %p121, %p122
    %p125 = scmp.ne.s32.totalorder %s110, %s124
    %p126 = scmp.eq.s32.totalorder %s79, 0
    %p127 = por %p125, %p126
    %s129 = sadd.s32 %s128, 1
    %p132 = scmp.eq.s32.totalorder %s73, 1
    %p133 = scmp.ne.s32.totalorder %s128, %s130
    %p134 = scmp.eq.s32.totalorder %s73, 0
    %p135 = por %p133, %p134
    %p136 = scmp.ne.s32.totalorder %s128, %s130
    %p137 = scmp.eq.s32.totalorder %s78, 1
    %p138 = por %p136, %p137
    %p139 = scmp.ne.s32.totalorder %s130, %s131
    %p140 = scmp.eq.s32.totalorder %s78, 0
    %p141 = por %p139, %p140
    %p142 = scmp.ne.s32.totalorder %s130, %s131
    %p143 = scmp.eq.s32.totalorder %s79, 1
    %p144 = por %p142, %p143
    %p146 = scmp.ne.s32.totalorder %s131, %s145
    %p147 = scmp.eq.s32.totalorder %s79, 0
    %p148 = por %p146, %p147
    %s150 = sadd.s32 %s149, 1
    %p153 = scmp.eq.s32.totalorder %s73, 1
    %p154 = scmp.ne.s32.totalorder %s149, %s151
    %p155 = scmp.eq.s32.totalorder %s73, 0
    %p156 = por %p154, %p155
    %p157 = scmp.ne.s32.totalorder %s149, %s151
    %p158 = scmp.eq.s32.totalorder %s78, 1
    %p159 = por %p157, %p158
    %p160 = scmp.ne.s32.totalorder %s151, %s152
    %p161 = scmp.eq.s32.totalorder %s78, 0
    %p162 = por %p160, %p161
    %p163 = scmp.ne.s32.totalorder %s151, %s152
    %p164 = scmp.eq.s32.totalorder %s79, 1
    %p165 = por %p163, %p164
    %p167 = scmp.ne.s32.totalorder %s152, %s166
    %p168 = scmp.eq.s32.totalorder %s79, 0
    %p169 = por %p167, %p168
    %s171 = sadd.s32 %s170, 1
    %p174 = scmp.eq.s32.totalorder %s73, 1
    %p175 = scmp.ne.s32.totalorder %s170, %s172
    %p176 = scmp.eq.s32.totalorder %s73, 0
    %p177 = por %p175, %p176
    %p178 = scmp.ne.s32.totalorder %s170, %s172
    %p179 = scmp.eq.s32.totalorder %s78, 1
    %p180 = por %p178, %p179
    %p181 = scmp.ne.s32.totalorder %s172, %s173
    %p182 = scmp.eq.s32.totalorder %s78, 0
    %p183 = por %p181, %p182
    %p184 = scmp.ne.s32.totalorder %s172, %s173
    %p185 = scmp.eq.s32.totalorder %s79, 1
    %p186 = por %p184, %p185
    %p188 = scmp.ne.s32.totalorder %s173, %s187
    %p189 = scmp.eq.s32.totalorder %s79, 0
    %p190 = por %p188, %p189
    %s192 = sadd.s32 %s191, 1
    %p195 = scmp.eq.s32.totalorder %s73, 1
    %p196 = scmp.ne.s32.totalorder %s191, %s193
    %p197 = scmp.eq.s32.totalorder %s73, 0
    %p198 = por %p196, %p197
    %p199 = scmp.ne.s32.totalorder %s191, %s193
    %p200 = scmp.eq.s32.totalorder %s78, 1
    %p201 = por %p199, %p200
    %p202 = scmp.ne.s32.totalorder %s193, %s194
    %p203 = scmp.eq.s32.totalorder %s78, 0
    %p204 = por %p202, %p203
    %p205 = scmp.ne.s32.totalorder %s193, %s194
    %p206 = scmp.eq.s32.totalorder %s79, 1
    %p207 = por %p205, %p206
    %p209 = scmp.ne.s32.totalorder %s194, %s208
    %p210 = scmp.eq.s32.totalorder %s79, 0
    %p211 = por %p209, %p210
    %s213 = sadd.s32 %s212, 1
    %p216 = scmp.eq.s32.totalorder %s73, 1
    %p217 = scmp.ne.s32.totalorder %s212, %s214
    %p218 = scmp.eq.s32.totalorder %s73, 0
    %p219 = por %p217, %p218
    %p220 = scmp.ne.s32.totalorder %s212, %s214
    %p221 = scmp.eq.s32.totalorder %s78, 1
    %p222 = por %p220, %p221
    %p223 = scmp.ne.s32.totalorder %s214, %s215
    %p224 = scmp.eq.s32.totalorder %s78, 0
    %p225 = por %p223, %p224
    %p226 = scmp.ne.s32.totalorder %s214, %s215
    %p227 = scmp.eq.s32.totalorder %s79, 1
    %p228 = por %p226, %p227
    %p230 = scmp.ne.s32.totalorder %s215, %s229
    %p231 = scmp.eq.s32.totalorder %s79, 0
    %p232 = por %p230, %p231
    %s234 = sadd.s32 %s233, 1
    %p237 = scmp.eq.s32.totalorder %s73, 1
    %p238 = scmp.ne.s32.totalorder %s233, %s235
    %p239 = scmp.eq.s32.totalorder %s73, 0
    %p240 = por %p238, %p239
    %p241 = scmp.ne.s32.totalorder %s233, %s235
    %p242 = scmp.eq.s32.totalorder %s78, 1
    %p243 = por %p241, %p242
    %p244 = scmp.ne.s32.totalorder %s235, %s236
    %p245 = scmp.eq.s32.totalorder %s78, 0
    %p246 = por %p244, %p245
    %p247 = scmp.ne.s32.totalorder %s235, %s236
    %p248 = scmp.eq.s32.totalorder %s79, 1
    %p249 = por %p247, %p248
    %p251 = scmp.ne.s32.totalorder %s236, %s250
    %p252 = scmp.eq.s32.totalorder %s79, 0
    %p253 = por %p251, %p252
    %s255 = sadd.s32 %s254, 1
    %p258 = scmp.eq.s32.totalorder %s73, 1
    %p259 = scmp.ne.s32.totalorder %s254, %s256
    %p260 = scmp.eq.s32.totalorder %s73, 0
    %p261 = por %p259, %p260
    %p262 = scmp.ne.s32.totalorder %s254, %s256
    %p263 = scmp.eq.s32.totalorder %s78, 1
    %p264 = por %p262, %p263
    %p265 = scmp.ne.s32.totalorder %s256, %s257
    %p266 = scmp.eq.s32.totalorder %s78, 0
    %p267 = por %p265, %p266
    %p268 = scmp.ne.s32.totalorder %s256, %s257
    %p269 = scmp.eq.s32.totalorder %s79, 1
    %p270 = por %p268, %p269
    %p272 = scmp.ne.s32.totalorder %s257, %s271
    %p273 = scmp.eq.s32.totalorder %s79, 0
    %p274 = por %p272, %p273
    %s276 = sadd.s32 %s275, 1
    %p279 = scmp.eq.s32.totalorder %s73, 1
    %p280 = scmp.ne.s32.totalorder %s275, %s277
    %p281 = scmp.eq.s32.totalorder %s73, 0
    %p282 = por %p280, %p281
    %p283 = scmp.ne.s32.totalorder %s275, %s277
    %p284 = scmp.eq.s32.totalorder %s78, 1
    %p285 = por %p283, %p284
    %p286 = scmp.ne.s32.totalorder %s277, %s278
    %p287 = scmp.eq.s32.totalorder %s78, 0
    %p288 = por %p286, %p287
    %p289 = scmp.ne.s32.totalorder %s277, %s278
    %p290 = scmp.eq.s32.totalorder %s79, 1
    %p291 = por %p289, %p290
    %p293 = scmp.ne.s32.totalorder %s278, %s292
    %p294 = scmp.eq.s32.totalorder %s79, 0
    %p295 = por %p293, %p294
    %s297 = sadd.s32 %s296, 1
    %p300 = scmp.eq.s32.totalorder %s73, 1
    %p301 = scmp.ne.s32.totalorder %s296, %s298
    %p302 = scmp.eq.s32.totalorder %s73, 0
    %p303 = por %p301, %p302
    %p304 = scmp.ne.s32.totalorder %s296, %s298
    %p305 = scmp.eq.s32.totalorder %s78, 1
    %p306 = por %p304, %p305
    %p307 = scmp.ne.s32.totalorder %s298, %s299
    %p308 = scmp.eq.s32.totalorder %s78, 0
    %p309 = por %p307, %p308
    %p310 = scmp.ne.s32.totalorder %s298, %s299
    %p311 = scmp.eq.s32.totalorder %s79, 1
    %p312 = por %p310, %p311
    %p314 = scmp.ne.s32.totalorder %s299, %s313
    %p315 = scmp.eq.s32.totalorder %s79, 0
    %p316 = por %p314, %p315
    %s318 = sadd.s32 %s317, 1
    %p321 = scmp.eq.s32.totalorder %s73, 1
    %p322 = scmp.ne.s32.totalorder %s317, %s319
    %p323 = scmp.eq.s32.totalorder %s73, 0
    %p324 = por %p322, %p323
    %p325 = scmp.ne.s32.totalorder %s317, %s319
    %p326 = scmp.eq.s32.totalorder %s78, 1
    %p327 = por %p325, %p326
    %p328 = scmp.ne.s32.totalorder %s319, %s320
    %p329 = scmp.eq.s32.totalorder %s78, 0
    %p330 = por %p328, %p329
    %p331 = scmp.ne.s32.totalorder %s319, %s320
    %p332 = scmp.eq.s32.totalorder %s79, 1
    %p333 = por %p331, %p332
    %p335 = scmp.ne.s32.totalorder %s320, %s334
    %p336 = scmp.eq.s32.totalorder %s79, 0
    %p337 = por %p335, %p336
    %s339 = sadd.s32 %s338, 1
    %p342 = scmp.eq.s32.totalorder %s73, 1
    %p343 = scmp.ne.s32.totalorder %s338, %s340
    %p344 = scmp.eq.s32.totalorder %s73, 0
    %p345 = por %p343, %p344
    %p346 = scmp.ne.s32.totalorder %s338, %s340
    %p347 = scmp.eq.s32.totalorder %s78, 1
    %p348 = por %p346, %p347
    %p349 = scmp.ne.s32.totalorder %s340, %s341
    %p350 = scmp.eq.s32.totalorder %s78, 0
    %p351 = por %p349, %p350
    %p352 = scmp.ne.s32.totalorder %s340, %s341
    %p353 = scmp.eq.s32.totalorder %s79, 1
    %p354 = por %p352, %p353
    %p356 = scmp.ne.s32.totalorder %s341, %s355
    %p357 = scmp.eq.s32.totalorder %s79, 0
    %p358 = por %p356, %p357
    %s360 = sadd.s32 %s359, 1
    %p363 = scmp.eq.s32.totalorder %s73, 1
    %p364 = scmp.ne.s32.totalorder %s359, %s361
    %p365 = scmp.eq.s32.totalorder %s73, 0
    %p366 = por %p364, %p365
    %p367 = scmp.ne.s32.totalorder %s359, %s361
    %p368 = scmp.eq.s32.totalorder %s78, 1
    %p369 = por %p367, %p368
    %p370 = scmp.ne.s32.totalorder %s361, %s362
    %p371 = scmp.eq.s32.totalorder %s78, 0
    %p372 = por %p370, %p371
    %p373 = scmp.ne.s32.totalorder %s361, %s362
    %p374 = scmp.eq.s32.totalorder %s79, 1
    %p375 = por %p373, %p374
    %p377 = scmp.ne.s32.totalorder %s362, %s376
    %p378 = scmp.eq.s32.totalorder %s79, 0
    %p379 = por %p377, %p378
    %s381 = sadd.s32 %s380, 1
    %p384 = scmp.eq.s32.totalorder %s73, 1
    %p385 = scmp.ne.s32.totalorder %s380, %s382
    %p386 = scmp.eq.s32.totalorder %s73, 0
    %p387 = por %p385, %p386
    %p388 = scmp.ne.s32.totalorder %s380, %s382
    %p389 = scmp.eq.s32.totalorder %s78, 1
    %p390 = por %p388, %p389
    %p391 = scmp.ne.s32.totalorder %s382, %s383
    %p392 = scmp.eq.s32.totalorder %s78, 0
    %p393 = por %p391, %p392
    %p394 = scmp.ne.s32.totalorder %s382, %s383
    %p395 = scmp.eq.s32.totalorder %s79, 1
    %p396 = por %p394, %p395
    %p398 = scmp.ne.s32.totalorder %s383, %s397
    %p399 = scmp.eq.s32.totalorder %s79, 0
    %p400 = por %p398, %p399
    %s402 = sadd.s32 %s401, 1
    %p405 = scmp.eq.s32.totalorder %s73, 1
    %p406 = scmp.ne.s32.totalorder %s401, %s403
    %p407 = scmp.eq.s32.totalorder %s73, 0
    %p408 = por %p406, %p407
    %p409 = scmp.ne.s32.totalorder %s401, %s403
    %p410 = scmp.eq.s32.totalorder %s78, 1
    %p411 = por %p409, %p410
    %p412 = scmp.ne.s32.totalorder %s403, %s404
    %p413 = scmp.eq.s32.totalorder %s78, 0
    %p414 = por %p412, %p413
    %p415 = scmp.ne.s32.totalorder %s403, %s404
    %p416 = scmp.eq.s32.totalorder %s79, 1
    %p417 = por %p415, %p416
    %p419 = scmp.ne.s32.totalorder %s404, %s418
    %p420 = scmp.eq.s32.totalorder %s79, 0
    %p421 = por %p419, %p420
    %s423 = sadd.s32 %s422, 1
    %p426 = scmp.eq.s32.totalorder %s73, 1
    %p427 = scmp.ne.s32.totalorder %s422, %s424
    %p428 = scmp.eq.s32.totalorder %s73, 0
    %p429 = por %p427, %p428
    %p430 = scmp.ne.s32.totalorder %s422, %s424
    %p431 = scmp.eq.s32.totalorder %s78, 1
    %p432 = por %p430, %p431
    %p433 = scmp.ne.s32.totalorder %s424, %s425
    %p434 = scmp.eq.s32.totalorder %s78, 0
    %p435 = por %p433, %p434
    %p436 = scmp.ne.s32.totalorder %s424, %s425
    %p437 = scmp.eq.s32.totalorder %s79, 1
    %p438 = por %p436, %p437
    %p440 = scmp.ne.s32.totalorder %s425, %s439
    %p441 = scmp.eq.s32.totalorder %s79, 0
    %p442 = por %p440, %p441
    %s444 = sadd.s32 %s443, 1
    %p447 = scmp.eq.s32.totalorder %s73, 1
    %p448 = scmp.ne.s32.totalorder %s443, %s445
    %p449 = scmp.eq.s32.totalorder %s73, 0
    %p450 = por %p448, %p449
    %p451 = scmp.ne.s32.totalorder %s443, %s445
    %p452 = scmp.eq.s32.totalorder %s78, 1
    %p453 = por %p451, %p452
    %p454 = scmp.ne.s32.totalorder %s445, %s446
    %p455 = scmp.eq.s32.totalorder %s78, 0
    %p456 = por %p454, %p455
    %p457 = scmp.ne.s32.totalorder %s445, %s446
    %p458 = scmp.eq.s32.totalorder %s79, 1
    %p459 = por %p457, %p458
    %p461 = scmp.ne.s32.totalorder %s446, %s460
    %p462 = scmp.eq.s32.totalorder %s79, 0
    %p463 = por %p461, %p462
    %s465 = sadd.s32 %s464, 1
    %p468 = scmp.eq.s32.totalorder %s73, 1
    %p469 = scmp.ne.s32.totalorder %s464, %s466
    %p470 = scmp.eq.s32.totalorder %s73, 0
    %p471 = por %p469, %p470
    %p472 = scmp.ne.s32.totalorder %s464, %s466
    %p473 = scmp.eq.s32.totalorder %s78, 1
    %p474 = por %p472, %p473
    %p475 = scmp.ne.s32.totalorder %s466, %s467
    %p476 = scmp.eq.s32.totalorder %s78, 0
    %p477 = por %p475, %p476
    %p478 = scmp.ne.s32.totalorder %s466, %s467
    %p479 = scmp.eq.s32.totalorder %s79, 1
    %p480 = por %p478, %p479
    %p482 = scmp.ne.s32.totalorder %s467, %s481
    %p483 = scmp.eq.s32.totalorder %s79, 0
    %p484 = por %p482, %p483
    %s486 = sadd.s32 %s485, 1
    %p489 = scmp.eq.s32.totalorder %s73, 1
    %p490 = scmp.ne.s32.totalorder %s485, %s487
    %p491 = scmp.eq.s32.totalorder %s73, 0
    %p492 = por %p490, %p491
    %p493 = scmp.ne.s32.totalorder %s485, %s487
    %p494 = scmp.eq.s32.totalorder %s78, 1
    %p495 = por %p493, %p494
    %p496 = scmp.ne.s32.totalorder %s487, %s488
    %p497 = scmp.eq.s32.totalorder %s78, 0
    %p498 = por %p496, %p497
    %p499 = scmp.ne.s32.totalorder %s487, %s488
    %p500 = scmp.eq.s32.totalorder %s79, 1
    %p501 = por %p499, %p500
    %p503 = scmp.ne.s32.totalorder %s488, %s502
    %p504 = scmp.eq.s32.totalorder %s79, 0
    %p505 = por %p503, %p504
    %s507 = sadd.s32 %s506, 1
    %p510 = scmp.eq.s32.totalorder %s73, 1
    %p511 = scmp.ne.s32.totalorder %s506, %s508
    %p512 = scmp.eq.s32.totalorder %s73, 0
    %p513 = por %p511, %p512
    %p514 = scmp.ne.s32.totalorder %s506, %s508
    %p515 = scmp.eq.s32.totalorder %s78, 1
    %p516 = por %p514, %p515
    %p517 = scmp.ne.s32.totalorder %s508, %s509
    %p518 = scmp.eq.s32.totalorder %s78, 0
    %p519 = por %p517, %p518
    %p520 = scmp.ne.s32.totalorder %s508, %s509
    %p521 = scmp.eq.s32.totalorder %s79, 1
    %p522 = por %p520, %p521
    %p524 = scmp.ne.s32.totalorder %s509, %s523
    %p525 = scmp.eq.s32.totalorder %s79, 0
    %p526 = por %p524, %p525
    %s528 = sadd.s32 %s527, 1
    %p531 = scmp.eq.s32.totalorder %s73, 1
    %p532 = scmp.ne.s32.totalorder %s527, %s529
    %p533 = scmp.eq.s32.totalorder %s73, 0
    %p534 = por %p532, %p533
    %p535 = scmp.ne.s32.totalorder %s527, %s529
    %p536 = scmp.eq.s32.totalorder %s78, 1
    %p537 = por %p535, %p536
    %p538 = scmp.ne.s32.totalorder %s529, %s530
    %p539 = scmp.eq.s32.totalorder %s78, 0
    %p540 = por %p538, %p539
    %p541 = scmp.ne.s32.totalorder %s529, %s530
    %p542 = scmp.eq.s32.totalorder %s79, 1
    %p543 = por %p541, %p542
    %p545 = scmp.ne.s32.totalorder %s530, %s544
    %p546 = scmp.eq.s32.totalorder %s79, 0
    %p547 = por %p545, %p546
    %s549 = sadd.s32 %s548, 1
    %p552 = scmp.eq.s32.totalorder %s73, 1
    %p553 = scmp.ne.s32.totalorder %s548, %s550
    %p554 = scmp.eq.s32.totalorder %s73, 0
    %p555 = por %p553, %p554
    %p556 = scmp.ne.s32.totalorder %s548, %s550
    %p557 = scmp.eq.s32.totalorder %s78, 1
    %p558 = por %p556, %p557
    %p559 = scmp.ne.s32.totalorder %s550, %s551
    %p560 = scmp.eq.s32.totalorder %s78, 0
    %p561 = por %p559, %p560
    %p562 = scmp.ne.s32.totalorder %s550, %s551
    %p563 = scmp.eq.s32.totalorder %s79, 1
    %p564 = por %p562, %p563
    %p566 = scmp.ne.s32.totalorder %s551, %s565
    %p567 = scmp.eq.s32.totalorder %s79, 0
    %p568 = por %p566, %p567
    %s570 = sadd.s32 %s569, 1
    %p573 = scmp.eq.s32.totalorder %s73, 1
    %p574 = scmp.ne.s32.totalorder %s569, %s571
    %p575 = scmp.eq.s32.totalorder %s73, 0
    %p576 = por %p574, %p575
    %p577 = scmp.ne.s32.totalorder %s569, %s571
    %p578 = scmp.eq.s32.totalorder %s78, 1
    %p579 = por %p577, %p578
    %p580 = scmp.ne.s32.totalorder %s571, %s572
    %p581 = scmp.eq.s32.totalorder %s78, 0
    %p582 = por %p580, %p581
    %p583 = scmp.ne.s32.totalorder %s571, %s572
    %p584 = scmp.eq.s32.totalorder %s79, 1
    %p585 = por %p583, %p584
    %p587 = scmp.ne.s32.totalorder %s572, %s586
    %p588 = scmp.eq.s32.totalorder %s79, 0
    %p589 = por %p587, %p588
    %s591 = sadd.s32 %s590, 1
    %p594 = scmp.eq.s32.totalorder %s73, 1
    %p595 = scmp.ne.s32.totalorder %s590, %s592
    %p596 = scmp.eq.s32.totalorder %s73, 0
    %p597 = por %p595, %p596
    %p598 = scmp.ne.s32.totalorder %s590, %s592
    %p599 = scmp.eq.s32.totalorder %s78, 1
    %p600 = por %p598, %p599
    %p601 = scmp.ne.s32.totalorder %s592, %s593
    %p602 = scmp.eq.s32.totalorder %s78, 0
    %p603 = por %p601, %p602
    %p604 = scmp.ne.s32.totalorder %s592, %s593
    %p605 = scmp.eq.s32.totalorder %s79, 1
    %p606 = por %p604, %p605
    %p608 = scmp.ne.s32.totalorder %s593, %s607
    %p609 = scmp.eq.s32.totalorder %s79, 0
    %p610 = por %p608, %p609
    %s612 = sadd.s32 %s611, 1
    %p615 = scmp.eq.s32.totalorder %s73, 1
    %p616 = scmp.ne.s32.totalorder %s611, %s613
    %p617 = scmp.eq.s32.totalorder %s73, 0
    %p618 = por %p616, %p617
    %p619 = scmp.ne.s32.totalorder %s611, %s613
    %p620 = scmp.eq.s32.totalorder %s78, 1
    %p621 = por %p619, %p620
    %p622 = scmp.ne.s32.totalorder %s613, %s614
    %p623 = scmp.eq.s32.totalorder %s78, 0
    %p624 = por %p622, %p623
    %p625 = scmp.ne.s32.totalorder %s613, %s614
    %p626 = scmp.eq.s32.totalorder %s79, 1
    %p627 = por %p625, %p626
    %p629 = scmp.ne.s32.totalorder %s614, %s628
    %p630 = scmp.eq.s32.totalorder %s79, 0
    %p631 = por %p629, %p630
    %s633 = sadd.s32 %s632, 1
    %p636 = scmp.eq.s32.totalorder %s73, 1
    %p637 = scmp.ne.s32.totalorder %s632, %s634
    %p638 = scmp.eq.s32.totalorder %s73, 0
    %p639 = por %p637, %p638
    %p640 = scmp.ne.s32.totalorder %s632, %s634
    %p641 = scmp.eq.s32.totalorder %s78, 1
    %p642 = por %p640, %p641
    %p643 = scmp.ne.s32.totalorder %s634, %s635
    %p644 = scmp.eq.s32.totalorder %s78, 0
    %p645 = por %p643, %p644
    %p646 = scmp.ne.s32.totalorder %s634, %s635
    %p647 = scmp.eq.s32.totalorder %s79, 1
    %p648 = por %p646, %p647
    %p650 = scmp.ne.s32.totalorder %s635, %s649
    %p651 = scmp.eq.s32.totalorder %s79, 0
    %p652 = por %p650, %p651
    %s654 = sadd.s32 %s653, 1
    %p657 = scmp.eq.s32.totalorder %s73, 1
    %p658 = scmp.ne.s32.totalorder %s653, %s655
    %p659 = scmp.eq.s32.totalorder %s73, 0
    %p660 = por %p658, %p659
    %p661 = scmp.ne.s32.totalorder %s653, %s655
    %p662 = scmp.eq.s32.totalorder %s78, 1
    %p663 = por %p661, %p662
    %p664 = scmp.ne.s32.totalorder %s655, %s656
    %p665 = scmp.eq.s32.totalorder %s78, 0
    %p666 = por %p664, %p665
    %p667 = scmp.ne.s32.totalorder %s655, %s656
    %p668 = scmp.eq.s32.totalorder %s79, 1
    %p669 = por %p667, %p668
    %p671 = scmp.ne.s32.totalorder %s656, %s670
    %p672 = scmp.eq.s32.totalorder %s79, 0
    %p673 = por %p671, %p672
    %s675 = sadd.s32 %s674, 1
    %p678 = scmp.eq.s32.totalorder %s73, 1
    %p679 = scmp.ne.s32.totalorder %s674, %s676
    %p680 = scmp.eq.s32.totalorder %s73, 0
    %p681 = por %p679, %p680
    %p682 = scmp.ne.s32.totalorder %s674, %s676
    %p683 = scmp.eq.s32.totalorder %s78, 1
    %p684 = por %p682, %p683
    %p685 = scmp.ne.s32.totalorder %s676, %s677
    %p686 = scmp.eq.s32.totalorder %s78, 0
    %p687 = por %p685, %p686
    %p688 = scmp.ne.s32.totalorder %s676, %s677
    %p689 = scmp.eq.s32.totalorder %s79, 1
    %p690 = por %p688, %p689
    %p692 = scmp.ne.s32.totalorder %s677, %s691
    %p693 = scmp.eq.s32.totalorder %s79, 0
    %p694 = por %p692, %p693
    %s696 = sadd.s32 %s695, 1
    %p699 = scmp.eq.s32.totalorder %s73, 1
    %p700 = scmp.ne.s32.totalorder %s695, %s697
    %p701 = scmp.eq.s32.totalorder %s73, 0
    %p702 = por %p700, %p701
    %p703 = scmp.ne.s32.totalorder %s695, %s697
    %p704 = scmp.eq.s32.totalorder %s78, 1
    %p705 = por %p703, %p704
    %p706 = scmp.ne.s32.totalorder %s697, %s698
    %p707 = scmp.eq.s32.totalorder %s78, 0
    %p708 = por %p706, %p707
    %p709 = scmp.ne.s32.totalorder %s697, %s698
    %p710 = scmp.eq.s32.totalorder %s79, 1
    %p711 = por %p709, %p710
    %p713 = scmp.ne.s32.totalorder %s698, %s712
    %p714 = scmp.eq.s32.totalorder %s79, 0
    %p715 = por %p713, %p714
    %s717 = sadd.s32 %s716, 1
    %p720 = scmp.eq.s32.totalorder %s73, 1
    %p721 = scmp.ne.s32.totalorder %s716, %s718
    %p722 = scmp.eq.s32.totalorder %s73, 0
    %p723 = por %p721, %p722
    %p724 = scmp.ne.s32.totalorder %s716, %s718
    %p725 = scmp.eq.s32.totalorder %s78, 1
    %p726 = por %p724, %p725
    %p727 = scmp.ne.s32.totalorder %s718, %s719
    %p728 = scmp.eq.s32.totalorder %s78, 0
    %p729 = por %p727, %p728
    %p730 = scmp.ne.s32.totalorder %s718, %s719
    %p731 = scmp.eq.s32.totalorder %s79, 1
    %p732 = por %p730, %p731
    %p734 = scmp.ne.s32.totalorder %s719, %s733
    %p735 = scmp.eq.s32.totalorder %s79, 0
    %p736 = por %p734, %p735
    %s738 = sadd.s32 %s737, 1
    %p741 = scmp.eq.s32.totalorder %s73, 1
    %p742 = scmp.ne.s32.totalorder %s737, %s739
    %p743 = scmp.eq.s32.totalorder %s73, 0
    %p744 = por %p742, %p743
    %p745 = scmp.ne.s32.totalorder %s737, %s739
    %p746 = scmp.eq.s32.totalorder %s78, 1
    %p747 = por %p745, %p746
    %p748 = scmp.ne.s32.totalorder %s739, %s740
    %p749 = scmp.eq.s32.totalorder %s78, 0
    %p750 = por %p748, %p749
    %p751 = scmp.ne.s32.totalorder %s739, %s740
    %p752 = scmp.eq.s32.totalorder %s79, 1
    %p753 = por %p751, %p752
    %p755 = scmp.ne.s32.totalorder %s740, %s754
    %p756 = scmp.eq.s32.totalorder %s79, 0
    %p757 = por %p755, %p756
    %s759 = sadd.s32 %s758, 1
    %p762 = scmp.eq.s32.totalorder %s73, 1
    %p763 = scmp.ne.s32.totalorder %s758, %s760
    %p764 = scmp.eq.s32.totalorder %s73, 0
    %p765 = por %p763, %p764
    %p766 = scmp.ne.s32.totalorder %s758, %s760
    %p767 = scmp.eq.s32.totalorder %s78, 1
    %p768 = por %p766, %p767
    %p769 = scmp.ne.s32.totalorder %s760, %s761
    %p770 = scmp.eq.s32.totalorder %s78, 0
    %p771 = por %p769, %p770
    %p772 = scmp.ne.s32.totalorder %s760, %s761
    %p773 = scmp.eq.s32.totalorder %s79, 1
    %p774 = por %p772, %p773
    %p776 = scmp.ne.s32.totalorder %s761, %s775
    %p777 = scmp.eq.s32.totalorder %s79, 0
    %p778 = por %p776, %p777
    %s779 = ssub.s32 %s73, %s80
    %p780 = scmp.eq.s32.totalorder %s779, 0
    %s782 = sadd.s32 %s781, 1
    %s783 = scalar_select %p780, %s781, %s782
    %p786 = pneg %p780
    %p787 = scmp.eq.s32.totalorder %s73, 1
    %p788 = por %p786, %p787
    %p789 = scmp.ne.s32.totalorder %s781, %s784
    %p790 = scmp.eq.s32.totalorder %s73, 0
    %p791 = por %p789, %p790
    %p792 = scmp.ne.s32.totalorder %s781, %s784
    %p793 = scmp.eq.s32.totalorder %s78, 1
    %p794 = por %p792, %p793
    %p795 = scmp.ne.s32.totalorder %s784, %s785
    %p796 = scmp.eq.s32.totalorder %s78, 0
    %p797 = por %p795, %p796
    %p798 = scmp.ne.s32.totalorder %s784, %s785
    %p799 = scmp.eq.s32.totalorder %s79, 1
    %p800 = por %p798, %p799
    %p802 = scmp.ne.s32.totalorder %s785, %s801
    %p803 = scmp.eq.s32.totalorder %s79, 0
    %p804 = por %p802, %p803
    %p805 = scmp.le.s32.totalorder 1, %s73
    %p806 = scmp.lt.s32.totalorder %s73, 3
    %p807 = pnand %p805, %p806
    %p808 = pneg %p807
    // Predicated region
    $region9: #{_lambda_.1} parent=5 // pred_check
      _
    $region10: #{_lambda_.1} parent=5 // pred_check_branch
      %810 = sbr.rel (%p807) target = $region12
    $region11: #{_lambda_.1} parent=5 // pred_region
      %s811 = ssub.s32 %s73, 1
      // Predicated region
      $region13: #{_lambda_.1} parent=11 // pred_check
        %p812 = pneg %p120
      $region14: #{_lambda_.1} parent=11 // pred_check_branch
        %814 = sbr.rel (%p812) target = $region16
      $region15: #{_lambda_.1} parent=11 // pred_region
        _
      $region16: #{_lambda_.1} parent=11 // pred_fallthru
        _
      // Predicated region
      $region17: #{_lambda_.1} parent=11 // pred_check
        %p815 = pneg %p141
      $region18: #{_lambda_.1} parent=11 // pred_check_branch
        %817 = sbr.rel (%p815) target = $region20
      $region19: #{_lambda_.1} parent=11 // pred_region
        _
      $region20: #{_lambda_.1} parent=11 // pred_fallthru
        _
      // Predicated region
      $region21: #{_lambda_.1} parent=11 // pred_check
        %p818 = pneg %p162
      $region22: #{_lambda_.1} parent=11 // pred_check_branch
        %820 = sbr.rel (%p818) target = $region24
      $region23: #{_lambda_.1} parent=11 // pred_region
        _
      $region24: #{_lambda_.1} parent=11 // pred_fallthru
        _
      // Predicated region
      $region25: #{_lambda_.1} parent=11 // pred_check
        %p821 = pneg %p183
      $region26: #{_lambda_.1} parent=11 // pred_check_branch
        %823 = sbr.rel (%p821) target = $region28
      $region27: #{_lambda_.1} parent=11 // pred_region
        _
      $region28: #{_lambda_.1} parent=11 // pred_fallthru
        _
      // Predicated region
      $region29: #{_lambda_.1} parent=11 // pred_check
        %p824 = pneg %p204
      $region30: #{_lambda_.1} parent=11 // pred_check_branch
        %826 = sbr.rel (%p824) target = $region32
      $region31: #{_lambda_.1} parent=11 // pred_region
        _
      $region32: #{_lambda_.1} parent=11 // pred_fallthru
        _
      // Predicated region
      $region33: #{_lambda_.1} parent=11 // pred_check
        %p827 = pneg %p225
      $region34: #{_lambda_.1} parent=11 // pred_check_branch
        %829 = sbr.rel (%p827) target = $region36
      $region35: #{_lambda_.1} parent=11 // pred_region
        _
      $region36: #{_lambda_.1} parent=11 // pred_fallthru
        _
      // Predicated region
      $region37: #{_lambda_.1} parent=11 // pred_check
        %p830 = pneg %p246
      $region38: #{_lambda_.1} parent=11 // pred_check_branch
        %832 = sbr.rel (%p830) target = $region40
      $region39: #{_lambda_.1} parent=11 // pred_region
        _
      $region40: #{_lambda_.1} parent=11 // pred_fallthru
        _
      // Predicated region
      $region41: #{_lambda_.1} parent=11 // pred_check
        %p833 = pneg %p267
      $region42: #{_lambda_.1} parent=11 // pred_check_branch
        %835 = sbr.rel (%p833) target = $region44
      $region43: #{_lambda_.1} parent=11 // pred_region
        _
      $region44: #{_lambda_.1} parent=11 // pred_fallthru
        _
      // Predicated region
      $region45: #{_lambda_.1} parent=11 // pred_check
        %p836 = pneg %p288
      $region46: #{_lambda_.1} parent=11 // pred_check_branch
        %838 = sbr.rel (%p836) target = $region48
      $region47: #{_lambda_.1} parent=11 // pred_region
        _
      $region48: #{_lambda_.1} parent=11 // pred_fallthru
        _
      // Predicated region
      $region49: #{_lambda_.1} parent=11 // pred_check
        %p839 = pneg %p309
      $region50: #{_lambda_.1} parent=11 // pred_check_branch
        %841 = sbr.rel (%p839) target = $region52
      $region51: #{_lambda_.1} parent=11 // pred_region
        _
      $region52: #{_lambda_.1} parent=11 // pred_fallthru
        _
      // Predicated region
      $region53: #{_lambda_.1} parent=11 // pred_check
        %p842 = pneg %p330
      $region54: #{_lambda_.1} parent=11 // pred_check_branch
        %844 = sbr.rel (%p842) target = $region56
      $region55: #{_lambda_.1} parent=11 // pred_region
        _
      $region56: #{_lambda_.1} parent=11 // pred_fallthru
        _
      // Predicated region
      $region57: #{_lambda_.1} parent=11 // pred_check
        %p845 = pneg %p351
      $region58: #{_lambda_.1} parent=11 // pred_check_branch
        %847 = sbr.rel (%p845) target = $region60
      $region59: #{_lambda_.1} parent=11 // pred_region
        _
      $region60: #{_lambda_.1} parent=11 // pred_fallthru
        _
      // Predicated region
      $region61: #{_lambda_.1} parent=11 // pred_check
        %p848 = pneg %p372
      $region62: #{_lambda_.1} parent=11 // pred_check_branch
        %850 = sbr.rel (%p848) target = $region64
      $region63: #{_lambda_.1} parent=11 // pred_region
        _
      $region64: #{_lambda_.1} parent=11 // pred_fallthru
        _
      // Predicated region
      $region65: #{_lambda_.1} parent=11 // pred_check
        %p851 = pneg %p393
      $region66: #{_lambda_.1} parent=11 // pred_check_branch
        %853 = sbr.rel (%p851) target = $region68
      $region67: #{_lambda_.1} parent=11 // pred_region
        _
      $region68: #{_lambda_.1} parent=11 // pred_fallthru
        _
      // Predicated region
      $region69: #{_lambda_.1} parent=11 // pred_check
        %p854 = pneg %p414
      $region70: #{_lambda_.1} parent=11 // pred_check_branch
        %856 = sbr.rel (%p854) target = $region72
      $region71: #{_lambda_.1} parent=11 // pred_region
        _
      $region72: #{_lambda_.1} parent=11 // pred_fallthru
        _
      // Predicated region
      $region73: #{_lambda_.1} parent=11 // pred_check
        %p857 = pneg %p435
      $region74: #{_lambda_.1} parent=11 // pred_check_branch
        %859 = sbr.rel (%p857) target = $region76
      $region75: #{_lambda_.1} parent=11 // pred_region
        _
      $region76: #{_lambda_.1} parent=11 // pred_fallthru
        _
      // Predicated region
      $region77: #{_lambda_.1} parent=11 // pred_check
        %p860 = pneg %p456
      $region78: #{_lambda_.1} parent=11 // pred_check_branch
        %862 = sbr.rel (%p860) target = $region80
      $region79: #{_lambda_.1} parent=11 // pred_region
        _
      $region80: #{_lambda_.1} parent=11 // pred_fallthru
        _
      // Predicated region
      $region81: #{_lambda_.1} parent=11 // pred_check
        %p863 = pneg %p477
      $region82: #{_lambda_.1} parent=11 // pred_check_branch
        %865 = sbr.rel (%p863) target = $region84
      $region83: #{_lambda_.1} parent=11 // pred_region
        _
      $region84: #{_lambda_.1} parent=11 // pred_fallthru
        _
      // Predicated region
      $region85: #{_lambda_.1} parent=11 // pred_check
        %p866 = pneg %p498
      $region86: #{_lambda_.1} parent=11 // pred_check_branch
        %868 = sbr.rel (%p866) target = $region88
      $region87: #{_lambda_.1} parent=11 // pred_region
        _
      $region88: #{_lambda_.1} parent=11 // pred_fallthru
        _
      // Predicated region
      $region89: #{_lambda_.1} parent=11 // pred_check
        %p869 = pneg %p519
      $region90: #{_lambda_.1} parent=11 // pred_check_branch
        %871 = sbr.rel (%p869) target = $region92
      $region91: #{_lambda_.1} parent=11 // pred_region
        _
      $region92: #{_lambda_.1} parent=11 // pred_fallthru
        _
      // Predicated region
      $region93: #{_lambda_.1} parent=11 // pred_check
        %p872 = pneg %p540
      $region94: #{_lambda_.1} parent=11 // pred_check_branch
        %874 = sbr.rel (%p872) target = $region96
      $region95: #{_lambda_.1} parent=11 // pred_region
        _
      $region96: #{_lambda_.1} parent=11 // pred_fallthru
        _
      // Predicated region
      $region97: #{_lambda_.1} parent=11 // pred_check
        %p875 = pneg %p561
      $region98: #{_lambda_.1} parent=11 // pred_check_branch
        %877 = sbr.rel (%p875) target = $region100
      $region99: #{_lambda_.1} parent=11 // pred_region
        _
      $region100: #{_lambda_.1} parent=11 // pred_fallthru
        _
      // Predicated region
      $region101: #{_lambda_.1} parent=11 // pred_check
        %p878 = pneg %p582
      $region102: #{_lambda_.1} parent=11 // pred_check_branch
        %880 = sbr.rel (%p878) target = $region104
      $region103: #{_lambda_.1} parent=11 // pred_region
        _
      $region104: #{_lambda_.1} parent=11 // pred_fallthru
        _
      // Predicated region
      $region105: #{_lambda_.1} parent=11 // pred_check
        %p881 = pneg %p603
      $region106: #{_lambda_.1} parent=11 // pred_check_branch
        %883 = sbr.rel (%p881) target = $region108
      $region107: #{_lambda_.1} parent=11 // pred_region
        _
      $region108: #{_lambda_.1} parent=11 // pred_fallthru
        _
      // Predicated region
      $region109: #{_lambda_.1} parent=11 // pred_check
        %p884 = pneg %p624
      $region110: #{_lambda_.1} parent=11 // pred_check_branch
        %886 = sbr.rel (%p884) target = $region112
      $region111: #{_lambda_.1} parent=11 // pred_region
        _
      $region112: #{_lambda_.1} parent=11 // pred_fallthru
        _
      // Predicated region
      $region113: #{_lambda_.1} parent=11 // pred_check
        %p887 = pneg %p645
      $region114: #{_lambda_.1} parent=11 // pred_check_branch
        %889 = sbr.rel (%p887) target = $region116
      $region115: #{_lambda_.1} parent=11 // pred_region
        _
      $region116: #{_lambda_.1} parent=11 // pred_fallthru
        _
      // Predicated region
      $region117: #{_lambda_.1} parent=11 // pred_check
        %p890 = pneg %p666
      $region118: #{_lambda_.1} parent=11 // pred_check_branch
        %892 = sbr.rel (%p890) target = $region120
      $region119: #{_lambda_.1} parent=11 // pred_region
        _
      $region120: #{_lambda_.1} parent=11 // pred_fallthru
        _
      // Predicated region
      $region121: #{_lambda_.1} parent=11 // pred_check
        %p893 = pneg %p687
      $region122: #{_lambda_.1} parent=11 // pred_check_branch
        %895 = sbr.rel (%p893) target = $region124
      $region123: #{_lambda_.1} parent=11 // pred_region
        _
      $region124: #{_lambda_.1} parent=11 // pred_fallthru
        _
      // Predicated region
      $region125: #{_lambda_.1} parent=11 // pred_check
        %p896 = pneg %p708
      $region126: #{_lambda_.1} parent=11 // pred_check_branch
        %898 = sbr.rel (%p896) target = $region128
      $region127: #{_lambda_.1} parent=11 // pred_region
        _
      $region128: #{_lambda_.1} parent=11 // pred_fallthru
        _
      // Predicated region
      $region129: #{_lambda_.1} parent=11 // pred_check
        %p899 = pneg %p729
      $region130: #{_lambda_.1} parent=11 // pred_check_branch
        %901 = sbr.rel (%p899) target = $region132
      $region131: #{_lambda_.1} parent=11 // pred_region
        _
      $region132: #{_lambda_.1} parent=11 // pred_fallthru
        _
      // Predicated region
      $region133: #{_lambda_.1} parent=11 // pred_check
        %p902 = pneg %p750
      $region134: #{_lambda_.1} parent=11 // pred_check_branch
        %904 = sbr.rel (%p902) target = $region136
      $region135: #{_lambda_.1} parent=11 // pred_region
        _
      $region136: #{_lambda_.1} parent=11 // pred_fallthru
        _
      // Predicated region
      $region137: #{_lambda_.1} parent=11 // pred_check
        %p905 = pneg %p771
      $region138: #{_lambda_.1} parent=11 // pred_check_branch
        %907 = sbr.rel (%p905) target = $region140
      $region139: #{_lambda_.1} parent=11 // pred_region
        _
      $region140: #{_lambda_.1} parent=11 // pred_fallthru
        _
    $region12: #{_lambda_.1} parent=5 // pred_fallthru
      _
    %p908 = scmp.lt.s32.totalorder %s73, 2
    // Predicated region
    $region141: #{_lambda_.1} parent=5 // pred_check
      %p909 = pneg %p908
    $region142: #{_lambda_.1} parent=5 // pred_check_branch
      %911 = sbr.rel (%p909) target = $region144
    $region143: #{_lambda_.1} parent=5 // pred_region
      // Predicated region
      $region145: #{_lambda_.1} parent=143 // pred_check
        %p912 = pneg %p93
      $region146: #{_lambda_.1} parent=143 // pred_check_branch
        %914 = sbr.rel (%p912) target = $region148
      $region147: #{_lambda_.1} parent=143 // pred_region
        %p915 = scmp.lt.s32.totalorder %s73, 1
        %s916 = scalar_select %p915, %s73, 1
        %s917 = smul.addr %s916, 2
        %s918 = smul.addr %s917, 4
        %s919 = scalar_lea.vmem %s1, %s918
      $region148: #{_lambda_.1} parent=143 // pred_fallthru
        _
    $region144: #{_lambda_.1} parent=5 // pred_fallthru
      _
    %p920 = scmp.le.s32.totalorder 1, %s73
    %p921 = scmp.lt.s32.totalorder %s73, 3
    %p922 = pnand %p920, %p921
    %p923 = pneg %p922
    // Predicated region
    $region149: #{_lambda_.1} parent=5 // pred_check
      _
    $region150: #{_lambda_.1} parent=5 // pred_check_branch
      %925 = sbr.rel (%p922) target = $region152
    $region151: #{_lambda_.1} parent=5 // pred_region
      %s926 = ssub.s32 %s73, 1
      %p927 = scmp.lt.s32.totalorder %s78, 1
      %s928 = scalar_select %p927, %s78, 1
      %s929 = smul.addr %s928, 2
      %s930 = smul.addr %s929, 4
      %s931 = scalar_lea.vmem %s1, %s930
      %p932 = pneg %p99
      %p933 = pneg %p96
      %p934 = pneg %p120
      %p935 = pneg %p117
      %p936 = pneg %p141
      %p937 = pneg %p138
      %p938 = pneg %p162
      %p939 = pneg %p159
      %p940 = pneg %p183
      %p941 = pneg %p180
      %p942 = pneg %p204
      %p943 = pneg %p201
      %p944 = pneg %p225
      %p945 = pneg %p222
      %p946 = pneg %p246
      %p947 = pneg %p243
      %p948 = pneg %p267
      %p949 = pneg %p264
      %p950 = pneg %p288
      %p951 = pneg %p285
      %p952 = pneg %p309
      %p953 = pneg %p306
      %p954 = pneg %p330
      %p955 = pneg %p327
      %p956 = pneg %p351
      %p957 = pneg %p348
      %p958 = pneg %p372
      %p959 = pneg %p369
      %p960 = pneg %p393
      %p961 = pneg %p390
      %p962 = pneg %p414
      %p963 = pneg %p411
      %p964 = pneg %p435
      %p965 = pneg %p432
      %p966 = pneg %p456
      %p967 = pneg %p453
      %p968 = pneg %p477
      %p969 = pneg %p474
      %p970 = pneg %p498
      %p971 = pneg %p495
      %p972 = pneg %p519
      %p973 = pneg %p516
      %p974 = pneg %p540
      %p975 = pneg %p537
      %p976 = pneg %p561
      %p977 = pneg %p558
      %p978 = pneg %p582
      %p979 = pneg %p579
      %p980 = pneg %p603
      %p981 = pneg %p600
      %p982 = pneg %p624
      %p983 = pneg %p621
      %p984 = pneg %p645
      %p985 = pneg %p642
      %p986 = pneg %p666
      %p987 = pneg %p663
      %p988 = pneg %p687
      %p989 = pneg %p684
      %p990 = pneg %p708
      %p991 = pneg %p705
      %p992 = pneg %p729
      %p993 = pneg %p726
      %p994 = pneg %p750
      %p995 = pneg %p747
      %p996 = pneg %p771
      %p997 = pneg %p768
      %p998 = pneg %p797
      %p999 = pneg %p794
      %p1000 = scmp.lt.s32.totalorder %s78, 1
      %s1001 = scalar_select %p1000, %s78, 1
      %s1002 = smul.addr %s1001, 8
      %s1003 = scalar_lea.vmem %s67, %s1002
      %p1004 = scmp.lt.s32.totalorder %s78, 1
      %s1005 = scalar_select %p1004, %s78, 1
      %s1006 = smul.addr %s1005, 2
      %s1007 = smul.addr %s1006, 4
      %s1008 = scalar_lea.vmem %s1, %s1007
      %p1009 = scmp.lt.s32.totalorder %s78, 1
      %s1010 = scalar_select %p1009, %s78, 1
      %s1011 = smul.addr %s1010, 8
      %s1012 = scalar_lea.vmem %s67, %s1011
      %v1013 = vld [vmem:[%s1008] sm:$0xff]
      %v1014 = vld [vmem:[%s3] sm:$0xff]
      %v1015 = vld [vmem:[%s5] sm:$0xff]
      %v1017 = vcombine.high %v1013, %v1013
      %vm1019 = vcmask 1043456
      %v1020 = vsel %vm1019, %v1013, 0.0
      %v1021 = vsel %vm1019, %v1017, 0.0
      %v1022 = vadd.f32 %v1020, %v1021
      %1023 = vadd.xlane.f32.xlu0 %v1022
      %v1024 = vpop.xlane.xlu0 %1023
      %v1025 = vsel %vm1019, %v1024, 0.0
      %v1026 = vrot.slane %v1025, 4
      %v1027 = vadd.f32 %v1025, %v1026
      %v1028 = vrot.slane %v1027, 2
      %v1029 = vadd.f32 %v1027, %v1028
      %v1030 = vrot.slane %v1029, 1
      %v1031 = vadd.f32 %v1029, %v1030
      %v1032 = vrcp.pop 1024.0
      %v1033 = vmul.f32 %v1031, %v1032
      %v1034 = vsub.f32 %v1013, %v1033
      %v1035 = vmul.f32 %v1034, %v1034
      %v1037 = vcombine.high %v1035, %v1035
      %v1039 = vsel %vm1019, %v1035, 0.0
      %v1040 = vsel %vm1019, %v1037, 0.0
      %v1041 = vadd.f32 %v1039, %v1040
      %1042 = vadd.xlane.f32.xlu0 %v1041
      %v1043 = vpop.xlane.xlu0 %1042
      %v1044 = vsel %vm1019, %v1043, 0.0
      %v1045 = vrot.slane %v1044, 4
      %v1046 = vadd.f32 %v1044, %v1045
      %v1047 = vrot.slane %v1046, 2
      %v1048 = vadd.f32 %v1046, %v1047
      %v1049 = vrot.slane %v1048, 1
      %v1050 = vadd.f32 %v1048, %v1049
      %v1051 = vmul.f32 %v1050, %v1032
      %v1052 = vadd.f32 %v1051, 1e-05
      %v1053 = vrsqrt.pop %v1052
      %v1054 = vmul.f32 %v1034, %v1053
      %v1055 = vmul.f32 %v1054, %v1014
      %v1056 = vadd.f32 %v1055, %v1015
      %v1057 = vld [vmem:[%s11] sm:$0xf]
      %v1058 = vld [vmem:[%s11 + $0x4] sm:$0xf]
      %v1059 = vld [vmem:[%s11 + $0x8] sm:$0xf]
      %v1060 = vld [vmem:[%s11 + $0xc] sm:$0xf]
      %1062 = vset.pattern.permute.xlu0 0
      %1063 = vperm.xlu0 %1062, %v1057
      %v1064 = vpop.permute.xlu0 %1063
      %v1067 = vlaneseq
      %v1068 = vshrl.u32 %v1067, 7
      %v1069 = vsub.s32 0, %v1068
      %v1070 = vrot.slane %v1056, %v1069
      %v1071 = vlaneseq
      %v1072 = vshrl.u32 %v1071, 7
      %v1073 = vsub.s32 4, %v1072
      %v1074 = vrot.slane %v1056, %v1073
      %v1077 = vlaneseq
      %v1078 = vshrl.u32 %v1077, 7
      %v1079 = vsub.s32 0, %v1078
      %v1080 = vrot.slane %v1070, %v1079
      %v1081 = vlaneseq
      %v1082 = vshrl.u32 %v1081, 7
      %v1083 = vsub.s32 0, %v1082
      %v1084 = vrot.slane %v1074, %v1083
      %v1085 = vmul.f32 %v1064, %v1080
      %v1086 = vmul.f32 %v1064, %v1084
      %1088 = vset.pattern.permute.xlu0 0
      %1089 = vperm.xlu0 %1088, %v1058
      %v1090 = vpop.permute.xlu0 %1089
      %v1092 = vlaneseq
      %v1093 = vshrl.u32 %v1092, 7
      %v1094 = vsub.s32 1, %v1093
      %v1095 = vrot.slane %v1056, %v1094
      %v1096 = vlaneseq
      %v1097 = vshrl.u32 %v1096, 7
      %v1098 = vsub.s32 5, %v1097
      %v1099 = vrot.slane %v1056, %v1098
      %v1102 = vlaneseq
      %v1103 = vshrl.u32 %v1102, 7
      %v1104 = vsub.s32 1, %v1103
      %v1105 = vrot.slane %v1095, %v1104
      %v1106 = vlaneseq
      %v1107 = vshrl.u32 %v1106, 7
      %v1108 = vsub.s32 1, %v1107
      %v1109 = vrot.slane %v1099, %v1108
      %v1110 = vmul.f32 %v1090, %v1105
      %v1111 = vmul.f32 %v1090, %v1109
      %v1112 = vadd.f32 %v1085, %v1110
      %v1113 = vadd.f32 %v1086, %v1111
      %1115 = vset.pattern.permute.xlu0 0
      %1116 = vperm.xlu0 %1115, %v1059
      %v1117 = vpop.permute.xlu0 %1116
      %v1119 = vlaneseq
      %v1120 = vshrl.u32 %v1119, 7
      %v1121 = vsub.s32 2, %v1120
      %v1122 = vrot.slane %v1056, %v1121
      %v1123 = vlaneseq
      %v1124 = vshrl.u32 %v1123, 7
      %v1125 = vsub.s32 6, %v1124
      %v1126 = vrot.slane %v1056, %v1125
      %v1129 = vlaneseq
      %v1130 = vshrl.u32 %v1129, 7
      %v1131 = vsub.s32 2, %v1130
      %v1132 = vrot.slane %v1122, %v1131
      %v1133 = vlaneseq
      %v1134 = vshrl.u32 %v1133, 7
      %v1135 = vsub.s32 2, %v1134
      %v1136 = vrot.slane %v1126, %v1135
      %v1137 = vmul.f32 %v1117, %v1132
      %v1138 = vmul.f32 %v1117, %v1136
      %v1139 = vadd.f32 %v1112, %v1137
      %v1140 = vadd.f32 %v1113, %v1138
      %1142 = vset.pattern.permute.xlu0 0
      %1143 = vperm.xlu0 %1142, %v1060
      %v1144 = vpop.permute.xlu0 %1143
      %v1146 = vlaneseq
      %v1147 = vshrl.u32 %v1146, 7
      %v1148 = vsub.s32 3, %v1147
      %v1149 = vrot.slane %v1056, %v1148
      %v1150 = vlaneseq
      %v1151 = vshrl.u32 %v1150, 7
      %v1152 = vsub.s32 7, %v1151
      %v1153 = vrot.slane %v1056, %v1152
      %v1156 = vlaneseq
      %v1157 = vshrl.u32 %v1156, 7
      %v1158 = vsub.s32 3, %v1157
      %v1159 = vrot.slane %v1149, %v1158
      %v1160 = vlaneseq
      %v1161 = vshrl.u32 %v1160, 7
      %v1162 = vsub.s32 3, %v1161
      %v1163 = vrot.slane %v1153, %v1162
      %v1164 = vmul.f32 %v1144, %v1159
      %v1165 = vmul.f32 %v1144, %v1163
      %v1166 = vadd.f32 %v1139, %v1164
      %v1167 = vadd.f32 %v1140, %v1165
      %v1168 = vld [vmem:[%s7] sm:$0xff]
      %v1169 = vld [vmem:[%s9] sm:$0xff]
      %v1170 = vsel %vm1019, %v1166, 0.0
      %v1171 = vsel %vm1019, %v1167, 0.0
      %v1172 = vadd.f32 %v1170, %v1171
      %1173 = vadd.xlane.f32.xlu0 %v1172
      %v1174 = vpop.xlane.xlu0 %1173
      %v1175 = vsel %vm1019, %v1174, 0.0
      %v1176 = vrot.slane %v1175, 4
      %v1177 = vadd.f32 %v1175, %v1176
      %v1178 = vrot.slane %v1177, 2
      %v1179 = vadd.f32 %v1177, %v1178
      %v1180 = vrot.slane %v1179, 1
      %v1181 = vadd.f32 %v1179, %v1180
      %v1182 = vmul.f32 %v1181, %v1032
      %v1183 = vsub.f32 %v1166, %v1182
      %v1184 = vsub.f32 %v1167, %v1182
      %v1185 = vmul.f32 %v1183, %v1183
      %v1186 = vmul.f32 %v1184, %v1184
      %v1187 = vsel %vm1019, %v1185, 0.0
      %v1188 = vsel %vm1019, %v1186, 0.0
      %v1189 = vadd.f32 %v1187, %v1188
      %1190 = vadd.xlane.f32.xlu0 %v1189
      %v1191 = vpop.xlane.xlu0 %1190
      %v1192 = vsel %vm1019, %v1191, 0.0
      %v1193 = vrot.slane %v1192, 4
      %v1194 = vadd.f32 %v1192, %v1193
      %v1195 = vrot.slane %v1194, 2
      %v1196 = vadd.f32 %v1194, %v1195
      %v1197 = vrot.slane %v1196, 1
      %v1198 = vadd.f32 %v1196, %v1197
      %v1199 = vmul.f32 %v1198, %v1032
      %v1200 = vadd.f32 %v1199, 1e-05
      %v1201 = vrsqrt.pop %v1200
      %v1202 = vmul.f32 %v1183, %v1201
      %v1203 = vmul.f32 %v1184, %v1201
      %v1205 = vcombine.high %v1168, %v1168
      %v1207 = vmul.f32 %v1202, %v1168
      %v1208 = vmul.f32 %v1203, %v1205
      %v1210 = vcombine.high %v1169, %v1169
      %v1212 = vadd.f32 %v1207, %v1169
      %v1213 = vadd.f32 %v1208, %v1210
      %v1214 = vld [vmem:[%s13] sm:$0xf]
      %v1215 = vld [vmem:[%s13 + $0x4] sm:$0xf]
      %v1216 = vld [vmem:[%s13 + $0x8] sm:$0xf]
      %v1217 = vld [vmem:[%s13 + $0xc] sm:$0xf]
      %1219 = vset.pattern.permute.xlu0 0
      %1220 = vperm.xlu0 %1219, %v1214
      %v1221 = vpop.permute.xlu0 %1220
      %v1223 = vlaneseq
      %v1224 = vshrl.u32 %v1223, 7
      %v1225 = vsub.s32 0, %v1224
      %v1226 = vrot.slane %v1212, %v1225
      %v1227 = vlaneseq
      %v1228 = vshrl.u32 %v1227, 7
      %v1229 = vsub.s32 0, %v1228
      %v1230 = vrot.slane %v1213, %v1229
      %v1231 = vmul.f32 %v1221, %v1226
      %v1232 = vmul.f32 %v1221, %v1230
      %v1235 = vcombine.low %v1231, %v1232
      %v1237 = vadd.f32 %v1013, %v1235
      %1239 = vset.pattern.permute.xlu0 0
      %1240 = vperm.xlu0 %1239, %v1215
      %v1241 = vpop.permute.xlu0 %1240
      %v1243 = vlaneseq
      %v1244 = vshrl.u32 %v1243, 7
      %v1245 = vsub.s32 1, %v1244
      %v1246 = vrot.slane %v1212, %v1245
      %v1247 = vlaneseq
      %v1248 = vshrl.u32 %v1247, 7
      %v1249 = vsub.s32 1, %v1248
      %v1250 = vrot.slane %v1213, %v1249
      %v1251 = vmul.f32 %v1241, %v1246
      %v1252 = vmul.f32 %v1241, %v1250
      %v1255 = vcombine.low %v1251, %v1252
      %v1257 = vadd.f32 %v1237, %v1255
      %1259 = vset.pattern.permute.xlu0 0
      %1260 = vperm.xlu0 %1259, %v1216
      %v1261 = vpop.permute.xlu0 %1260
      %v1263 = vlaneseq
      %v1264 = vshrl.u32 %v1263, 7
      %v1265 = vsub.s32 2, %v1264
      %v1266 = vrot.slane %v1212, %v1265
      %v1267 = vlaneseq
      %v1268 = vshrl.u32 %v1267, 7
      %v1269 = vsub.s32 2, %v1268
      %v1270 = vrot.slane %v1213, %v1269
      %v1271 = vmul.f32 %v1261, %v1266
      %v1272 = vmul.f32 %v1261, %v1270
      %v1275 = vcombine.low %v1271, %v1272
      %v1277 = vadd.f32 %v1257, %v1275
      %1279 = vset.pattern.permute.xlu0 0
      %1280 = vperm.xlu0 %1279, %v1217
      %v1281 = vpop.permute.xlu0 %1280
      %v1283 = vlaneseq
      %v1284 = vshrl.u32 %v1283, 7
      %v1285 = vsub.s32 3, %v1284
      %v1286 = vrot.slane %v1212, %v1285
      %v1287 = vlaneseq
      %v1288 = vshrl.u32 %v1287, 7
      %v1289 = vsub.s32 3, %v1288
      %v1290 = vrot.slane %v1213, %v1289
      %v1291 = vmul.f32 %v1281, %v1286
      %v1292 = vmul.f32 %v1281, %v1290
      %v1295 = vcombine.low %v1291, %v1292
      %v1297 = vadd.f32 %v1277, %v1295
      %v1298 = vld [vmem:[%s15] sm:$0x3f]
      %v1299 = vld [vmem:[%s15 + $0x8] sm:$0x3f]
      %v1300 = vld [vmem:[%s15 + $0x10] sm:$0x3f]
      %v1301 = vld [vmem:[%s15 + $0x18] sm:$0x3f]
      %v1302 = vld [vmem:[%s15 + $0x20] sm:$0x3f]
      %v1303 = vld [vmem:[%s15 + $0x28] sm:$0x3f]
      %v1304 = vld [vmem:[%s15 + $0x30] sm:$0x3f]
      %v1305 = vld [vmem:[%s15 + $0x38] sm:$0x3f]
      %v1307 = vlaneseq
      %v1308 = vshrl.u32 %v1307, 7
      %v1309 = vsub.s32 0, %v1308
      %v1310 = vrot.slane %v1297, %v1309
      %v1311 = vlaneseq
      %v1312 = vshrl.u32 %v1311, 7
      %v1313 = vsub.s32 4, %v1312
      %v1314 = vrot.slane %v1297, %v1313
      %v1317 = vlaneseq
      %v1318 = vshrl.u32 %v1317, 7
      %v1319 = vsub.s32 0, %v1318
      %v1320 = vrot.slane %v1310, %v1319
      %v1321 = vlaneseq
      %v1322 = vshrl.u32 %v1321, 7
      %v1323 = vsub.s32 0, %v1322
      %v1324 = vrot.slane %v1314, %v1323
      %v1325 = vmul.f32 %v1298, %v1320
      %v1326 = vmul.f32 %v1299, %v1324
      %v1327 = vlaneseq
      %v1328 = vshrl.u32 %v1327, 7
      %v1329 = vsub.s32 1, %v1328
      %v1330 = vrot.slane %v1297, %v1329
      %v1331 = vlaneseq
      %v1332 = vshrl.u32 %v1331, 7
      %v1333 = vsub.s32 5, %v1332
      %v1334 = vrot.slane %v1297, %v1333
      %v1337 = vlaneseq
      %v1338 = vshrl.u32 %v1337, 7
      %v1339 = vsub.s32 1, %v1338
      %v1340 = vrot.slane %v1330, %v1339
      %v1341 = vlaneseq
      %v1342 = vshrl.u32 %v1341, 7
      %v1343 = vsub.s32 1, %v1342
      %v1344 = vrot.slane %v1334, %v1343
      %v1345 = vmul.f32 %v1300, %v1340
      %v1346 = vmul.f32 %v1301, %v1344
      %v1347 = vadd.f32 %v1325, %v1345
      %v1348 = vadd.f32 %v1326, %v1346
      %v1349 = vlaneseq
      %v1350 = vshrl.u32 %v1349, 7
      %v1351 = vsub.s32 2, %v1350
      %v1352 = vrot.slane %v1297, %v1351
      %v1353 = vlaneseq
      %v1354 = vshrl.u32 %v1353, 7
      %v1355 = vsub.s32 6, %v1354
      %v1356 = vrot.slane %v1297, %v1355
      %v1359 = vlaneseq
      %v1360 = vshrl.u32 %v1359, 7
      %v1361 = vsub.s32 2, %v1360
      %v1362 = vrot.slane %v1352, %v1361
      %v1363 = vlaneseq
      %v1364 = vshrl.u32 %v1363, 7
      %v1365 = vsub.s32 2, %v1364
      %v1366 = vrot.slane %v1356, %v1365
      %v1367 = vmul.f32 %v1302, %v1362
      %v1368 = vmul.f32 %v1303, %v1366
      %v1369 = vadd.f32 %v1347, %v1367
      %v1370 = vadd.f32 %v1348, %v1368
      %v1371 = vlaneseq
      %v1372 = vshrl.u32 %v1371, 7
      %v1373 = vsub.s32 3, %v1372
      %v1374 = vrot.slane %v1297, %v1373
      %v1375 = vlaneseq
      %v1376 = vshrl.u32 %v1375, 7
      %v1377 = vsub.s32 7, %v1376
      %v1378 = vrot.slane %v1297, %v1377
      %v1381 = vlaneseq
      %v1382 = vshrl.u32 %v1381, 7
      %v1383 = vsub.s32 3, %v1382
      %v1384 = vrot.slane %v1374, %v1383
      %v1385 = vlaneseq
      %v1386 = vshrl.u32 %v1385, 7
      %v1387 = vsub.s32 3, %v1386
      %v1388 = vrot.slane %v1378, %v1387
      %v1389 = vmul.f32 %v1304, %v1384
      %v1390 = vmul.f32 %v1305, %v1388
      %v1391 = vadd.f32 %v1369, %v1389
      %v1392 = vadd.f32 %v1370, %v1390
      %v1393 = vld [vmem:[%s17] sm:$0xff]
      %v1394 = vld [vmem:[%s17 + $0x8] sm:$0xff]
      %v1395 = vld [vmem:[%s17 + $0x10] sm:$0xff]
      %v1396 = vld [vmem:[%s17 + $0x18] sm:$0xff]
      %v1397 = vld [vmem:[%s17 + $0x20] sm:$0xff]
      %v1398 = vld [vmem:[%s17 + $0x28] sm:$0xff]
      %v1399 = vld [vmem:[%s17 + $0x30] sm:$0xff]
      %v1400 = vld [vmem:[%s17 + $0x38] sm:$0xff]
      %v1401 = vld [vmem:[%s17 + $0x40] sm:$0xff]
      %v1402 = vld [vmem:[%s17 + $0x48] sm:$0xff]
      %v1403 = vld [vmem:[%s17 + $0x50] sm:$0xff]
      %v1404 = vld [vmem:[%s17 + $0x58] sm:$0xff]
      %v1405 = vld [vmem:[%s17 + $0x60] sm:$0xff]
      %v1406 = vld [vmem:[%s17 + $0x68] sm:$0xff]
      %v1407 = vld [vmem:[%s17 + $0x70] sm:$0xff]
      %v1408 = vld [vmem:[%s17 + $0x78] sm:$0xff]
      %v1409 = vld [vmem:[%s17 + $0x80] sm:$0xff]
      %v1410 = vld [vmem:[%s17 + $0x88] sm:$0xff]
      %v1411 = vld [vmem:[%s17 + $0x90] sm:$0xff]
      %v1412 = vld [vmem:[%s17 + $0x98] sm:$0xff]
      %v1413 = vld [vmem:[%s17 + $0xa0] sm:$0xff]
      %v1414 = vld [vmem:[%s17 + $0xa8] sm:$0xff]
      %v1415 = vld [vmem:[%s17 + $0xb0] sm:$0xff]
      %v1416 = vld [vmem:[%s17 + $0xb8] sm:$0xff]
      %v1417 = vld [vmem:[%s17 + $0xc0] sm:$0xff]
      %v1418 = vld [vmem:[%s17 + $0xc8] sm:$0xff]
      %v1419 = vld [vmem:[%s17 + $0xd0] sm:$0xff]
      %v1420 = vld [vmem:[%s17 + $0xd8] sm:$0xff]
      %v1421 = vld [vmem:[%s17 + $0xe0] sm:$0xff]
      %v1422 = vld [vmem:[%s17 + $0xe8] sm:$0xff]
      %v1423 = vld [vmem:[%s17 + $0xf0] sm:$0xff]
      %v1424 = vld [vmem:[%s17 + $0xf8] sm:$0xff]
      %1425 = vmatprep.subr.mxu0 0.0
      %1426 = vmatpush1.msra.mxu0 %v1408
      %1427 = vmatprep.subr.mxu0 0.0
      %1428 = vmatpush1.msra.mxu0 %v1407
      %1429 = vmatprep.subr.mxu0 0.0
      %1430 = vmatpush1.msra.mxu0 %v1406
      %1431 = vmatprep.subr.mxu0 0.0
      %1432 = vmatpush1.msra.mxu0 %v1405
      %1433 = vmatprep.subr.mxu0 0.0
      %1434 = vmatpush1.msra.mxu0 %v1404
      %1435 = vmatprep.subr.mxu0 0.0
      %1436 = vmatpush1.msra.mxu0 %v1403
      %1437 = vmatprep.subr.mxu0 0.0
      %1438 = vmatpush1.msra.mxu0 %v1402
      %1439 = vmatprep.subr.mxu0 0.0
      %1440 = vmatpush1.msra.mxu0 %v1401
      %1441 = vmatprep.subr.mxu0 0.0
      %1442 = vmatpush1.msra.mxu0 %v1400
      %1443 = vmatprep.subr.mxu0 0.0
      %1444 = vmatpush1.msra.mxu0 %v1399
      %1445 = vmatprep.subr.mxu0 0.0
      %1446 = vmatpush1.msra.mxu0 %v1398
      %1447 = vmatprep.subr.mxu0 0.0
      %1448 = vmatpush1.msra.mxu0 %v1397
      %1449 = vmatprep.subr.mxu0 0.0
      %1450 = vmatpush1.msra.mxu0 %v1396
      %1451 = vmatprep.subr.mxu0 0.0
      %1452 = vmatpush1.msra.mxu0 %v1395
      %1453 = vmatprep.subr.mxu0 0.0
      %1454 = vmatpush1.msra.mxu0 %v1394
      %1455 = vmatprep.subr.mxu0 0.0
      %1456 = vmatpush1.msra.mxu0 %v1393
      %1457 = vmatprep.subr.mxu0 0.0
      %1458 = vmatpush2.msra.mxu0 %v1424
      %1459 = vmatprep.subr.mxu0 0.0
      %1460 = vmatpush2.msra.mxu0 %v1423
      %1461 = vmatprep.subr.mxu0 0.0
      %1462 = vmatpush2.msra.mxu0 %v1422
      %1463 = vmatprep.subr.mxu0 0.0
      %1464 = vmatpush2.msra.mxu0 %v1421
      %1465 = vmatprep.subr.mxu0 0.0
      %1466 = vmatpush2.msra.mxu0 %v1420
      %1467 = vmatprep.subr.mxu0 0.0
      %1468 = vmatpush2.msra.mxu0 %v1419
      %1469 = vmatprep.subr.mxu0 0.0
      %1470 = vmatpush2.msra.mxu0 %v1418
      %1471 = vmatprep.subr.mxu0 0.0
      %1472 = vmatpush2.msra.mxu0 %v1417
      %1473 = vmatprep.subr.mxu0 0.0
      %1474 = vmatpush2.msra.mxu0 %v1416
      %1475 = vmatprep.subr.mxu0 0.0
      %1476 = vmatpush2.msra.mxu0 %v1415
      %1477 = vmatprep.subr.mxu0 0.0
      %1478 = vmatpush2.msra.mxu0 %v1414
      %1479 = vmatprep.subr.mxu0 0.0
      %1480 = vmatpush2.msra.mxu0 %v1413
      %1481 = vmatprep.subr.mxu0 0.0
      %1482 = vmatpush2.msra.mxu0 %v1412
      %1483 = vmatprep.subr.mxu0 0.0
      %1484 = vmatpush2.msra.mxu0 %v1411
      %1485 = vmatprep.subr.mxu0 0.0
      %1486 = vmatpush2.msra.mxu0 %v1410
      %1487 = vmatprep.subr.mxu0 0.0
      %1488 = vmatpush2.msra.mxu0 %v1409
      %1489 = vmatprep.mubr.f32.mxu0 %v1392
      %1490 = vmatmul.mubr.f32.gmra.mxu0 %v1391
      %v1491 = vpop.f32.mrf.mxu0
      %v1492 = vadd.f32 0.0, %v1491
      %v1493 = vpop.f32.mrf.mxu0
      %1494 = vdwg.mxu0
      %v1495 = vld [vmem:[%s19] sm:$0x3f]
      %v1496 = vld [vmem:[%s21] sm:$0x3f]
      %vm1497 = vcmask 660480
      %v1498 = vsel %vm1497, %v1492, 0.0
      %1499 = vadd.xlane.f32.xlu0 %v1498
      %v1500 = vpop.xlane.xlu0 %1499
      %vm1501 = vcmask 1045504
      %v1502 = vsel %vm1501, %v1500, 0.0
      %v1503 = vrot.slane %v1502, 4
      %v1504 = vadd.f32 %v1502, %v1503
      %v1505 = vrot.slane %v1504, 2
      %v1506 = vadd.f32 %v1504, %v1505
      %v1507 = vrot.slane %v1506, 1
      %v1508 = vadd.f32 %v1506, %v1507
      %v1509 = vrcp.pop 486.0
      %v1510 = vmul.f32 %v1508, %v1509
      %v1511 = vsub.f32 %v1492, %v1510
      %v1512 = vmul.f32 %v1511, %v1511
      %v1513 = vsel %vm1497, %v1512, 0.0
      %1514 = vadd.xlane.f32.xlu0 %v1513
      %v1515 = vpop.xlane.xlu0 %1514
      %v1516 = vsel %vm1501, %v1515, 0.0
      %v1517 = vrot.slane %v1516, 4
      %v1518 = vadd.f32 %v1516, %v1517
      %v1519 = vrot.slane %v1518, 2
      %v1520 = vadd.f32 %v1518, %v1519
      %v1521 = vrot.slane %v1520, 1
      %v1522 = vadd.f32 %v1520, %v1521
      %v1523 = vmul.f32 %v1522, %v1509
      %v1524 = vadd.f32 %v1523, 1e-05
      %v1525 = vrsqrt.pop %v1524
      %v1526 = vmul.f32 %v1511, %v1525
      %v1527 = vmul.f32 %v1526, %v1495
      %v1528 = vadd.f32 %v1527, %v1496
      %v1529 = vld [vmem:[%s27] sm:$0x3f]
      %v1530 = vld [vmem:[%s27 + $0x8] sm:$0x3f]
      %v1531 = vld [vmem:[%s27 + $0x10] sm:$0x3f]
      %v1532 = vld [vmem:[%s27 + $0x18] sm:$0x3f]
      %v1533 = vld [vmem:[%s27 + $0x20] sm:$0x3f]
      %v1534 = vld [vmem:[%s27 + $0x28] sm:$0x3f]
      %1536 = vset.pattern.permute.xlu0 0
      %1537 = vperm.xlu0 %1536, %v1529
      %v1538 = vpop.permute.xlu0 %1537
      %v1540 = vlaneseq
      %v1541 = vshrl.u32 %v1540, 7
      %v1542 = vsub.s32 0, %v1541
      %v1543 = vrot.slane %v1528, %v1542
      %v1544 = vmul.f32 %v1538, %v1543
      %1546 = vset.pattern.permute.xlu0 0
      %1547 = vperm.xlu0 %1546, %v1530
      %v1548 = vpop.permute.xlu0 %1547
      %v1550 = vlaneseq
      %v1551 = vshrl.u32 %v1550, 7
      %v1552 = vsub.s32 1, %v1551
      %v1553 = vrot.slane %v1528, %v1552
      %v1554 = vmul.f32 %v1548, %v1553
      %v1555 = vadd.f32 %v1544, %v1554
      %1557 = vset.pattern.permute.xlu0 0
      %1558 = vperm.xlu0 %1557, %v1531
      %v1559 = vpop.permute.xlu0 %1558
      %v1561 = vlaneseq
      %v1562 = vshrl.u32 %v1561, 7
      %v1563 = vsub.s32 2, %v1562
      %v1564 = vrot.slane %v1528, %v1563
      %v1565 = vmul.f32 %v1559, %v1564
      %v1566 = vadd.f32 %v1555, %v1565
      %1568 = vset.pattern.permute.xlu0 0
      %1569 = vperm.xlu0 %1568, %v1532
      %v1570 = vpop.permute.xlu0 %1569
      %v1572 = vlaneseq
      %v1573 = vshrl.u32 %v1572, 7
      %v1574 = vsub.s32 3, %v1573
      %v1575 = vrot.slane %v1528, %v1574
      %v1576 = vmul.f32 %v1570, %v1575
      %v1577 = vadd.f32 %v1566, %v1576
      %1579 = vset.pattern.permute.xlu0 0
      %1580 = vperm.xlu0 %1579, %v1533
      %v1581 = vpop.permute.xlu0 %1580
      %v1583 = vlaneseq
      %v1584 = vshrl.u32 %v1583, 7
      %v1585 = vsub.s32 4, %v1584
      %v1586 = vrot.slane %v1528, %v1585
      %v1587 = vmul.f32 %v1581, %v1586
      %v1588 = vadd.f32 %v1577, %v1587
      %1590 = vset.pattern.permute.xlu0 0
      %1591 = vperm.xlu0 %1590, %v1534
      %v1592 = vpop.permute.xlu0 %1591
      %v1594 = vlaneseq
      %v1595 = vshrl.u32 %v1594, 7
      %v1596 = vsub.s32 5, %v1595
      %v1597 = vrot.slane %v1528, %v1596
      %v1598 = vmul.f32 %v1592, %v1597
      %v1599 = vadd.f32 %v1588, %v1598
      %v1600 = vld [vmem:[%s23] sm:$0x3f]
      %v1601 = vld [vmem:[%s25] sm:$0x3f]
      %v1602 = vsel %vm1497, %v1599, 0.0
      %1603 = vadd.xlane.f32.xlu0 %v1602
      %v1604 = vpop.xlane.xlu0 %1603
      %v1605 = vsel %vm1501, %v1604, 0.0
      %v1606 = vrot.slane %v1605, 4
      %v1607 = vadd.f32 %v1605, %v1606
      %v1608 = vrot.slane %v1607, 2
      %v1609 = vadd.f32 %v1607, %v1608
      %v1610 = vrot.slane %v1609, 1
      %v1611 = vadd.f32 %v1609, %v1610
      %v1612 = vmul.f32 %v1611, %v1509
      %v1613 = vsub.f32 %v1599, %v1612
      %v1614 = vmul.f32 %v1613, %v1613
      %v1615 = vsel %vm1497, %v1614, 0.0
      %1616 = vadd.xlane.f32.xlu0 %v1615
      %v1617 = vpop.xlane.xlu0 %1616
      %v1618 = vsel %vm1501, %v1617, 0.0
      %v1619 = vrot.slane %v1618, 4
      %v1620 = vadd.f32 %v1618, %v1619
      %v1621 = vrot.slane %v1620, 2
      %v1622 = vadd.f32 %v1620, %v1621
      %v1623 = vrot.slane %v1622, 1
      %v1624 = vadd.f32 %v1622, %v1623
      %v1625 = vmul.f32 %v1624, %v1509
      %v1626 = vadd.f32 %v1625, 1e-05
      %v1627 = vrsqrt.pop %v1626
      %v1628 = vmul.f32 %v1613, %v1627
      %v1629 = vmul.f32 %v1628, %v1600
      %v1630 = vadd.f32 %v1629, %v1601
      %v1631 = vld [vmem:[%s29] sm:$0x3f]
      %v1632 = vld [vmem:[%s29 + $0x8] sm:$0x3f]
      %v1633 = vld [vmem:[%s29 + $0x10] sm:$0x3f]
      %v1634 = vld [vmem:[%s29 + $0x18] sm:$0x3f]
      %v1635 = vld [vmem:[%s29 + $0x20] sm:$0x3f]
      %v1636 = vld [vmem:[%s29 + $0x28] sm:$0x3f]
      %1638 = vset.pattern.permute.xlu0 0
      %1639 = vperm.xlu0 %1638, %v1631
      %v1640 = vpop.permute.xlu0 %1639
      %v1642 = vlaneseq
      %v1643 = vshrl.u32 %v1642, 7
      %v1644 = vsub.s32 0, %v1643
      %v1645 = vrot.slane %v1630, %v1644
      %v1646 = vmul.f32 %v1640, %v1645
      %v1647 = vadd.f32 %v1492, %v1646
      %1649 = vset.pattern.permute.xlu0 0
      %1650 = vperm.xlu0 %1649, %v1632
      %v1651 = vpop.permute.xlu0 %1650
      %v1653 = vlaneseq
      %v1654 = vshrl.u32 %v1653, 7
      %v1655 = vsub.s32 1, %v1654
      %v1656 = vrot.slane %v1630, %v1655
      %v1657 = vmul.f32 %v1651, %v1656
      %v1658 = vadd.f32 %v1647, %v1657
      %1660 = vset.pattern.permute.xlu0 0
      %1661 = vperm.xlu0 %1660, %v1633
      %v1662 = vpop.permute.xlu0 %1661
      %v1664 = vlaneseq
      %v1665 = vshrl.u32 %v1664, 7
      %v1666 = vsub.s32 2, %v1665
      %v1667 = vrot.slane %v1630, %v1666
      %v1668 = vmul.f32 %v1662, %v1667
      %v1669 = vadd.f32 %v1658, %v1668
      %1671 = vset.pattern.permute.xlu0 0
      %1672 = vperm.xlu0 %1671, %v1634
      %v1673 = vpop.permute.xlu0 %1672
      %v1675 = vlaneseq
      %v1676 = vshrl.u32 %v1675, 7
      %v1677 = vsub.s32 3, %v1676
      %v1678 = vrot.slane %v1630, %v1677
      %v1679 = vmul.f32 %v1673, %v1678
      %v1680 = vadd.f32 %v1669, %v1679
      %1682 = vset.pattern.permute.xlu0 0
      %1683 = vperm.xlu0 %1682, %v1635
      %v1684 = vpop.permute.xlu0 %1683
      %v1686 = vlaneseq
      %v1687 = vshrl.u32 %v1686, 7
      %v1688 = vsub.s32 4, %v1687
      %v1689 = vrot.slane %v1630, %v1688
      %v1690 = vmul.f32 %v1684, %v1689
      %v1691 = vadd.f32 %v1680, %v1690
      %1693 = vset.pattern.permute.xlu0 0
      %1694 = vperm.xlu0 %1693, %v1636
      %v1695 = vpop.permute.xlu0 %1694
      %v1697 = vlaneseq
      %v1698 = vshrl.u32 %v1697, 7
      %v1699 = vsub.s32 5, %v1698
      %v1700 = vrot.slane %v1630, %v1699
      %v1701 = vmul.f32 %v1695, %v1700
      %v1702 = vadd.f32 %v1691, %v1701
      %v1703 = vld [vmem:[%s31] sm:$0xff]
      %v1704 = vld [vmem:[%s31 + $0x8] sm:$0xff]
      %v1705 = vld [vmem:[%s31 + $0x10] sm:$0xff]
      %v1706 = vld [vmem:[%s31 + $0x18] sm:$0xff]
      %v1707 = vld [vmem:[%s31 + $0x20] sm:$0xff]
      %v1708 = vld [vmem:[%s31 + $0x28] sm:$0xff]
      %v1709 = vlaneseq
      %v1710 = vshrl.u32 %v1709, 7
      %v1711 = vsub.s32 0, %v1710
      %v1712 = vrot.slane %v1702, %v1711
      %v1713 = vmul.f32 %v1703, %v1712
      %v1714 = vlaneseq
      %v1715 = vshrl.u32 %v1714, 7
      %v1716 = vsub.s32 1, %v1715
      %v1717 = vrot.slane %v1702, %v1716
      %v1718 = vmul.f32 %v1704, %v1717
      %v1719 = vadd.f32 %v1713, %v1718
      %v1720 = vlaneseq
      %v1721 = vshrl.u32 %v1720, 7
      %v1722 = vsub.s32 2, %v1721
      %v1723 = vrot.slane %v1702, %v1722
      %v1724 = vmul.f32 %v1705, %v1723
      %v1725 = vadd.f32 %v1719, %v1724
      %v1726 = vlaneseq
      %v1727 = vshrl.u32 %v1726, 7
      %v1728 = vsub.s32 3, %v1727
      %v1729 = vrot.slane %v1702, %v1728
      %v1730 = vmul.f32 %v1706, %v1729
      %v1731 = vadd.f32 %v1725, %v1730
      %v1732 = vlaneseq
      %v1733 = vshrl.u32 %v1732, 7
      %v1734 = vsub.s32 4, %v1733
      %v1735 = vrot.slane %v1702, %v1734
      %v1736 = vmul.f32 %v1707, %v1735
      %v1737 = vadd.f32 %v1731, %v1736
      %v1738 = vlaneseq
      %v1739 = vshrl.u32 %v1738, 7
      %v1740 = vsub.s32 5, %v1739
      %v1741 = vrot.slane %v1702, %v1740
      %v1742 = vmul.f32 %v1708, %v1741
      %v1743 = vadd.f32 %v1737, %v1742
      %v1744 = vld [vmem:[%s33] sm:$0xff]
      %v1745 = vld [vmem:[%s33 + $0x8] sm:$0xff]
      %v1746 = vld [vmem:[%s33 + $0x10] sm:$0xff]
      %v1747 = vld [vmem:[%s33 + $0x18] sm:$0xff]
      %v1748 = vld [vmem:[%s33 + $0x20] sm:$0xff]
      %v1749 = vld [vmem:[%s33 + $0x28] sm:$0xff]
      %v1750 = vld [vmem:[%s33 + $0x30] sm:$0xff]
      %v1751 = vld [vmem:[%s33 + $0x38] sm:$0xff]
      %v1752 = vld [vmem:[%s33 + $0x40] sm:$0xff]
      %v1753 = vld [vmem:[%s33 + $0x48] sm:$0xff]
      %v1754 = vld [vmem:[%s33 + $0x50] sm:$0x1]
      %vm1755 = vcmask 662528
      %v1757 = vsel %vm1755, %v1743, 0
      %vm1759 = vcmask 1040384
      %v1761 = vsel %vm1759, %v1754, 0
      %1763 = vmatprep.subr.mxu0 0.0
      %1764 = vmatpush1.msra.mxu0 0.0
      %1765 = vmatprep.subr.mxu0 0.0
      %1766 = vmatpush1.msra.mxu0 0.0
      %1767 = vmatprep.subr.mxu0 0.0
      %1768 = vmatpush1.msra.mxu0 0.0
      %1769 = vmatprep.subr.mxu0 0.0
      %1770 = vmatpush1.msra.mxu0 0.0
      %1771 = vmatprep.subr.mxu0 0.0
      %1772 = vmatpush1.msra.mxu0 0.0
      %1773 = vmatprep.subr.mxu0 0.0
      %1774 = vmatpush1.msra.mxu0 %v1761
      %1775 = vmatprep.subr.mxu0 0.0
      %1776 = vmatpush1.msra.mxu0 %v1753
      %1777 = vmatprep.subr.mxu0 0.0
      %1778 = vmatpush1.msra.mxu0 %v1752
      %1779 = vmatprep.subr.mxu0 0.0
      %1780 = vmatpush1.msra.mxu0 %v1751
      %1781 = vmatprep.subr.mxu0 0.0
      %1782 = vmatpush1.msra.mxu0 %v1750
      %1783 = vmatprep.subr.mxu0 0.0
      %1784 = vmatpush1.msra.mxu0 %v1749
      %1785 = vmatprep.subr.mxu0 0.0
      %1786 = vmatpush1.msra.mxu0 %v1748
      %1787 = vmatprep.subr.mxu0 0.0
      %1788 = vmatpush1.msra.mxu0 %v1747
      %1789 = vmatprep.subr.mxu0 0.0
      %1790 = vmatpush1.msra.mxu0 %v1746
      %1791 = vmatprep.subr.mxu0 0.0
      %1792 = vmatpush1.msra.mxu0 %v1745
      %1793 = vmatprep.subr.mxu0 0.0
      %1794 = vmatpush1.msra.mxu0 %v1744
      %1795 = vmatprep.subr.mxu0 0.0
      %1796 = vmatpush2.msra.mxu0 0.0
      %1797 = vmatprep.subr.mxu0 0.0
      %1798 = vmatpush2.msra.mxu0 0.0
      %1799 = vmatprep.subr.mxu0 0.0
      %1800 = vmatpush2.msra.mxu0 0.0
      %1801 = vmatprep.subr.mxu0 0.0
      %1802 = vmatpush2.msra.mxu0 0.0
      %1803 = vmatprep.subr.mxu0 0.0
      %1804 = vmatpush2.msra.mxu0 0.0
      %1805 = vmatprep.subr.mxu0 0.0
      %1806 = vmatpush2.msra.mxu0 0.0
      %1807 = vmatprep.subr.mxu0 0.0
      %1808 = vmatpush2.msra.mxu0 0.0
      %1809 = vmatprep.subr.mxu0 0.0
      %1810 = vmatpush2.msra.mxu0 0.0
      %1811 = vmatprep.subr.mxu0 0.0
      %1812 = vmatpush2.msra.mxu0 0.0
      %1813 = vmatprep.subr.mxu0 0.0
      %1814 = vmatpush2.msra.mxu0 0.0
      %1815 = vmatprep.subr.mxu0 0.0
      %1816 = vmatpush2.msra.mxu0 0.0
      %1817 = vmatprep.subr.mxu0 0.0
      %1818 = vmatpush2.msra.mxu0 0.0
      %1819 = vmatprep.subr.mxu0 0.0
      %1820 = vmatpush2.msra.mxu0 0.0
      %1821 = vmatprep.subr.mxu0 0.0
      %1822 = vmatpush2.msra.mxu0 0.0
      %1823 = vmatprep.subr.mxu0 0.0
      %1824 = vmatpush2.msra.mxu0 0.0
      %1825 = vmatprep.subr.mxu0 0.0
      %1826 = vmatpush2.msra.mxu0 0.0
      %1827 = vmatprep.mubr.f32.mxu0 0.0
      %1828 = vmatmul.mubr.f32.gmra.mxu0 %v1757
      %v1829 = vpop.f32.mrf.mxu0
      %v1830 = vadd.f32 0.0, %v1829
      %v1831 = vpop.f32.mrf.mxu0
      %1832 = vdwg.mxu0
      %v1833 = vld [vmem:[%s35] sm:$0xff]
      %v1834 = vld [vmem:[%s37] sm:$0xff]
      %vm1835 = vcmask 203776
      %v1836 = vsel %vm1835, %v1830, 0.0
      %1837 = vadd.xlane.f32.xlu0 %v1836
      %v1838 = vpop.xlane.xlu0 %1837
      %v1839 = vrot.slane %v1838, 4
      %v1840 = vadd.f32 %v1838, %v1839
      %v1841 = vrot.slane %v1840, 2
      %v1842 = vadd.f32 %v1840, %v1841
      %v1843 = vrot.slane %v1842, 1
      %v1844 = vadd.f32 %v1842, %v1843
      %v1845 = vrcp.pop 200.0
      %v1846 = vmul.f32 %v1844, %v1845
      %v1847 = vsub.f32 %v1830, %v1846
      %v1848 = vmul.f32 %v1847, %v1847
      %v1849 = vsel %vm1835, %v1848, 0.0
      %1850 = vadd.xlane.f32.xlu0 %v1849
      %v1851 = vpop.xlane.xlu0 %1850
      %v1852 = vrot.slane %v1851, 4
      %v1853 = vadd.f32 %v1851, %v1852
      %v1854 = vrot.slane %v1853, 2
      %v1855 = vadd.f32 %v1853, %v1854
      %v1856 = vrot.slane %v1855, 1
      %v1857 = vadd.f32 %v1855, %v1856
      %v1858 = vmul.f32 %v1857, %v1845
      %v1859 = vadd.f32 %v1858, 1e-05
      %v1860 = vrsqrt.pop %v1859
      %v1861 = vmul.f32 %v1847, %v1860
      %v1862 = vmul.f32 %v1861, %v1833
      %v1863 = vadd.f32 %v1862, %v1834
      %v1864 = vld [vmem:[%s43] sm:$0xff]
      %v1865 = vld [vmem:[%s43 + $0x8] sm:$0xff]
      %v1866 = vld [vmem:[%s43 + $0x10] sm:$0xff]
      %v1867 = vld [vmem:[%s43 + $0x18] sm:$0xff]
      %v1868 = vld [vmem:[%s43 + $0x20] sm:$0xff]
      %v1869 = vld [vmem:[%s43 + $0x28] sm:$0xff]
      %v1870 = vld [vmem:[%s43 + $0x30] sm:$0xff]
      %v1871 = vld [vmem:[%s43 + $0x38] sm:$0xff]
      %1873 = vset.pattern.permute.xlu0 0
      %1874 = vperm.xlu0 %1873, %v1864
      %v1875 = vpop.permute.xlu0 %1874
      %v1877 = vlaneseq
      %v1878 = vshrl.u32 %v1877, 7
      %v1879 = vsub.s32 0, %v1878
      %v1880 = vrot.slane %v1863, %v1879
      %v1881 = vmul.f32 %v1875, %v1880
      %1883 = vset.pattern.permute.xlu0 0
      %1884 = vperm.xlu0 %1883, %v1865
      %v1885 = vpop.permute.xlu0 %1884
      %v1887 = vlaneseq
      %v1888 = vshrl.u32 %v1887, 7
      %v1889 = vsub.s32 1, %v1888
      %v1890 = vrot.slane %v1863, %v1889
      %v1891 = vmul.f32 %v1885, %v1890
      %v1892 = vadd.f32 %v1881, %v1891
      %1894 = vset.pattern.permute.xlu0 0
      %1895 = vperm.xlu0 %1894, %v1866
      %v1896 = vpop.permute.xlu0 %1895
      %v1898 = vlaneseq
      %v1899 = vshrl.u32 %v1898, 7
      %v1900 = vsub.s32 2, %v1899
      %v1901 = vrot.slane %v1863, %v1900
      %v1902 = vmul.f32 %v1896, %v1901
      %v1903 = vadd.f32 %v1892, %v1902
      %1905 = vset.pattern.permute.xlu0 0
      %1906 = vperm.xlu0 %1905, %v1867
      %v1907 = vpop.permute.xlu0 %1906
      %v1909 = vlaneseq
      %v1910 = vshrl.u32 %v1909, 7
      %v1911 = vsub.s32 3, %v1910
      %v1912 = vrot.slane %v1863, %v1911
      %v1913 = vmul.f32 %v1907, %v1912
      %v1914 = vadd.f32 %v1903, %v1913
      %1916 = vset.pattern.permute.xlu0 0
      %1917 = vperm.xlu0 %1916, %v1868
      %v1918 = vpop.permute.xlu0 %1917
      %v1920 = vlaneseq
      %v1921 = vshrl.u32 %v1920, 7
      %v1922 = vsub.s32 4, %v1921
      %v1923 = vrot.slane %v1863, %v1922
      %v1924 = vmul.f32 %v1918, %v1923
      %v1925 = vadd.f32 %v1914, %v1924
      %1927 = vset.pattern.permute.xlu0 0
      %1928 = vperm.xlu0 %1927, %v1869
      %v1929 = vpop.permute.xlu0 %1928
      %v1931 = vlaneseq
      %v1932 = vshrl.u32 %v1931, 7
      %v1933 = vsub.s32 5, %v1932
      %v1934 = vrot.slane %v1863, %v1933
      %v1935 = vmul.f32 %v1929, %v1934
      %v1936 = vadd.f32 %v1925, %v1935
      %1938 = vset.pattern.permute.xlu0 0
      %1939 = vperm.xlu0 %1938, %v1870
      %v1940 = vpop.permute.xlu0 %1939
      %v1942 = vlaneseq
      %v1943 = vshrl.u32 %v1942, 7
      %v1944 = vsub.s32 6, %v1943
      %v1945 = vrot.slane %v1863, %v1944
      %v1946 = vmul.f32 %v1940, %v1945
      %v1947 = vadd.f32 %v1936, %v1946
      %1949 = vset.pattern.permute.xlu0 0
      %1950 = vperm.xlu0 %1949, %v1871
      %v1951 = vpop.permute.xlu0 %1950
      %v1953 = vlaneseq
      %v1954 = vshrl.u32 %v1953, 7
      %v1955 = vsub.s32 7, %v1954
      %v1956 = vrot.slane %v1863, %v1955
      %v1957 = vmul.f32 %v1951, %v1956
      %v1958 = vadd.f32 %v1947, %v1957
      %v1959 = vld [vmem:[%s39] sm:$0xff]
      %v1960 = vld [vmem:[%s41] sm:$0xff]
      %v1961 = vsel %vm1835, %v1958, 0.0
      %1962 = vadd.xlane.f32.xlu0 %v1961
      %v1963 = vpop.xlane.xlu0 %1962
      %v1964 = vrot.slane %v1963, 4
      %v1965 = vadd.f32 %v1963, %v1964
      %v1966 = vrot.slane %v1965, 2
      %v1967 = vadd.f32 %v1965, %v1966
      %v1968 = vrot.slane %v1967, 1
      %v1969 = vadd.f32 %v1967, %v1968
      %v1970 = vmul.f32 %v1969, %v1845
      %v1971 = vsub.f32 %v1958, %v1970
      %v1972 = vmul.f32 %v1971, %v1971
      %v1973 = vsel %vm1835, %v1972, 0.0
      %1974 = vadd.xlane.f32.xlu0 %v1973
      %v1975 = vpop.xlane.xlu0 %1974
      %v1976 = vrot.slane %v1975, 4
      %v1977 = vadd.f32 %v1975, %v1976
      %v1978 = vrot.slane %v1977, 2
      %v1979 = vadd.f32 %v1977, %v1978
      %v1980 = vrot.slane %v1979, 1
      %v1981 = vadd.f32 %v1979, %v1980
      %v1982 = vmul.f32 %v1981, %v1845
      %v1983 = vadd.f32 %v1982, 1e-05
      %v1984 = vrsqrt.pop %v1983
      %v1985 = vmul.f32 %v1971, %v1984
      %v1986 = vmul.f32 %v1985, %v1959
      %v1987 = vadd.f32 %v1986, %v1960
      %v1988 = vld [vmem:[%s45] sm:$0xff]
      %v1989 = vld [vmem:[%s45 + $0x8] sm:$0xff]
      %v1990 = vld [vmem:[%s45 + $0x10] sm:$0xff]
      %v1991 = vld [vmem:[%s45 + $0x18] sm:$0xff]
      %v1992 = vld [vmem:[%s45 + $0x20] sm:$0xff]
      %v1993 = vld [vmem:[%s45 + $0x28] sm:$0xff]
      %v1994 = vld [vmem:[%s45 + $0x30] sm:$0xff]
      %v1995 = vld [vmem:[%s45 + $0x38] sm:$0xff]
      %1997 = vset.pattern.permute.xlu0 0
      %1998 = vperm.xlu0 %1997, %v1988
      %v1999 = vpop.permute.xlu0 %1998
      %v2001 = vlaneseq
      %v2002 = vshrl.u32 %v2001, 7
      %v2003 = vsub.s32 0, %v2002
      %v2004 = vrot.slane %v1987, %v2003
      %v2005 = vmul.f32 %v1999, %v2004
      %v2006 = vadd.f32 %v1830, %v2005
      %2008 = vset.pattern.permute.xlu0 0
      %2009 = vperm.xlu0 %2008, %v1989
      %v2010 = vpop.permute.xlu0 %2009
      %v2012 = vlaneseq
      %v2013 = vshrl.u32 %v2012, 7
      %v2014 = vsub.s32 1, %v2013
      %v2015 = vrot.slane %v1987, %v2014
      %v2016 = vmul.f32 %v2010, %v2015
      %v2017 = vadd.f32 %v2006, %v2016
      %2019 = vset.pattern.permute.xlu0 0
      %2020 = vperm.xlu0 %2019, %v1990
      %v2021 = vpop.permute.xlu0 %2020
      %v2023 = vlaneseq
      %v2024 = vshrl.u32 %v2023, 7
      %v2025 = vsub.s32 2, %v2024
      %v2026 = vrot.slane %v1987, %v2025
      %v2027 = vmul.f32 %v2021, %v2026
      %v2028 = vadd.f32 %v2017, %v2027
      %2030 = vset.pattern.permute.xlu0 0
      %2031 = vperm.xlu0 %2030, %v1991
      %v2032 = vpop.permute.xlu0 %2031
      %v2034 = vlaneseq
      %v2035 = vshrl.u32 %v2034, 7
      %v2036 = vsub.s32 3, %v2035
      %v2037 = vrot.slane %v1987, %v2036
      %v2038 = vmul.f32 %v2032, %v2037
      %v2039 = vadd.f32 %v2028, %v2038
      %2041 = vset.pattern.permute.xlu0 0
      %2042 = vperm.xlu0 %2041, %v1992
      %v2043 = vpop.permute.xlu0 %2042
      %v2045 = vlaneseq
      %v2046 = vshrl.u32 %v2045, 7
      %v2047 = vsub.s32 4, %v2046
      %v2048 = vrot.slane %v1987, %v2047
      %v2049 = vmul.f32 %v2043, %v2048
      %v2050 = vadd.f32 %v2039, %v2049
      %2052 = vset.pattern.permute.xlu0 0
      %2053 = vperm.xlu0 %2052, %v1993
      %v2054 = vpop.permute.xlu0 %2053
      %v2056 = vlaneseq
      %v2057 = vshrl.u32 %v2056, 7
      %v2058 = vsub.s32 5, %v2057
      %v2059 = vrot.slane %v1987, %v2058
      %v2060 = vmul.f32 %v2054, %v2059
      %v2061 = vadd.f32 %v2050, %v2060
      %2063 = vset.pattern.permute.xlu0 0
      %2064 = vperm.xlu0 %2063, %v1994
      %v2065 = vpop.permute.xlu0 %2064
      %v2067 = vlaneseq
      %v2068 = vshrl.u32 %v2067, 7
      %v2069 = vsub.s32 6, %v2068
      %v2070 = vrot.slane %v1987, %v2069
      %v2071 = vmul.f32 %v2065, %v2070
      %v2072 = vadd.f32 %v2061, %v2071
      %2074 = vset.pattern.permute.xlu0 0
      %2075 = vperm.xlu0 %2074, %v1995
      %v2076 = vpop.permute.xlu0 %2075
      %v2078 = vlaneseq
      %v2079 = vshrl.u32 %v2078, 7
      %v2080 = vsub.s32 7, %v2079
      %v2081 = vrot.slane %v1987, %v2080
      %v2082 = vmul.f32 %v2076, %v2081
      %v2083 = vadd.f32 %v2072, %v2082
      %v2084 = vld [vmem:[%s47] sm:$0xff]
      %v2085 = vld [vmem:[%s47 + $0x8] sm:$0xff]
      %v2086 = vld [vmem:[%s47 + $0x10] sm:$0xff]
      %v2087 = vld [vmem:[%s47 + $0x18] sm:$0xff]
      %v2088 = vld [vmem:[%s47 + $0x20] sm:$0xff]
      %v2089 = vld [vmem:[%s47 + $0x28] sm:$0xff]
      %v2090 = vld [vmem:[%s47 + $0x30] sm:$0xff]
      %v2091 = vld [vmem:[%s47 + $0x38] sm:$0xff]
      %v2092 = vlaneseq
      %v2093 = vshrl.u32 %v2092, 7
      %v2094 = vsub.s32 0, %v2093
      %v2095 = vrot.slane %v2083, %v2094
      %v2096 = vmul.f32 %v2084, %v2095
      %v2097 = vlaneseq
      %v2098 = vshrl.u32 %v2097, 7
      %v2099 = vsub.s32 1, %v2098
      %v2100 = vrot.slane %v2083, %v2099
      %v2101 = vmul.f32 %v2085, %v2100
      %v2102 = vadd.f32 %v2096, %v2101
      %v2103 = vlaneseq
      %v2104 = vshrl.u32 %v2103, 7
      %v2105 = vsub.s32 2, %v2104
      %v2106 = vrot.slane %v2083, %v2105
      %v2107 = vmul.f32 %v2086, %v2106
      %v2108 = vadd.f32 %v2102, %v2107
      %v2109 = vlaneseq
      %v2110 = vshrl.u32 %v2109, 7
      %v2111 = vsub.s32 3, %v2110
      %v2112 = vrot.slane %v2083, %v2111
      %v2113 = vmul.f32 %v2087, %v2112
      %v2114 = vadd.f32 %v2108, %v2113
      %v2115 = vlaneseq
      %v2116 = vshrl.u32 %v2115, 7
      %v2117 = vsub.s32 4, %v2116
      %v2118 = vrot.slane %v2083, %v2117
      %v2119 = vmul.f32 %v2088, %v2118
      %v2120 = vadd.f32 %v2114, %v2119
      %v2121 = vlaneseq
      %v2122 = vshrl.u32 %v2121, 7
      %v2123 = vsub.s32 5, %v2122
      %v2124 = vrot.slane %v2083, %v2123
      %v2125 = vmul.f32 %v2089, %v2124
      %v2126 = vadd.f32 %v2120, %v2125
      %v2127 = vlaneseq
      %v2128 = vshrl.u32 %v2127, 7
      %v2129 = vsub.s32 6, %v2128
      %v2130 = vrot.slane %v2083, %v2129
      %v2131 = vmul.f32 %v2090, %v2130
      %v2132 = vadd.f32 %v2126, %v2131
      %v2133 = vlaneseq
      %v2134 = vshrl.u32 %v2133, 7
      %v2135 = vsub.s32 7, %v2134
      %v2136 = vrot.slane %v2083, %v2135
      %v2137 = vmul.f32 %v2091, %v2136
      %v2138 = vadd.f32 %v2132, %v2137
      %v2139 = vld [vmem:[%s49] sm:$0xff]
      %v2140 = vld [vmem:[%s49 + $0x8] sm:$0xff]
      %v2141 = vld [vmem:[%s49 + $0x10] sm:$0xff]
      %v2142 = vld [vmem:[%s49 + $0x18] sm:$0x1]
      %v2144 = vsel %vm1835, %v2138, 0
      %v2147 = vsel %vm1759, %v2142, 0
      %2149 = vmatprep.subr.mxu0 0.0
      %2150 = vmatpush1.msra.mxu0 0.0
      %2151 = vmatprep.subr.mxu0 0.0
      %2152 = vmatpush1.msra.mxu0 0.0
      %2153 = vmatprep.subr.mxu0 0.0
      %2154 = vmatpush1.msra.mxu0 0.0
      %2155 = vmatprep.subr.mxu0 0.0
      %2156 = vmatpush1.msra.mxu0 0.0
      %2157 = vmatprep.subr.mxu0 0.0
      %2158 = vmatpush1.msra.mxu0 0.0
      %2159 = vmatprep.subr.mxu0 0.0
      %2160 = vmatpush1.msra.mxu0 0.0
      %2161 = vmatprep.subr.mxu0 0.0
      %2162 = vmatpush1.msra.mxu0 0.0
      %2163 = vmatprep.subr.mxu0 0.0
      %2164 = vmatpush1.msra.mxu0 0.0
      %2165 = vmatprep.subr.mxu0 0.0
      %2166 = vmatpush1.msra.mxu0 0.0
      %2167 = vmatprep.subr.mxu0 0.0
      %2168 = vmatpush1.msra.mxu0 0.0
      %2169 = vmatprep.subr.mxu0 0.0
      %2170 = vmatpush1.msra.mxu0 0.0
      %2171 = vmatprep.subr.mxu0 0.0
      %2172 = vmatpush1.msra.mxu0 0.0
      %2173 = vmatprep.subr.mxu0 0.0
      %2174 = vmatpush1.msra.mxu0 %v2147
      %2175 = vmatprep.subr.mxu0 0.0
      %2176 = vmatpush1.msra.mxu0 %v2141
      %2177 = vmatprep.subr.mxu0 0.0
      %2178 = vmatpush1.msra.mxu0 %v2140
      %2179 = vmatprep.subr.mxu0 0.0
      %2180 = vmatpush1.msra.mxu0 %v2139
      %2181 = vmatprep.subr.mxu0 0.0
      %2182 = vmatpush2.msra.mxu0 0.0
      %2183 = vmatprep.subr.mxu0 0.0
      %2184 = vmatpush2.msra.mxu0 0.0
      %2185 = vmatprep.subr.mxu0 0.0
      %2186 = vmatpush2.msra.mxu0 0.0
      %2187 = vmatprep.subr.mxu0 0.0
      %2188 = vmatpush2.msra.mxu0 0.0
      %2189 = vmatprep.subr.mxu0 0.0
      %2190 = vmatpush2.msra.mxu0 0.0
      %2191 = vmatprep.subr.mxu0 0.0
      %2192 = vmatpush2.msra.mxu0 0.0
      %2193 = vmatprep.subr.mxu0 0.0
      %2194 = vmatpush2.msra.mxu0 0.0
      %2195 = vmatprep.subr.mxu0 0.0
      %2196 = vmatpush2.msra.mxu0 0.0
      %2197 = vmatprep.subr.mxu0 0.0
      %2198 = vmatpush2.msra.mxu0 0.0
      %2199 = vmatprep.subr.mxu0 0.0
      %2200 = vmatpush2.msra.mxu0 0.0
      %2201 = vmatprep.subr.mxu0 0.0
      %2202 = vmatpush2.msra.mxu0 0.0
      %2203 = vmatprep.subr.mxu0 0.0
      %2204 = vmatpush2.msra.mxu0 0.0
      %2205 = vmatprep.subr.mxu0 0.0
      %2206 = vmatpush2.msra.mxu0 0.0
      %2207 = vmatprep.subr.mxu0 0.0
      %2208 = vmatpush2.msra.mxu0 0.0
      %2209 = vmatprep.subr.mxu0 0.0
      %2210 = vmatpush2.msra.mxu0 0.0
      %2211 = vmatprep.subr.mxu0 0.0
      %2212 = vmatpush2.msra.mxu0 0.0
      %2213 = vmatprep.mubr.f32.mxu0 0.0
      %2214 = vmatmul.mubr.f32.gmra.mxu0 %v2144
      %v2215 = vpop.f32.mrf.mxu0
      %v2216 = vadd.f32 0.0, %v2215
      %v2217 = vpop.f32.mrf.mxu0
      %2218 = vdwg.mxu0
      %v2219 = vld [vmem:[%s51] sm:$0xff]
      %v2220 = vld [vmem:[%s53] sm:$0xff]
      %vm2221 = vcmask 72704
      %v2222 = vsel %vm2221, %v2216, 0.0
      %2223 = vadd.xlane.f32.xlu0 %v2222
      %v2224 = vpop.xlane.xlu0 %2223
      %v2225 = vrot.slane %v2224, 4
      %v2226 = vadd.f32 %v2224, %v2225
      %v2227 = vrot.slane %v2226, 2
      %v2228 = vadd.f32 %v2226, %v2227
      %v2229 = vrot.slane %v2228, 1
      %v2230 = vadd.f32 %v2228, %v2229
      %v2231 = vrcp.pop 72.0
      %v2232 = vmul.f32 %v2230, %v2231
      %v2233 = vsub.f32 %v2216, %v2232
      %v2234 = vmul.f32 %v2233, %v2233
      %v2235 = vsel %vm2221, %v2234, 0.0
      %2236 = vadd.xlane.f32.xlu0 %v2235
      %v2237 = vpop.xlane.xlu0 %2236
      %v2238 = vrot.slane %v2237, 4
      %v2239 = vadd.f32 %v2237, %v2238
      %v2240 = vrot.slane %v2239, 2
      %v2241 = vadd.f32 %v2239, %v2240
      %v2242 = vrot.slane %v2241, 1
      %v2243 = vadd.f32 %v2241, %v2242
      %v2244 = vmul.f32 %v2243, %v2231
      %v2245 = vadd.f32 %v2244, 1e-05
      %v2246 = vrsqrt.pop %v2245
      %v2247 = vmul.f32 %v2233, %v2246
      %v2248 = vmul.f32 %v2247, %v2219
      %v2249 = vadd.f32 %v2248, %v2220
      %v2250 = vld [vmem:[%s59] sm:$0xff]
      %v2251 = vld [vmem:[%s59 + $0x8] sm:$0xff]
      %v2252 = vld [vmem:[%s59 + $0x10] sm:$0xff]
      %v2253 = vld [vmem:[%s59 + $0x18] sm:$0xff]
      %v2254 = vld [vmem:[%s59 + $0x20] sm:$0xff]
      %v2255 = vld [vmem:[%s59 + $0x28] sm:$0xff]
      %v2256 = vld [vmem:[%s59 + $0x30] sm:$0xff]
      %v2257 = vld [vmem:[%s59 + $0x38] sm:$0xff]
      %2259 = vset.pattern.permute.xlu0 0
      %2260 = vperm.xlu0 %2259, %v2250
      %v2261 = vpop.permute.xlu0 %2260
      %v2263 = vlaneseq
      %v2264 = vshrl.u32 %v2263, 7
      %v2265 = vsub.s32 0, %v2264
      %v2266 = vrot.slane %v2249, %v2265
      %v2267 = vmul.f32 %v2261, %v2266
      %2269 = vset.pattern.permute.xlu0 0
      %2270 = vperm.xlu0 %2269, %v2251
      %v2271 = vpop.permute.xlu0 %2270
      %v2273 = vlaneseq
      %v2274 = vshrl.u32 %v2273, 7
      %v2275 = vsub.s32 1, %v2274
      %v2276 = vrot.slane %v2249, %v2275
      %v2277 = vmul.f32 %v2271, %v2276
      %v2278 = vadd.f32 %v2267, %v2277
      %2280 = vset.pattern.permute.xlu0 0
      %2281 = vperm.xlu0 %2280, %v2252
      %v2282 = vpop.permute.xlu0 %2281
      %v2284 = vlaneseq
      %v2285 = vshrl.u32 %v2284, 7
      %v2286 = vsub.s32 2, %v2285
      %v2287 = vrot.slane %v2249, %v2286
      %v2288 = vmul.f32 %v2282, %v2287
      %v2289 = vadd.f32 %v2278, %v2288
      %2291 = vset.pattern.permute.xlu0 0
      %2292 = vperm.xlu0 %2291, %v2253
      %v2293 = vpop.permute.xlu0 %2292
      %v2295 = vlaneseq
      %v2296 = vshrl.u32 %v2295, 7
      %v2297 = vsub.s32 3, %v2296
      %v2298 = vrot.slane %v2249, %v2297
      %v2299 = vmul.f32 %v2293, %v2298
      %v2300 = vadd.f32 %v2289, %v2299
      %2302 = vset.pattern.permute.xlu0 0
      %2303 = vperm.xlu0 %2302, %v2254
      %v2304 = vpop.permute.xlu0 %2303
      %v2306 = vlaneseq
      %v2307 = vshrl.u32 %v2306, 7
      %v2308 = vsub.s32 4, %v2307
      %v2309 = vrot.slane %v2249, %v2308
      %v2310 = vmul.f32 %v2304, %v2309
      %v2311 = vadd.f32 %v2300, %v2310
      %2313 = vset.pattern.permute.xlu0 0
      %2314 = vperm.xlu0 %2313, %v2255
      %v2315 = vpop.permute.xlu0 %2314
      %v2317 = vlaneseq
      %v2318 = vshrl.u32 %v2317, 7
      %v2319 = vsub.s32 5, %v2318
      %v2320 = vrot.slane %v2249, %v2319
      %v2321 = vmul.f32 %v2315, %v2320
      %v2322 = vadd.f32 %v2311, %v2321
      %2324 = vset.pattern.permute.xlu0 0
      %2325 = vperm.xlu0 %2324, %v2256
      %v2326 = vpop.permute.xlu0 %2325
      %v2328 = vlaneseq
      %v2329 = vshrl.u32 %v2328, 7
      %v2330 = vsub.s32 6, %v2329
      %v2331 = vrot.slane %v2249, %v2330
      %v2332 = vmul.f32 %v2326, %v2331
      %v2333 = vadd.f32 %v2322, %v2332
      %2335 = vset.pattern.permute.xlu0 0
      %2336 = vperm.xlu0 %2335, %v2257
      %v2337 = vpop.permute.xlu0 %2336
      %v2339 = vlaneseq
      %v2340 = vshrl.u32 %v2339, 7
      %v2341 = vsub.s32 7, %v2340
      %v2342 = vrot.slane %v2249, %v2341
      %v2343 = vmul.f32 %v2337, %v2342
      %v2344 = vadd.f32 %v2333, %v2343
      %v2345 = vld [vmem:[%s55] sm:$0xff]
      %v2346 = vld [vmem:[%s57] sm:$0xff]
      %v2347 = vsel %vm2221, %v2344, 0.0
      %2348 = vadd.xlane.f32.xlu0 %v2347
      %v2349 = vpop.xlane.xlu0 %2348
      %v2350 = vrot.slane %v2349, 4
      %v2351 = vadd.f32 %v2349, %v2350
      %v2352 = vrot.slane %v2351, 2
      %v2353 = vadd.f32 %v2351, %v2352
      %v2354 = vrot.slane %v2353, 1
      %v2355 = vadd.f32 %v2353, %v2354
      %v2356 = vmul.f32 %v2355, %v2231
      %v2357 = vsub.f32 %v2344, %v2356
      %v2358 = vmul.f32 %v2357, %v2357
      %v2359 = vsel %vm2221, %v2358, 0.0
      %2360 = vadd.xlane.f32.xlu0 %v2359
      %v2361 = vpop.xlane.xlu0 %2360
      %v2362 = vrot.slane %v2361, 4
      %v2363 = vadd.f32 %v2361, %v2362
      %v2364 = vrot.slane %v2363, 2
      %v2365 = vadd.f32 %v2363, %v2364
      %v2366 = vrot.slane %v2365, 1
      %v2367 = vadd.f32 %v2365, %v2366
      %v2368 = vmul.f32 %v2367, %v2231
      %v2369 = vadd.f32 %v2368, 1e-05
      %v2370 = vrsqrt.pop %v2369
      %v2371 = vmul.f32 %v2357, %v2370
      %v2372 = vmul.f32 %v2371, %v2345
      %v2373 = vadd.f32 %v2372, %v2346
      %v2374 = vld [vmem:[%s61] sm:$0xff]
      %v2375 = vld [vmem:[%s61 + $0x8] sm:$0xff]
      %v2376 = vld [vmem:[%s61 + $0x10] sm:$0xff]
      %v2377 = vld [vmem:[%s61 + $0x18] sm:$0xff]
      %v2378 = vld [vmem:[%s61 + $0x20] sm:$0xff]
      %v2379 = vld [vmem:[%s61 + $0x28] sm:$0xff]
      %v2380 = vld [vmem:[%s61 + $0x30] sm:$0xff]
      %v2381 = vld [vmem:[%s61 + $0x38] sm:$0xff]
      %2383 = vset.pattern.permute.xlu0 0
      %2384 = vperm.xlu0 %2383, %v2374
      %v2385 = vpop.permute.xlu0 %2384
      %v2387 = vlaneseq
      %v2388 = vshrl.u32 %v2387, 7
      %v2389 = vsub.s32 0, %v2388
      %v2390 = vrot.slane %v2373, %v2389
      %v2391 = vmul.f32 %v2385, %v2390
      %v2392 = vadd.f32 %v2216, %v2391
      %2394 = vset.pattern.permute.xlu0 0
      %2395 = vperm.xlu0 %2394, %v2375
      %v2396 = vpop.permute.xlu0 %2395
      %v2398 = vlaneseq
      %v2399 = vshrl.u32 %v2398, 7
      %v2400 = vsub.s32 1, %v2399
      %v2401 = vrot.slane %v2373, %v2400
      %v2402 = vmul.f32 %v2396, %v2401
      %v2403 = vadd.f32 %v2392, %v2402
      %2405 = vset.pattern.permute.xlu0 0
      %2406 = vperm.xlu0 %2405, %v2376
      %v2407 = vpop.permute.xlu0 %2406
      %v2409 = vlaneseq
      %v2410 = vshrl.u32 %v2409, 7
      %v2411 = vsub.s32 2, %v2410
      %v2412 = vrot.slane %v2373, %v2411
      %v2413 = vmul.f32 %v2407, %v2412
      %v2414 = vadd.f32 %v2403, %v2413
      %2416 = vset.pattern.permute.xlu0 0
      %2417 = vperm.xlu0 %2416, %v2377
      %v2418 = vpop.permute.xlu0 %2417
      %v2420 = vlaneseq
      %v2421 = vshrl.u32 %v2420, 7
      %v2422 = vsub.s32 3, %v2421
      %v2423 = vrot.slane %v2373, %v2422
      %v2424 = vmul.f32 %v2418, %v2423
      %v2425 = vadd.f32 %v2414, %v2424
      %2427 = vset.pattern.permute.xlu0 0
      %2428 = vperm.xlu0 %2427, %v2378
      %v2429 = vpop.permute.xlu0 %2428
      %v2431 = vlaneseq
      %v2432 = vshrl.u32 %v2431, 7
      %v2433 = vsub.s32 4, %v2432
      %v2434 = vrot.slane %v2373, %v2433
      %v2435 = vmul.f32 %v2429, %v2434
      %v2436 = vadd.f32 %v2425, %v2435
      %2438 = vset.pattern.permute.xlu0 0
      %2439 = vperm.xlu0 %2438, %v2379
      %v2440 = vpop.permute.xlu0 %2439
      %v2442 = vlaneseq
      %v2443 = vshrl.u32 %v2442, 7
      %v2444 = vsub.s32 5, %v2443
      %v2445 = vrot.slane %v2373, %v2444
      %v2446 = vmul.f32 %v2440, %v2445
      %v2447 = vadd.f32 %v2436, %v2446
      %2449 = vset.pattern.permute.xlu0 0
      %2450 = vperm.xlu0 %2449, %v2380
      %v2451 = vpop.permute.xlu0 %2450
      %v2453 = vlaneseq
      %v2454 = vshrl.u32 %v2453, 7
      %v2455 = vsub.s32 6, %v2454
      %v2456 = vrot.slane %v2373, %v2455
      %v2457 = vmul.f32 %v2451, %v2456
      %v2458 = vadd.f32 %v2447, %v2457
      %2460 = vset.pattern.permute.xlu0 0
      %2461 = vperm.xlu0 %2460, %v2381
      %v2462 = vpop.permute.xlu0 %2461
      %v2464 = vlaneseq
      %v2465 = vshrl.u32 %v2464, 7
      %v2466 = vsub.s32 7, %v2465
      %v2467 = vrot.slane %v2373, %v2466
      %v2468 = vmul.f32 %v2462, %v2467
      %v2469 = vadd.f32 %v2458, %v2468
      %v2470 = vld [vmem:[%s63] sm:$0xff]
      %v2471 = vld [vmem:[%s63 + $0x8] sm:$0xff]
      %v2472 = vld [vmem:[%s63 + $0x10] sm:$0xff]
      %v2473 = vld [vmem:[%s63 + $0x18] sm:$0xff]
      %v2474 = vld [vmem:[%s63 + $0x20] sm:$0xff]
      %v2475 = vld [vmem:[%s63 + $0x28] sm:$0xff]
      %v2476 = vld [vmem:[%s63 + $0x30] sm:$0xff]
      %v2477 = vld [vmem:[%s63 + $0x38] sm:$0xff]
      %v2478 = vlaneseq
      %v2479 = vshrl.u32 %v2478, 7
      %v2480 = vsub.s32 0, %v2479
      %v2481 = vrot.slane %v2469, %v2480
      %v2482 = vmul.f32 %v2470, %v2481
      %v2483 = vlaneseq
      %v2484 = vshrl.u32 %v2483, 7
      %v2485 = vsub.s32 1, %v2484
      %v2486 = vrot.slane %v2469, %v2485
      %v2487 = vmul.f32 %v2471, %v2486
      %v2488 = vadd.f32 %v2482, %v2487
      %v2489 = vlaneseq
      %v2490 = vshrl.u32 %v2489, 7
      %v2491 = vsub.s32 2, %v2490
      %v2492 = vrot.slane %v2469, %v2491
      %v2493 = vmul.f32 %v2472, %v2492
      %v2494 = vadd.f32 %v2488, %v2493
      %v2495 = vlaneseq
      %v2496 = vshrl.u32 %v2495, 7
      %v2497 = vsub.s32 3, %v2496
      %v2498 = vrot.slane %v2469, %v2497
      %v2499 = vmul.f32 %v2473, %v2498
      %v2500 = vadd.f32 %v2494, %v2499
      %v2501 = vlaneseq
      %v2502 = vshrl.u32 %v2501, 7
      %v2503 = vsub.s32 4, %v2502
      %v2504 = vrot.slane %v2469, %v2503
      %v2505 = vmul.f32 %v2474, %v2504
      %v2506 = vadd.f32 %v2500, %v2505
      %v2507 = vlaneseq
      %v2508 = vshrl.u32 %v2507, 7
      %v2509 = vsub.s32 5, %v2508
      %v2510 = vrot.slane %v2469, %v2509
      %v2511 = vmul.f32 %v2475, %v2510
      %v2512 = vadd.f32 %v2506, %v2511
      %v2513 = vlaneseq
      %v2514 = vshrl.u32 %v2513, 7
      %v2515 = vsub.s32 6, %v2514
      %v2516 = vrot.slane %v2469, %v2515
      %v2517 = vmul.f32 %v2476, %v2516
      %v2518 = vadd.f32 %v2512, %v2517
      %v2519 = vlaneseq
      %v2520 = vshrl.u32 %v2519, 7
      %v2521 = vsub.s32 7, %v2520
      %v2522 = vrot.slane %v2469, %v2521
      %v2523 = vmul.f32 %v2477, %v2522
      %v2524 = vadd.f32 %v2518, %v2523
      %v2525 = vld [vmem:[%s65] sm:$0xff]
      %v2526 = vld [vmem:[%s65 + $0x8] sm:$0x1]
      %v2528 = vsel %vm2221, %v2524, 0
      %v2531 = vsel %vm1759, %v2526, 0
      %2533 = vmatprep.subr.mxu0 0.0
      %2534 = vmatpush1.msra.mxu0 0.0
      %2535 = vmatprep.subr.mxu0 0.0
      %2536 = vmatpush1.msra.mxu0 0.0
      %2537 = vmatprep.subr.mxu0 0.0
      %2538 = vmatpush1.msra.mxu0 0.0
      %2539 = vmatprep.subr.mxu0 0.0
      %2540 = vmatpush1.msra.mxu0 0.0
      %2541 = vmatprep.subr.mxu0 0.0
      %2542 = vmatpush1.msra.mxu0 0.0
      %2543 = vmatprep.subr.mxu0 0.0
      %2544 = vmatpush1.msra.mxu0 0.0
      %2545 = vmatprep.subr.mxu0 0.0
      %2546 = vmatpush1.msra.mxu0 0.0
      %2547 = vmatprep.subr.mxu0 0.0
      %2548 = vmatpush1.msra.mxu0 0.0
      %2549 = vmatprep.subr.mxu0 0.0
      %2550 = vmatpush1.msra.mxu0 0.0
      %2551 = vmatprep.subr.mxu0 0.0
      %2552 = vmatpush1.msra.mxu0 0.0
      %2553 = vmatprep.subr.mxu0 0.0
      %2554 = vmatpush1.msra.mxu0 0.0
      %2555 = vmatprep.subr.mxu0 0.0
      %2556 = vmatpush1.msra.mxu0 0.0
      %2557 = vmatprep.subr.mxu0 0.0
      %2558 = vmatpush1.msra.mxu0 0.0
      %2559 = vmatprep.subr.mxu0 0.0
      %2560 = vmatpush1.msra.mxu0 0.0
      %2561 = vmatprep.subr.mxu0 0.0
      %2562 = vmatpush1.msra.mxu0 %v2531
      %2563 = vmatprep.subr.mxu0 0.0
      %2564 = vmatpush1.msra.mxu0 %v2525
      %2565 = vmatprep.subr.mxu0 0.0
      %2566 = vmatpush2.msra.mxu0 0.0
      %2567 = vmatprep.subr.mxu0 0.0
      %2568 = vmatpush2.msra.mxu0 0.0
      %2569 = vmatprep.subr.mxu0 0.0
      %2570 = vmatpush2.msra.mxu0 0.0
      %2571 = vmatprep.subr.mxu0 0.0
      %2572 = vmatpush2.msra.mxu0 0.0
      %2573 = vmatprep.subr.mxu0 0.0
      %2574 = vmatpush2.msra.mxu0 0.0
      %2575 = vmatprep.subr.mxu0 0.0
      %2576 = vmatpush2.msra.mxu0 0.0
      %2577 = vmatprep.subr.mxu0 0.0
      %2578 = vmatpush2.msra.mxu0 0.0
      %2579 = vmatprep.subr.mxu0 0.0
      %2580 = vmatpush2.msra.mxu0 0.0
      %2581 = vmatprep.subr.mxu0 0.0
      %2582 = vmatpush2.msra.mxu0 0.0
      %2583 = vmatprep.subr.mxu0 0.0
      %2584 = vmatpush2.msra.mxu0 0.0
      %2585 = vmatprep.subr.mxu0 0.0
      %2586 = vmatpush2.msra.mxu0 0.0
      %2587 = vmatprep.subr.mxu0 0.0
      %2588 = vmatpush2.msra.mxu0 0.0
      %2589 = vmatprep.subr.mxu0 0.0
      %2590 = vmatpush2.msra.mxu0 0.0
      %2591 = vmatprep.subr.mxu0 0.0
      %2592 = vmatpush2.msra.mxu0 0.0
      %2593 = vmatprep.subr.mxu0 0.0
      %2594 = vmatpush2.msra.mxu0 0.0
      %2595 = vmatprep.subr.mxu0 0.0
      %2596 = vmatpush2.msra.mxu0 0.0
      %2597 = vmatprep.mubr.f32.mxu0 0.0
      %2598 = vmatmul.mubr.f32.gmra.mxu0 %v2528
      %v2599 = vpop.f32.mrf.mxu0
      %v2600 = vadd.f32 0.0, %v2599
      %v2601 = vpop.f32.mrf.mxu0
      %2602 = vdwg.mxu0
      %vm2603 = vcmask 31744
      %2604 = vst.msk [vmem:[%s1012] sm:$0xff] %vm2603, %v2600
      %p2605 = scmp.lt.s32.totalorder %s78, 1
      %s2606 = scalar_select %p2605, %s78, 1
      %s2607 = smul.addr %s2606, 8
      %s2608 = scalar_lea.vmem %s67, %s2607
      // Predicated region
      $region153: #{_lambda_.1} parent=151 // pred_check
        %p2609 = pneg %p794
      $region154: #{_lambda_.1} parent=151 // pred_check_branch
        %2611 = sbr.rel (%p2609) target = $region156
      $region155: #{_lambda_.1} parent=151 // pred_region
        _
      $region156: #{_lambda_.1} parent=151 // pred_fallthru
        _
    $region152: #{_lambda_.1} parent=5 // pred_fallthru
      _
    %p2612 = scmp.le.s32.totalorder 2, %s73
    // Predicated region
    $region157: #{_lambda_.1} parent=5 // pred_check
      %p2613 = pneg %p2612
    $region158: #{_lambda_.1} parent=5 // pred_check_branch
      %2615 = sbr.rel (%p2613) target = $region160
    $region159: #{_lambda_.1} parent=5 // pred_region
      %s2616 = ssub.s32 %s73, 2
      // Predicated region
      $region161: #{_lambda_.1} parent=159 // pred_check
        %p2617 = pneg %p800
      $region162: #{_lambda_.1} parent=159 // pred_check_branch
        %2619 = sbr.rel (%p2617) target = $region164
      $region163: #{_lambda_.1} parent=159 // pred_region
        %p2620 = scmp.lt.s32.totalorder %s79, 1
        %s2621 = scalar_select %p2620, %s79, 1
        %s2622 = smul.addr %s2621, 8
        %s2623 = scalar_lea.vmem %s67, %s2622
      $region164: #{_lambda_.1} parent=159 // pred_fallthru
        _
    $region160: #{_lambda_.1} parent=5 // pred_fallthru
      _
  $region6: #{_lambda_.1} parent=0 // loop_footer
    %s77 = sadd.s32 1, %s73
  $region7: #{_lambda_.1} parent=0 // loop_footer_branch
    %72 = sbr.rel target = $region3
  $region8: #{_lambda_.1} parent=0 // loop_exit
    _

</llo_original>
